<compile_context>
chip_gen: v7x
topology: tpu7x:2x2x1
jax: 0.10.0
libtpu: 0.0.40
codegen_flags: <defaults>
</compile_context>

<pallas_src>
import jax
import jax.numpy as jnp
from jax import lax
from jax.experimental import pallas as pl
from jax.experimental.pallas import tpu as pltpu

ALPHA = 0.001  # quadalpha

# Contract the minor dim of both operands: A(m,k) x B(n,k) -> (m,n)  (i.e. A @ B^T).
_TRANS_B = (((1,), (1,)), ((), ()))


def _qpp_kernel(y_ref, wa_ref, wb_ref, yhat_ref, out_ref):
    # y_ref:    (1, D)    flattened Y parameter (row, grid-invariant)
    # wa_ref:   (3D, D)   [P0^T ; P2^T ; I_D],  P_k = tril(clip(bases[..., k], -10, 10))
    # wb_ref:   (3D, D)   [P1^T ; P3^T ; I_D]
    # yhat_ref: (TB, D)   batch tile of predictions, natural batch-major layout
    # out_ref:  (1, TB)   quad + alpha * mse per batch element (lane-dense row)
    D = y_ref.shape[1]
    y = y_ref[...]                          # (1, D)
    yh = yhat_ref[...]                      # (TB, D)
    diff = y - yh                           # (TB, D)   == (self.Y - Yhat)

    # direction = (Yhat > Y); boolean selects, no float-mask arithmetic.
    m = yh > y                              # (TB, D) bool
    u1 = jnp.where(m, diff, 0.0)            # rows i with dir_i == 1
    u0 = diff - u1                          # rows i with dir_i == 0 (exact: u1 is 0 or diff)

    # One block matmul per dir_i branch (four basis planes fused into two block matrices).
    # trans_b contraction == the well-trodden flash-attention `q @ k^T` pattern, so the
    # natural-layout activations never need an explicit transpose; batch ends up on lanes.
    f32 = jnp.float32
    hi = lax.Precision.HIGHEST
    q = (lax.dot_general(wa_ref[...], u0, _TRANS_B,
                         precision=hi, preferred_element_type=f32)
         + lax.dot_general(wb_ref[...], u1, _TRANS_B,
                           precision=hi, preferred_element_type=f32))
    # q: (3D, TB):  rows [0,  D) = v  when dir_j == 0
    #               rows [D, 2D) = v  when dir_j == 1
    #               rows [2D,3D) = diff^T  (exact pass-through via the identity rows)
    p0 = q[:D]                              # (D, TB)
    p1 = q[D:2 * D]                         # (D, TB)
    dT = q[2 * D:]                          # (D, TB)
    mT = dT < 0.0                           # (Yhat > Y)^T   (diff < 0  <=>  Yhat > Y)
    v = jnp.where(mT, p1, p0)               # exactly the one-hot basis gather, (D, TB)

    # quad + alpha * mse fused into a single sublane reduction; mean divide and ALPHA
    # folded into one constant.
    out_ref[...] = jnp.sum(v * v + (ALPHA / D) * (dT * dT), axis=0, keepdims=True)


def _round_up(x, m):
    return (x + m - 1) // m * m


def quadratic_plus_plus(yhat, y_flat, bases, *, tb=None, max_tb=4096, min_grid=2):
    """Forward of QuadraticPlusPlus. yhat: (B, *Y_raw.shape); y_flat: (D,); bases: (D,D,4)."""
    B = yhat.shape[0]
    D = y_flat.shape[0]

    # Glue: torch `.view(..., num_dims)`.  No pad, no transpose — kernel reads (B, D) directly.
    yhat2 = yhat.reshape(B, D).astype(jnp.float32)
    y_row = y_flat.reshape(1, D).astype(jnp.float32)

    # Hoisted out of the kernel: clamp + tril per plane (exact: the gather is one-hot and
    # clamp(0) == 0).  Planes fused into two (3D, D) block matrices split by dir_i; the
    # trailing identity block transports diff^T exactly into the (D, TB) layout.
    planes = jnp.clip(bases.astype(jnp.float32), -10.0, 10.0)             # (D, D, 4)
    planes = planes * jnp.tril(jnp.ones((D, D), jnp.float32))[:, :, None]
    eye = jnp.eye(D, dtype=jnp.float32)
    wa = jnp.concatenate([planes[:, :, 0].T, planes[:, :, 2].T, eye], axis=0)   # (3D, D)
    wb = jnp.concatenate([planes[:, :, 1].T, planes[:, :, 3].T, eye], axis=0)   # (3D, D)

    # Batch tile: as big as possible (amortize ~0.35us/grid-step, reach HBM roofline) while
    # keeping grid >= min_grid so ("parallel",) spreads steps over both v7x TensorCores.
    # On single-TC v5e/v6e pass min_grid=1 for the fewest grid steps.
    if tb is None:
        steps = max(min_grid, pl.cdiv(B, max_tb))
        tb = min(max_tb, _round_up(pl.cdiv(B, steps), 128))
    assert tb % 128 == 0, "batch tile must be lane-aligned (multiple of 128)"
    grid = pl.cdiv(B, tb)
    # A partial last block (tb not dividing B) is safe: every kernel op is batch-local
    # (elementwise over batch rows, contraction only over D, sublane-only reductions), so
    # garbage in out-of-range batch entries stays in its own output lane and is dropped by
    # the masked store / never read back.

    out = pl.pallas_call(
        _qpp_kernel,
        out_shape=jax.ShapeDtypeStruct((1, B), jnp.float32),
        grid_spec=pltpu.PrefetchScalarGridSpec(
            num_scalar_prefetch=0,
            grid=(grid,),
            in_specs=[
                pl.BlockSpec((1, D), lambda i: (0, 0)),          # Y (grid-invariant)
                pl.BlockSpec((3 * D, D), lambda i: (0, 0)),      # Wa (grid-invariant)
                pl.BlockSpec((3 * D, D), lambda i: (0, 0)),      # Wb (grid-invariant)
                pl.BlockSpec((tb, D), lambda i: (i, 0)),         # Yhat batch tile
            ],
            out_specs=pl.BlockSpec((1, tb), lambda i: (0, i)),
        ),
        compiler_params=pltpu.CompilerParams(
            dimension_semantics=("parallel",)),
    )(y_row, wa, wb, yhat2)
    # torch does .squeeze(); for B > 1 that yields shape (B,)
    return out[0, :]


def _reference(yhat, y_flat, bases):
    """Pure-JAX transcription of the torch forward, for validation."""
    B = yhat.shape[0]
    D = y_flat.shape[0]
    Yhat = yhat.reshape(B, D)
    diff = y_flat[None, :] - Yhat
    direction = (Yhat > y_flat[None, :]).astype(jnp.int32)
    idx = direction[:, :, None] + 2 * direction[:, None, :]               # (B, D, D)
    basis = jnp.take_along_axis(
        jnp.broadcast_to(bases[None], (B, D, D, 4)), idx[..., None], axis=-1)[..., 0]
    basis = jnp.clip(jnp.tril(basis), -10.0, 10.0)
    v = jnp.einsum('bi,bij->bj', diff, basis,
                   precision=jax.lax.Precision.HIGHEST)
    quad = jnp.sum(v * v, axis=-1)
    mse = jnp.mean(diff * diff, axis=-1)
    return quad + ALPHA * mse


if __name__ == "__main__":
    key = jax.random.PRNGKey(0)
    k_y, k_b, k_yhat = jax.random.split(key, 3)

    # Y_raw has shape (4, 8) -> num_dims D = 32; predictions Yhat: (B, 4, 8)
    Y_raw_shape = (4, 8)
    D = Y_raw_shape[0] * Y_raw_shape[1]
    B = 512   # auto tile picker -> tb=256, grid of 2 (keeps both v7x TensorCores busy)

    Y_raw = jax.random.normal(k_y, Y_raw_shape, dtype=jnp.float32)
    y_flat = Y_raw.reshape(-1)                                            # the Y parameter
    # torch.rand((D, D, 4)) / (D * D)
    bases = jax.random.uniform(k_b, (D, D, 4), dtype=jnp.float32) / (D * D)
    Yhat = jax.random.normal(k_yhat, (B,) + Y_raw_shape, dtype=jnp.float32)

    out = quadratic_plus_plus(Yhat, y_flat, bases)
    out = jax.block_until_ready(out)

    ref = jax.block_until_ready(_reference(Yhat, y_flat, bases))
    assert out.shape == (B,)
    assert jnp.allclose(out, ref, rtol=1e-4, atol=1e-6), (out, ref)
    print("KERNEL_OK")
</pallas_src>

<mosaic_0001>
module attributes {stable_mosaic.version = 11 : i64} {
  func.func @_qpp_kernel(%arg0: i32, %arg1: memref<1x32xf32, #tpu.memory_space<vmem>>, %arg2: memref<96x32xf32, #tpu.memory_space<vmem>>, %arg3: memref<96x32xf32, #tpu.memory_space<vmem>>, %arg4: memref<256x32xf32, #tpu.memory_space<vmem>>, %arg5: memref<1x256xf32, #tpu.memory_space<vmem>>) attributes {dimension_semantics = [#tpu.dimension_semantics<parallel>], iteration_bounds = array<i64: 2>, scalar_prefetch = 0 : i64, scratch_operands = 0 : i64, tpu.core_type = #tpu.core_type<tc>, window_params = [{pipeline_mode = #tpu.pipeline_mode<synchronous>, transform_indices = @transform_0, window_bounds = array<i64: 1, 32>}, {pipeline_mode = #tpu.pipeline_mode<synchronous>, transform_indices = @transform_1, window_bounds = array<i64: 96, 32>}, {pipeline_mode = #tpu.pipeline_mode<synchronous>, transform_indices = @transform_2, window_bounds = array<i64: 96, 32>}, {transform_indices = @transform_3, window_bounds = array<i64: 256, 32>}, {transform_indices = @transform_4, window_bounds = array<i64: 1, 256>}]} {
    %c0 = arith.constant 0 : index
    %c0_0 = arith.constant 0 : index
    %0 = vector.load %arg1[%c0, %c0_0] : memref<1x32xf32, #tpu.memory_space<vmem>>, vector<1x32xf32>
    %c0_1 = arith.constant 0 : index
    %c0_2 = arith.constant 0 : index
    %1 = vector.load %arg4[%c0_1, %c0_2] : memref<256x32xf32, #tpu.memory_space<vmem>>, vector<256x32xf32>
    %2 = vector.broadcast %0 : vector<1x32xf32> to vector<256x32xf32>
    %3 = arith.subf %2, %1 : vector<256x32xf32>
    %4 = vector.broadcast %0 : vector<1x32xf32> to vector<256x32xf32>
    %5 = arith.cmpf ogt, %1, %4 : vector<256x32xf32>
    %cst = arith.constant 0.000000e+00 : f32
    %6 = vector.broadcast %cst : f32 to vector<256x32xf32>
    %7 = arith.select %5, %3, %6 : vector<256x32xi1>, vector<256x32xf32>
    %8 = arith.subf %3, %7 : vector<256x32xf32>
    %c0_3 = arith.constant 0 : index
    %c0_4 = arith.constant 0 : index
    %9 = vector.load %arg2[%c0_3, %c0_4] : memref<96x32xf32, #tpu.memory_space<vmem>>, vector<96x32xf32>
    %cst_5 = arith.constant dense<0.000000e+00> : vector<96x256xf32>
    %10 = tpu.matmul %9, %8, %cst_5 {dimension_numbers = #tpu.dot_dimension_numbers<[1], [1], [0], [0], [0, 0, 1, 0], [], []>, precision = #tpu.contract_precision<fp32>} : vector<96x32xf32>, vector<256x32xf32>, vector<96x256xf32> -> vector<96x256xf32>
    %c0_6 = arith.constant 0 : index
    %c0_7 = arith.constant 0 : index
    %11 = vector.load %arg3[%c0_6, %c0_7] : memref<96x32xf32, #tpu.memory_space<vmem>>, vector<96x32xf32>
    %cst_8 = arith.constant dense<0.000000e+00> : vector<96x256xf32>
    %12 = tpu.matmul %11, %7, %cst_8 {dimension_numbers = #tpu.dot_dimension_numbers<[1], [1], [0], [0], [0, 0, 1, 0], [], []>, precision = #tpu.contract_precision<fp32>} : vector<96x32xf32>, vector<256x32xf32>, vector<96x256xf32> -> vector<96x256xf32>
    %13 = arith.addf %10, %12 : vector<96x256xf32>
    %14 = vector.extract_strided_slice %13 {offsets = [0, 0], sizes = [32, 256], strides = [1, 1]} : vector<96x256xf32> to vector<32x256xf32>
    %15 = vector.extract_strided_slice %13 {offsets = [32, 0], sizes = [32, 256], strides = [1, 1]} : vector<96x256xf32> to vector<32x256xf32>
    %16 = vector.extract_strided_slice %13 {offsets = [64, 0], sizes = [32, 256], strides = [1, 1]} : vector<96x256xf32> to vector<32x256xf32>
    %cst_9 = arith.constant 0.000000e+00 : f32
    %17 = vector.broadcast %cst_9 : f32 to vector<32x256xf32>
    %18 = arith.cmpf olt, %16, %17 : vector<32x256xf32>
    %19 = arith.select %18, %15, %14 : vector<32x256xi1>, vector<32x256xf32>
    %20 = arith.mulf %19, %19 : vector<32x256xf32>
    %21 = arith.mulf %16, %16 : vector<32x256xf32>
    %cst_10 = arith.constant 3.125000e-05 : f32
    %22 = vector.broadcast %cst_10 : f32 to vector<32x256xf32>
    %23 = arith.mulf %22, %21 : vector<32x256xf32>
    %24 = arith.addf %20, %23 : vector<32x256xf32>
    %cst_11 = arith.constant dense<0.000000e+00> : vector<256xf32>
    %25 = vector.multi_reduction <add>, %24, %cst_11 [0] : vector<32x256xf32> to vector<256xf32>
    %26 = vector.shape_cast %25 : vector<256xf32> to vector<1x256xf32>
    %c0_12 = arith.constant 0 : index
    %c0_13 = arith.constant 0 : index
    %27 = vector.load %arg5[%c0_12, %c0_13] : memref<1x256xf32, #tpu.memory_space<vmem>>, vector<1x256xf32>
    tpu.vector_store %arg5[%c0_12, %c0_13], %26 {strides = array<i32>} : memref<1x256xf32, #tpu.memory_space<vmem>>, vector<1x256xf32>,
    return
  }
  func.func @transform_0(%arg0: i32) -> (i32, i32) {
    %c0_i32 = arith.constant 0 : i32
    %c0_i32_0 = arith.constant 0 : i32
    %c0_i32_1 = arith.constant 0 : i32
    return %c0_i32, %c0_i32_0 : i32, i32
  }
  func.func @transform_1(%arg0: i32) -> (i32, i32) {
    %c0_i32 = arith.constant 0 : i32
    %c0_i32_0 = arith.constant 0 : i32
    %c0_i32_1 = arith.constant 0 : i32
    return %c0_i32, %c0_i32_0 : i32, i32
  }
  func.func @transform_2(%arg0: i32) -> (i32, i32) {
    %c0_i32 = arith.constant 0 : i32
    %c0_i32_0 = arith.constant 0 : i32
    %c0_i32_1 = arith.constant 0 : i32
    return %c0_i32, %c0_i32_0 : i32, i32
  }
  func.func @transform_3(%arg0: i32) -> (i32, i32) {
    %c0_i32 = arith.constant 0 : i32
    %c0_i32_0 = arith.constant 0 : i32
    return %arg0, %c0_i32 : i32, i32
  }
  func.func @transform_4(%arg0: i32) -> (i32, i32) {
    %c0_i32 = arith.constant 0 : i32
    %c0_i32_0 = arith.constant 0 : i32
    return %c0_i32, %arg0 : i32, i32
  }
}

</mosaic_0001>

<llo_original>
// kernel: tpu_custom_call.1
$region0: #{tpu_custom_call.1}
  #allocation0 [shape = 'u32[]', space=smem, size = 0x4, offset = 0x4, fixed_abs, tag = 'smem constant byte address 0x4 - core index']
  #allocation1 [shape = 'u32[144,128]{1,0:T(1,128)}', space=vmem, size = 0x12000, scoped, tag = 'internal scratch']
  %s0 = inlined_call_operand.vmem [shape: f32[1,32], index: 0, kind: input, shape index: {}]
  %s1 = inlined_call_operand.vmem [shape: f32[96,32], index: 1, kind: input, shape index: {}]
  %s2 = inlined_call_operand.vmem [shape: f32[96,32], index: 2, kind: input, shape index: {}]
  %s3 = inlined_call_operand.vmem [shape: f32[512,32], index: 3, kind: input, shape index: {}]
  %s4 = inlined_call_operand.hbm [shape: f32[1,512], index: 4, kind: output, shape index: {}]
  %s5 = sld [smem:[#allocation0]]
  $region49: #{tpu_custom_call.1} parent=0
    _
  %s7 = ssub.s32 1, %s5
  %s8 = scalar_select 0, %s7, %s5
  $region1: #{tpu_custom_call.1} parent=0
    #allocation2 [shape = 'u8[2048]{0}', space=vmem, size = 0x800, scoped, tag = 'output window, operand 0']
    #allocation3 [shape = 's32[2]{0}', space=sflag, size = 0x8, scoped, tag = 'scoped memory for tpu_custom_call.1']
    %9 = vsyncpa [#allocation3], 0
    %s10 = scalar_lea.sflag [#allocation3], 1
    %11 = vsyncpa %s10, 0
    loop: start=0, step=1, limit=4
    $region2: #{tpu_custom_call.1} parent=1 // loop_pre_header
      _
    $region3: #{tpu_custom_call.1} parent=1 // loop_header
      %s13 = sphi 0, %s17
      %p14 = scmp.ge.s32.totalorder %s13, 4
      %s21 = sphi 0, %s21
      %s23 = sphi 0, %s21
      %s24 = sphi 0, %s23
      %s38 = sphi 0, %s24
      %s42 = sphi 0, %s42
      %s44 = sphi 0, %s42
      %s45 = sphi 0, %s44
      %s59 = sphi 0, %s45
      %s63 = sphi 0, %s63
      %s65 = sphi 0, %s63
      %s66 = sphi 0, %s65
      %s80 = sphi 0, %s66
      %s86 = sphi 0, %s88
      %s89 = sphi 0, %s86
      %s90 = sphi 0, %s89
      %s106 = sphi 0, %s90
      %s112 = sphi 0, %s114
      %s115 = sphi 0, %s112
      %s116 = sphi 0, %s115
      %s132 = sphi 0, %s116
    $region4: #{tpu_custom_call.1} parent=1 // loop_header_branch
      %16 = sbr.rel (%p14) target = $region8
    $region5: #{tpu_custom_call.1} parent=1 // loop_body
      %s18 = ssub.s32 %s13, 1
      %s19 = ssub.s32 %s13, 2
      %s20 = sadd.s32 %s13, 1
      %s22 = sadd.s32 %s21, 1
      %p25 = scmp.eq.s32.totalorder %s13, 1
      %p26 = scmp.ne.s32.totalorder %s21, %s23
      %p27 = scmp.eq.s32.totalorder %s13, 0
      %p28 = por %p26, %p27
      %p29 = scmp.ne.s32.totalorder %s21, %s23
      %p30 = scmp.eq.s32.totalorder %s18, 1
      %p31 = por %p29, %p30
      %p32 = scmp.ne.s32.totalorder %s23, %s24
      %p33 = scmp.eq.s32.totalorder %s18, 0
      %p34 = por %p32, %p33
      %p35 = scmp.ne.s32.totalorder %s23, %s24
      %p36 = scmp.eq.s32.totalorder %s19, 1
      %p37 = por %p35, %p36
      %p39 = scmp.ne.s32.totalorder %s24, %s38
      %p40 = scmp.eq.s32.totalorder %s19, 0
      %p41 = por %p39, %p40
      %s43 = sadd.s32 %s42, 1
      %p46 = scmp.eq.s32.totalorder %s13, 1
      %p47 = scmp.ne.s32.totalorder %s42, %s44
      %p48 = scmp.eq.s32.totalorder %s13, 0
      %p49 = por %p47, %p48
      %p50 = scmp.ne.s32.totalorder %s42, %s44
      %p51 = scmp.eq.s32.totalorder %s18, 1
      %p52 = por %p50, %p51
      %p53 = scmp.ne.s32.totalorder %s44, %s45
      %p54 = scmp.eq.s32.totalorder %s18, 0
      %p55 = por %p53, %p54
      %p56 = scmp.ne.s32.totalorder %s44, %s45
      %p57 = scmp.eq.s32.totalorder %s19, 1
      %p58 = por %p56, %p57
      %p60 = scmp.ne.s32.totalorder %s45, %s59
      %p61 = scmp.eq.s32.totalorder %s19, 0
      %p62 = por %p60, %p61
      %s64 = sadd.s32 %s63, 1
      %p67 = scmp.eq.s32.totalorder %s13, 1
      %p68 = scmp.ne.s32.totalorder %s63, %s65
      %p69 = scmp.eq.s32.totalorder %s13, 0
      %p70 = por %p68, %p69
      %p71 = scmp.ne.s32.totalorder %s63, %s65
      %p72 = scmp.eq.s32.totalorder %s18, 1
      %p73 = por %p71, %p72
      %p74 = scmp.ne.s32.totalorder %s65, %s66
      %p75 = scmp.eq.s32.totalorder %s18, 0
      %p76 = por %p74, %p75
      %p77 = scmp.ne.s32.totalorder %s65, %s66
      %p78 = scmp.eq.s32.totalorder %s19, 1
      %p79 = por %p77, %p78
      %p81 = scmp.ne.s32.totalorder %s66, %s80
      %p82 = scmp.eq.s32.totalorder %s19, 0
      %p83 = por %p81, %p82
      %s84 = ssub.s32 %s13, %s20
      %p85 = scmp.eq.s32.totalorder %s84, 0
      %s87 = sadd.s32 %s86, 1
      %s88 = scalar_select %p85, %s86, %s87
      %p91 = pneg %p85
      %p92 = scmp.eq.s32.totalorder %s13, 1
      %p93 = por %p91, %p92
      %p94 = scmp.ne.s32.totalorder %s86, %s89
      %p95 = scmp.eq.s32.totalorder %s13, 0
      %p96 = por %p94, %p95
      %p97 = scmp.ne.s32.totalorder %s86, %s89
      %p98 = scmp.eq.s32.totalorder %s18, 1
      %p99 = por %p97, %p98
      %p100 = scmp.ne.s32.totalorder %s89, %s90
      %p101 = scmp.eq.s32.totalorder %s18, 0
      %p102 = por %p100, %p101
      %p103 = scmp.ne.s32.totalorder %s89, %s90
      %p104 = scmp.eq.s32.totalorder %s19, 1
      %p105 = por %p103, %p104
      %p107 = scmp.ne.s32.totalorder %s90, %s106
      %p108 = scmp.eq.s32.totalorder %s19, 0
      %p109 = por %p107, %p108
      %s110 = ssub.s32 %s13, %s20
      %p111 = scmp.eq.s32.totalorder %s110, 0
      %s113 = sadd.s32 %s112, 1
      %s114 = scalar_select %p111, %s112, %s113
      %p117 = pneg %p111
      %p118 = scmp.eq.s32.totalorder %s13, 1
      %p119 = por %p117, %p118
      %p120 = scmp.ne.s32.totalorder %s112, %s115
      %p121 = scmp.eq.s32.totalorder %s13, 0
      %p122 = por %p120, %p121
      %p123 = scmp.ne.s32.totalorder %s112, %s115
      %p124 = scmp.eq.s32.totalorder %s18, 1
      %p125 = por %p123, %p124
      %p126 = scmp.ne.s32.totalorder %s115, %s116
      %p127 = scmp.eq.s32.totalorder %s18, 0
      %p128 = por %p126, %p127
      %p129 = scmp.ne.s32.totalorder %s115, %s116
      %p130 = scmp.eq.s32.totalorder %s19, 1
      %p131 = por %p129, %p130
      %p133 = scmp.ne.s32.totalorder %s116, %s132
      %p134 = scmp.eq.s32.totalorder %s19, 0
      %p135 = por %p133, %p134
      %p136 = scmp.le.s32.totalorder 1, %s13
      %p137 = scmp.lt.s32.totalorder %s13, 3
      %p138 = pnand %p136, %p137
      %p139 = pneg %p138
      // Predicated region
      $region9: #{tpu_custom_call.1} parent=5 // pred_check
        _
      $region10: #{tpu_custom_call.1} parent=5 // pred_check_branch
        %141 = sbr.rel (%p138) target = $region12
      $region11: #{tpu_custom_call.1} parent=5 // pred_region
        %s142 = ssub.s32 %s13, 1
        // Predicated region
        $region13: #{tpu_custom_call.1} parent=11 // pred_check
          %p143 = pneg %p34
        $region14: #{tpu_custom_call.1} parent=11 // pred_check_branch
          %145 = sbr.rel (%p143) target = $region16
        $region15: #{tpu_custom_call.1} parent=11 // pred_region
          _
        $region16: #{tpu_custom_call.1} parent=11 // pred_fallthru
          _
        // Predicated region
        $region17: #{tpu_custom_call.1} parent=11 // pred_check
          %p146 = pneg %p55
        $region18: #{tpu_custom_call.1} parent=11 // pred_check_branch
          %148 = sbr.rel (%p146) target = $region20
        $region19: #{tpu_custom_call.1} parent=11 // pred_region
          _
        $region20: #{tpu_custom_call.1} parent=11 // pred_fallthru
          _
        // Predicated region
        $region21: #{tpu_custom_call.1} parent=11 // pred_check
          %p149 = pneg %p76
        $region22: #{tpu_custom_call.1} parent=11 // pred_check_branch
          %151 = sbr.rel (%p149) target = $region24
        $region23: #{tpu_custom_call.1} parent=11 // pred_region
          _
        $region24: #{tpu_custom_call.1} parent=11 // pred_fallthru
          _
      $region12: #{tpu_custom_call.1} parent=5 // pred_fallthru
        _
      %p152 = scmp.lt.s32.totalorder %s13, 2
      // Predicated region
      $region25: #{tpu_custom_call.1} parent=5 // pred_check
        %p153 = pneg %p152
      $region26: #{tpu_custom_call.1} parent=5 // pred_check_branch
        %155 = sbr.rel (%p153) target = $region28
      $region27: #{tpu_custom_call.1} parent=5 // pred_region
        // Predicated region
        $region29: #{tpu_custom_call.1} parent=27 // pred_check
          %p156 = pneg %p96
        $region30: #{tpu_custom_call.1} parent=27 // pred_check_branch
          %158 = sbr.rel (%p156) target = $region32
        $region31: #{tpu_custom_call.1} parent=27 // pred_region
          %s159 = smul.u32 32, %s13
          %p160 = scmp.lt.s32.totalorder %s159, 63
          %s161 = scalar_select %p160, %s159, 63
          %s162 = smul.addr %s161, 8
          %s163 = scalar_lea.vmem %s3, %s162
          %s164 = smul.u32 32, %s13
        $region32: #{tpu_custom_call.1} parent=27 // pred_fallthru
          _
      $region28: #{tpu_custom_call.1} parent=5 // pred_fallthru
        _
      %p165 = scmp.le.s32.totalorder 1, %s13
      %p166 = scmp.lt.s32.totalorder %s13, 3
      %p167 = pnand %p165, %p166
      %p168 = pneg %p167
      // Predicated region
      $region33: #{tpu_custom_call.1} parent=5 // pred_check
        _
      $region34: #{tpu_custom_call.1} parent=5 // pred_check_branch
        %170 = sbr.rel (%p167) target = $region36
      $region35: #{tpu_custom_call.1} parent=5 // pred_region
        %s171 = ssub.s32 %s13, 1
        %p172 = pneg %p34
        %p173 = pneg %p31
        %p174 = pneg %p55
        %p175 = pneg %p52
        %p176 = pneg %p76
        %p177 = pneg %p73
        %s178 = smul.u32 32, %s18
        %p179 = scmp.lt.s32.totalorder %s178, 63
        %s180 = scalar_select %p179, %s178, 63
        %s181 = smul.addr %s180, 8
        %s182 = scalar_lea.vmem %s3, %s181
        %p183 = pneg %p102
        %p184 = pneg %p99
        %p185 = pneg %p128
        %p186 = pneg %p125
        %s187 = sand.u32 %s115, 1
        %s188 = scalar_lea.sflag [#allocation3], %s187
        %s189 = sand.u32 %s115, 1
        %s190 = smul.addr %s189, 2
        %s191 = scalar_lea.vmem [#allocation2], %s190
        %s192 = smul.u32 32, %s18
        %p193 = scmp.lt.s32.totalorder %s192, 63
        %s194 = scalar_select %p193, %s192, 63
        %s195 = smul.addr %s194, 8
        %s196 = scalar_lea.vmem %s3, %s195
        %s197 = smul.u32 32, %s18
        %s198 = smul.u32 2, %s18
        %v199 = vld [vmem:[%s0] sm:$0x1]
        %v200 = vld [vmem:[%s196] sm:$0xff]
        %v201 = vld [vmem:[%s196 + $0x8] sm:$0xff]
        %v202 = vld [vmem:[%s196 + $0x10] sm:$0xff]
        %v203 = vld [vmem:[%s196 + $0x18] sm:$0xff]
        %v204 = vld [vmem:[%s196 + $0x20] sm:$0xff]
        %v205 = vld [vmem:[%s196 + $0x28] sm:$0xff]
        %v206 = vld [vmem:[%s196 + $0x30] sm:$0xff]
        %v207 = vld [vmem:[%s196 + $0x38] sm:$0xff]
        %v208 = vld [vmem:[%s196 + $0x40] sm:$0xff]
        %v209 = vld [vmem:[%s196 + $0x48] sm:$0xff]
        %v210 = vld [vmem:[%s196 + $0x50] sm:$0xff]
        %v211 = vld [vmem:[%s196 + $0x58] sm:$0xff]
        %v212 = vld [vmem:[%s196 + $0x60] sm:$0xff]
        %v213 = vld [vmem:[%s196 + $0x68] sm:$0xff]
        %v214 = vld [vmem:[%s196 + $0x70] sm:$0xff]
        %v215 = vld [vmem:[%s196 + $0x78] sm:$0xff]
        %v216 = vld [vmem:[%s196 + $0x80] sm:$0xff]
        %v217 = vld [vmem:[%s196 + $0x88] sm:$0xff]
        %v218 = vld [vmem:[%s196 + $0x90] sm:$0xff]
        %v219 = vld [vmem:[%s196 + $0x98] sm:$0xff]
        %v220 = vld [vmem:[%s196 + $0xa0] sm:$0xff]
        %v221 = vld [vmem:[%s196 + $0xa8] sm:$0xff]
        %v222 = vld [vmem:[%s196 + $0xb0] sm:$0xff]
        %v223 = vld [vmem:[%s196 + $0xb8] sm:$0xff]
        %v224 = vld [vmem:[%s196 + $0xc0] sm:$0xff]
        %v225 = vld [vmem:[%s196 + $0xc8] sm:$0xff]
        %v226 = vld [vmem:[%s196 + $0xd0] sm:$0xff]
        %v227 = vld [vmem:[%s196 + $0xd8] sm:$0xff]
        %v228 = vld [vmem:[%s196 + $0xe0] sm:$0xff]
        %v229 = vld [vmem:[%s196 + $0xe8] sm:$0xff]
        %v230 = vld [vmem:[%s196 + $0xf0] sm:$0xff]
        %v231 = vld [vmem:[%s196 + $0xf8] sm:$0xff]
        %v233 = vlaneseq
        %v234 = vshrl.u32 %v233, 7
        %v235 = vsub.s32 0, %v234
        %v236 = vrot.slane %v199, %v235
        %v238 = vsub.f32 %v236, %v200
        %v239 = vsub.f32 %v236, %v201
        %v240 = vsub.f32 %v236, %v202
        %v241 = vsub.f32 %v236, %v203
        %v242 = vsub.f32 %v236, %v204
        %v243 = vsub.f32 %v236, %v205
        %v244 = vsub.f32 %v236, %v206
        %v245 = vsub.f32 %v236, %v207
        %v246 = vsub.f32 %v236, %v208
        %v247 = vsub.f32 %v236, %v209
        %v248 = vsub.f32 %v236, %v210
        %v249 = vsub.f32 %v236, %v211
        %v250 = vsub.f32 %v236, %v212
        %v251 = vsub.f32 %v236, %v213
        %v252 = vsub.f32 %v236, %v214
        %v253 = vsub.f32 %v236, %v215
        %v254 = vsub.f32 %v236, %v216
        %v255 = vsub.f32 %v236, %v217
        %v256 = vsub.f32 %v236, %v218
        %v257 = vsub.f32 %v236, %v219
        %v258 = vsub.f32 %v236, %v220
        %v259 = vsub.f32 %v236, %v221
        %v260 = vsub.f32 %v236, %v222
        %v261 = vsub.f32 %v236, %v223
        %v262 = vsub.f32 %v236, %v224
        %v263 = vsub.f32 %v236, %v225
        %v264 = vsub.f32 %v236, %v226
        %v265 = vsub.f32 %v236, %v227
        %v266 = vsub.f32 %v236, %v228
        %v267 = vsub.f32 %v236, %v229
        %v268 = vsub.f32 %v236, %v230
        %v269 = vsub.f32 %v236, %v231
        %vm270 = vcmp.gt.f32.partialorder %v200, %v236
        %vm271 = vcmp.gt.f32.partialorder %v201, %v236
        %vm272 = vcmp.gt.f32.partialorder %v202, %v236
        %vm273 = vcmp.gt.f32.partialorder %v203, %v236
        %vm274 = vcmp.gt.f32.partialorder %v204, %v236
        %vm275 = vcmp.gt.f32.partialorder %v205, %v236
        %vm276 = vcmp.gt.f32.partialorder %v206, %v236
        %vm277 = vcmp.gt.f32.partialorder %v207, %v236
        %vm278 = vcmp.gt.f32.partialorder %v208, %v236
        %vm279 = vcmp.gt.f32.partialorder %v209, %v236
        %vm280 = vcmp.gt.f32.partialorder %v210, %v236
        %vm281 = vcmp.gt.f32.partialorder %v211, %v236
        %vm282 = vcmp.gt.f32.partialorder %v212, %v236
        %vm283 = vcmp.gt.f32.partialorder %v213, %v236
        %vm284 = vcmp.gt.f32.partialorder %v214, %v236
        %vm285 = vcmp.gt.f32.partialorder %v215, %v236
        %vm286 = vcmp.gt.f32.partialorder %v216, %v236
        %vm287 = vcmp.gt.f32.partialorder %v217, %v236
        %vm288 = vcmp.gt.f32.partialorder %v218, %v236
        %vm289 = vcmp.gt.f32.partialorder %v219, %v236
        %vm290 = vcmp.gt.f32.partialorder %v220, %v236
        %vm291 = vcmp.gt.f32.partialorder %v221, %v236
        %vm292 = vcmp.gt.f32.partialorder %v222, %v236
        %vm293 = vcmp.gt.f32.partialorder %v223, %v236
        %vm294 = vcmp.gt.f32.partialorder %v224, %v236
        %vm295 = vcmp.gt.f32.partialorder %v225, %v236
        %vm296 = vcmp.gt.f32.partialorder %v226, %v236
        %vm297 = vcmp.gt.f32.partialorder %v227, %v236
        %vm298 = vcmp.gt.f32.partialorder %v228, %v236
        %vm299 = vcmp.gt.f32.partialorder %v229, %v236
        %vm300 = vcmp.gt.f32.partialorder %v230, %v236
        %vm301 = vcmp.gt.f32.partialorder %v231, %v236
        %v302 = vsel %vm270, %v238, 0.0
        %v303 = vsel %vm271, %v239, 0.0
        %v304 = vsel %vm272, %v240, 0.0
        %v305 = vsel %vm273, %v241, 0.0
        %v306 = vsel %vm274, %v242, 0.0
        %v307 = vsel %vm275, %v243, 0.0
        %v308 = vsel %vm276, %v244, 0.0
        %v309 = vsel %vm277, %v245, 0.0
        %v310 = vsel %vm278, %v246, 0.0
        %v311 = vsel %vm279, %v247, 0.0
        %v312 = vsel %vm280, %v248, 0.0
        %v313 = vsel %vm281, %v249, 0.0
        %v314 = vsel %vm282, %v250, 0.0
        %v315 = vsel %vm283, %v251, 0.0
        %v316 = vsel %vm284, %v252, 0.0
        %v317 = vsel %vm285, %v253, 0.0
        %v318 = vsel %vm286, %v254, 0.0
        %v319 = vsel %vm287, %v255, 0.0
        %v320 = vsel %vm288, %v256, 0.0
        %v321 = vsel %vm289, %v257, 0.0
        %v322 = vsel %vm290, %v258, 0.0
        %v323 = vsel %vm291, %v259, 0.0
        %v324 = vsel %vm292, %v260, 0.0
        %v325 = vsel %vm293, %v261, 0.0
        %v326 = vsel %vm294, %v262, 0.0
        %v327 = vsel %vm295, %v263, 0.0
        %v328 = vsel %vm296, %v264, 0.0
        %v329 = vsel %vm297, %v265, 0.0
        %v330 = vsel %vm298, %v266, 0.0
        %v331 = vsel %vm299, %v267, 0.0
        %v332 = vsel %vm300, %v268, 0.0
        %v333 = vsel %vm301, %v269, 0.0
        %v334 = vsub.f32 %v238, %v302
        %v335 = vsub.f32 %v239, %v303
        %v336 = vsub.f32 %v240, %v304
        %v337 = vsub.f32 %v241, %v305
        %v338 = vsub.f32 %v242, %v306
        %v339 = vsub.f32 %v243, %v307
        %v340 = vsub.f32 %v244, %v308
        %v341 = vsub.f32 %v245, %v309
        %v342 = vsub.f32 %v246, %v310
        %v343 = vsub.f32 %v247, %v311
        %v344 = vsub.f32 %v248, %v312
        %v345 = vsub.f32 %v249, %v313
        %v346 = vsub.f32 %v250, %v314
        %v347 = vsub.f32 %v251, %v315
        %v348 = vsub.f32 %v252, %v316
        %v349 = vsub.f32 %v253, %v317
        %v350 = vsub.f32 %v254, %v318
        %v351 = vsub.f32 %v255, %v319
        %v352 = vsub.f32 %v256, %v320
        %v353 = vsub.f32 %v257, %v321
        %v354 = vsub.f32 %v258, %v322
        %v355 = vsub.f32 %v259, %v323
        %v356 = vsub.f32 %v260, %v324
        %v357 = vsub.f32 %v261, %v325
        %v358 = vsub.f32 %v262, %v326
        %v359 = vsub.f32 %v263, %v327
        %v360 = vsub.f32 %v264, %v328
        %v361 = vsub.f32 %v265, %v329
        %v362 = vsub.f32 %v266, %v330
        %v363 = vsub.f32 %v267, %v331
        %v364 = vsub.f32 %v268, %v332
        %v365 = vsub.f32 %v269, %v333
        %v366 = vld [vmem:[%s1] sm:$0xff]
        %v367 = vld [vmem:[%s1 + $0x8] sm:$0xff]
        %v368 = vld [vmem:[%s1 + $0x10] sm:$0xff]
        %v369 = vld [vmem:[%s1 + $0x18] sm:$0xff]
        %v370 = vld [vmem:[%s1 + $0x20] sm:$0xff]
        %v371 = vld [vmem:[%s1 + $0x28] sm:$0xff]
        %v372 = vld [vmem:[%s1 + $0x30] sm:$0xff]
        %v373 = vld [vmem:[%s1 + $0x38] sm:$0xff]
        %v374 = vld [vmem:[%s1 + $0x40] sm:$0xff]
        %v375 = vld [vmem:[%s1 + $0x48] sm:$0xff]
        %v376 = vld [vmem:[%s1 + $0x50] sm:$0xff]
        %v377 = vld [vmem:[%s1 + $0x58] sm:$0xff]
        %v378 = vld [vmem:[%s2] sm:$0xff]
        %v379 = vld [vmem:[%s2 + $0x8] sm:$0xff]
        %v380 = vld [vmem:[%s2 + $0x10] sm:$0xff]
        %v381 = vld [vmem:[%s2 + $0x18] sm:$0xff]
        %v382 = vld [vmem:[%s2 + $0x20] sm:$0xff]
        %v383 = vld [vmem:[%s2 + $0x28] sm:$0xff]
        %v384 = vld [vmem:[%s2 + $0x30] sm:$0xff]
        %v385 = vld [vmem:[%s2 + $0x38] sm:$0xff]
        %v386 = vld [vmem:[%s2 + $0x40] sm:$0xff]
        %v387 = vld [vmem:[%s2 + $0x48] sm:$0xff]
        %v388 = vld [vmem:[%s2 + $0x50] sm:$0xff]
        %v389 = vld [vmem:[%s2 + $0x58] sm:$0xff]
        %vm390 = vcmask 261120
        %v392 = vsel %vm390, %v378, 0
        %v395 = vsel %vm390, %v379, 0
        %v398 = vsel %vm390, %v380, 0
        %v401 = vsel %vm390, %v381, 0
        %v404 = vsel %vm390, %v382, 0
        %v407 = vsel %vm390, %v383, 0
        %v410 = vsel %vm390, %v384, 0
        %v413 = vsel %vm390, %v385, 0
        %v416 = vsel %vm390, %v386, 0
        %v419 = vsel %vm390, %v387, 0
        %v422 = vsel %vm390, %v388, 0
        %v425 = vsel %vm390, %v389, 0
        %v428 = vsel %vm390, %v302, 0
        %v431 = vsel %vm390, %v303, 0
        %v434 = vsel %vm390, %v304, 0
        %v437 = vsel %vm390, %v305, 0
        %v440 = vsel %vm390, %v306, 0
        %v443 = vsel %vm390, %v307, 0
        %v446 = vsel %vm390, %v308, 0
        %v449 = vsel %vm390, %v309, 0
        %v452 = vsel %vm390, %v310, 0
        %v455 = vsel %vm390, %v311, 0
        %v458 = vsel %vm390, %v312, 0
        %v461 = vsel %vm390, %v313, 0
        %v464 = vsel %vm390, %v314, 0
        %v467 = vsel %vm390, %v315, 0
        %v470 = vsel %vm390, %v316, 0
        %v473 = vsel %vm390, %v317, 0
        %v476 = vsel %vm390, %v318, 0
        %v479 = vsel %vm390, %v319, 0
        %v482 = vsel %vm390, %v320, 0
        %v485 = vsel %vm390, %v321, 0
        %v488 = vsel %vm390, %v322, 0
        %v491 = vsel %vm390, %v323, 0
        %v494 = vsel %vm390, %v324, 0
        %v497 = vsel %vm390, %v325, 0
        %v500 = vsel %vm390, %v326, 0
        %v503 = vsel %vm390, %v327, 0
        %v506 = vsel %vm390, %v328, 0
        %v509 = vsel %vm390, %v329, 0
        %v512 = vsel %vm390, %v330, 0
        %v515 = vsel %vm390, %v331, 0
        %v518 = vsel %vm390, %v332, 0
        %v521 = vsel %vm390, %v333, 0
        %523 = vmatprep.subr.mxu0 0.0
        %v524 = vand.u32 %v428, 4294901760
        %525 = vmatpush1.xpose.msra.mxu0 %v524
        %526 = vmatprep.subr.mxu0 0.0
        %v527 = vand.u32 %v431, 4294901760
        %528 = vmatpush1.xpose.msra.mxu0 %v527
        %529 = vmatprep.subr.mxu0 0.0
        %v530 = vand.u32 %v434, 4294901760
        %531 = vmatpush1.xpose.msra.mxu0 %v530
        %532 = vmatprep.subr.mxu0 0.0
        %v533 = vand.u32 %v437, 4294901760
        %534 = vmatpush1.xpose.msra.mxu0 %v533
        %535 = vmatprep.subr.mxu0 0.0
        %v536 = vand.u32 %v440, 4294901760
        %537 = vmatpush1.xpose.msra.mxu0 %v536
        %538 = vmatprep.subr.mxu0 0.0
        %v539 = vand.u32 %v443, 4294901760
        %540 = vmatpush1.xpose.msra.mxu0 %v539
        %541 = vmatprep.subr.mxu0 0.0
        %v542 = vand.u32 %v446, 4294901760
        %543 = vmatpush1.xpose.msra.mxu0 %v542
        %544 = vmatprep.subr.mxu0 0.0
        %v545 = vand.u32 %v449, 4294901760
        %546 = vmatpush1.xpose.msra.mxu0 %v545
        %547 = vmatprep.subr.mxu0 0.0
        %v548 = vand.u32 %v452, 4294901760
        %549 = vmatpush1.xpose.msra.mxu0 %v548
        %550 = vmatprep.subr.mxu0 0.0
        %v551 = vand.u32 %v455, 4294901760
        %552 = vmatpush1.xpose.msra.mxu0 %v551
        %553 = vmatprep.subr.mxu0 0.0
        %v554 = vand.u32 %v458, 4294901760
        %555 = vmatpush1.xpose.msra.mxu0 %v554
        %556 = vmatprep.subr.mxu0 0.0
        %v557 = vand.u32 %v461, 4294901760
        %558 = vmatpush1.xpose.msra.mxu0 %v557
        %559 = vmatprep.subr.mxu0 0.0
        %v560 = vand.u32 %v464, 4294901760
        %561 = vmatpush1.xpose.msra.mxu0 %v560
        %562 = vmatprep.subr.mxu0 0.0
        %v563 = vand.u32 %v467, 4294901760
        %564 = vmatpush1.xpose.msra.mxu0 %v563
        %565 = vmatprep.subr.mxu0 0.0
        %v566 = vand.u32 %v470, 4294901760
        %567 = vmatpush1.xpose.msra.mxu0 %v566
        %568 = vmatprep.subr.mxu0 0.0
        %v569 = vand.u32 %v473, 4294901760
        %570 = vmatpush1.xpose.msra.mxu0 %v569
        %571 = vmatprep.subr.mxu0 0.0
        %v572 = vand.u32 %v476, 4294901760
        %573 = vmatpush1.xpose.msra.mxu0 %v572
        %574 = vmatprep.subr.mxu0 0.0
        %v575 = vand.u32 %v479, 4294901760
        %576 = vmatpush1.xpose.msra.mxu0 %v575
        %577 = vmatprep.subr.mxu0 0.0
        %v578 = vand.u32 %v482, 4294901760
        %579 = vmatpush1.xpose.msra.mxu0 %v578
        %580 = vmatprep.subr.mxu0 0.0
        %v581 = vand.u32 %v485, 4294901760
        %582 = vmatpush1.xpose.msra.mxu0 %v581
        %583 = vmatprep.subr.mxu0 0.0
        %v584 = vand.u32 %v488, 4294901760
        %585 = vmatpush1.xpose.msra.mxu0 %v584
        %586 = vmatprep.subr.mxu0 0.0
        %v587 = vand.u32 %v491, 4294901760
        %588 = vmatpush1.xpose.msra.mxu0 %v587
        %589 = vmatprep.subr.mxu0 0.0
        %v590 = vand.u32 %v494, 4294901760
        %591 = vmatpush1.xpose.msra.mxu0 %v590
        %592 = vmatprep.subr.mxu0 0.0
        %v593 = vand.u32 %v497, 4294901760
        %594 = vmatpush1.xpose.msra.mxu0 %v593
        %595 = vmatprep.subr.mxu0 0.0
        %v596 = vand.u32 %v500, 4294901760
        %597 = vmatpush1.xpose.msra.mxu0 %v596
        %598 = vmatprep.subr.mxu0 0.0
        %v599 = vand.u32 %v503, 4294901760
        %600 = vmatpush1.xpose.msra.mxu0 %v599
        %601 = vmatprep.subr.mxu0 0.0
        %v602 = vand.u32 %v506, 4294901760
        %603 = vmatpush1.xpose.msra.mxu0 %v602
        %604 = vmatprep.subr.mxu0 0.0
        %v605 = vand.u32 %v509, 4294901760
        %606 = vmatpush1.xpose.msra.mxu0 %v605
        %607 = vmatprep.subr.mxu0 0.0
        %v608 = vand.u32 %v512, 4294901760
        %609 = vmatpush1.xpose.msra.mxu0 %v608
        %610 = vmatprep.subr.mxu0 0.0
        %v611 = vand.u32 %v515, 4294901760
        %612 = vmatpush1.xpose.msra.mxu0 %v611
        %613 = vmatprep.subr.mxu0 0.0
        %v614 = vand.u32 %v518, 4294901760
        %615 = vmatpush1.xpose.msra.mxu0 %v614
        %616 = vmatprep.subr.mxu0 0.0
        %v617 = vand.u32 %v521, 4294901760
        %618 = vmatpush1.xpose.msra.mxu0 %v617
        %619 = vmatprep.mubr.f32.mxu0 0.0
        %v620 = vand.u32 %v392, 4294901760
        %v621 = vsub.f32 %v392, %v620
        %v622 = vand.u32 %v621, 4294901760
        %v623 = vsub.f32 %v621, %v622
        %v624 = vand.u32 %v623, 4294901760
        %625 = vmatmul.mubr.f32.gmra.mrb[0].mxu0 %v624
        %v626 = vpop.f32.mrb[0].mxu0
        %v627 = vadd.f32 0.0, %v626
        %v628 = vpop.f32.mrb[0].mxu0
        %v629 = vadd.f32 0.0, %v628
        %630 = vmatprep.mubr.f32.mxu0 0.0
        %v631 = vand.u32 %v395, 4294901760
        %v632 = vsub.f32 %v395, %v631
        %v633 = vand.u32 %v632, 4294901760
        %v634 = vsub.f32 %v632, %v633
        %v635 = vand.u32 %v634, 4294901760
        %636 = vmatmul.mubr.f32.gmra.mrb[0].mxu0 %v635
        %v637 = vpop.f32.mrb[0].mxu0
        %v638 = vadd.f32 0.0, %v637
        %v639 = vpop.f32.mrb[0].mxu0
        %v640 = vadd.f32 0.0, %v639
        %641 = vmatprep.mubr.f32.mxu0 0.0
        %v642 = vand.u32 %v398, 4294901760
        %v643 = vsub.f32 %v398, %v642
        %v644 = vand.u32 %v643, 4294901760
        %v645 = vsub.f32 %v643, %v644
        %v646 = vand.u32 %v645, 4294901760
        %647 = vmatmul.mubr.f32.gmra.mrb[0].mxu0 %v646
        %v648 = vpop.f32.mrb[0].mxu0
        %v649 = vadd.f32 0.0, %v648
        %v650 = vpop.f32.mrb[0].mxu0
        %v651 = vadd.f32 0.0, %v650
        %652 = vmatprep.mubr.f32.mxu0 0.0
        %v653 = vand.u32 %v401, 4294901760
        %v654 = vsub.f32 %v401, %v653
        %v655 = vand.u32 %v654, 4294901760
        %v656 = vsub.f32 %v654, %v655
        %v657 = vand.u32 %v656, 4294901760
        %658 = vmatmul.mubr.f32.gmra.mrb[0].mxu0 %v657
        %v659 = vpop.f32.mrb[0].mxu0
        %v660 = vadd.f32 0.0, %v659
        %v661 = vpop.f32.mrb[0].mxu0
        %v662 = vadd.f32 0.0, %v661
        %663 = vmatprep.mubr.f32.mxu0 0.0
        %v664 = vand.u32 %v404, 4294901760
        %v665 = vsub.f32 %v404, %v664
        %v666 = vand.u32 %v665, 4294901760
        %v667 = vsub.f32 %v665, %v666
        %v668 = vand.u32 %v667, 4294901760
        %669 = vmatmul.mubr.f32.gmra.mrb[0].mxu0 %v668
        %v670 = vpop.f32.mrb[0].mxu0
        %v671 = vadd.f32 0.0, %v670
        %v672 = vpop.f32.mrb[0].mxu0
        %v673 = vadd.f32 0.0, %v672
        %674 = vmatprep.mubr.f32.mxu0 0.0
        %v675 = vand.u32 %v407, 4294901760
        %v676 = vsub.f32 %v407, %v675
        %v677 = vand.u32 %v676, 4294901760
        %v678 = vsub.f32 %v676, %v677
        %v679 = vand.u32 %v678, 4294901760
        %680 = vmatmul.mubr.f32.gmra.mrb[0].mxu0 %v679
        %v681 = vpop.f32.mrb[0].mxu0
        %v682 = vadd.f32 0.0, %v681
        %v683 = vpop.f32.mrb[0].mxu0
        %v684 = vadd.f32 0.0, %v683
        %685 = vmatprep.mubr.f32.mxu0 0.0
        %v686 = vand.u32 %v410, 4294901760
        %v687 = vsub.f32 %v410, %v686
        %v688 = vand.u32 %v687, 4294901760
        %v689 = vsub.f32 %v687, %v688
        %v690 = vand.u32 %v689, 4294901760
        %691 = vmatmul.mubr.f32.gmra.mrb[0].mxu0 %v690
        %v692 = vpop.f32.mrb[0].mxu0
        %v693 = vadd.f32 0.0, %v692
        %v694 = vpop.f32.mrb[0].mxu0
        %v695 = vadd.f32 0.0, %v694
        %696 = vmatprep.mubr.f32.mxu0 0.0
        %v697 = vand.u32 %v413, 4294901760
        %v698 = vsub.f32 %v413, %v697
        %v699 = vand.u32 %v698, 4294901760
        %v700 = vsub.f32 %v698, %v699
        %v701 = vand.u32 %v700, 4294901760
        %702 = vmatmul.mubr.f32.gmra.mrb[0].mxu0 %v701
        %v703 = vpop.f32.mrb[0].mxu0
        %v704 = vadd.f32 0.0, %v703
        %v705 = vpop.f32.mrb[0].mxu0
        %v706 = vadd.f32 0.0, %v705
        %707 = vmatprep.mubr.f32.mxu0 0.0
        %v708 = vand.u32 %v416, 4294901760
        %v709 = vsub.f32 %v416, %v708
        %v710 = vand.u32 %v709, 4294901760
        %v711 = vsub.f32 %v709, %v710
        %v712 = vand.u32 %v711, 4294901760
        %713 = vmatmul.mubr.f32.gmra.mrb[0].mxu0 %v712
        %v714 = vpop.f32.mrb[0].mxu0
        %v715 = vadd.f32 0.0, %v714
        %v716 = vpop.f32.mrb[0].mxu0
        %v717 = vadd.f32 0.0, %v716
        %718 = vmatprep.mubr.f32.mxu0 0.0
        %v719 = vand.u32 %v419, 4294901760
        %v720 = vsub.f32 %v419, %v719
        %v721 = vand.u32 %v720, 4294901760
        %v722 = vsub.f32 %v720, %v721
        %v723 = vand.u32 %v722, 4294901760
        %724 = vmatmul.mubr.f32.gmra.mrb[0].mxu0 %v723
        %v725 = vpop.f32.mrb[0].mxu0
        %v726 = vadd.f32 0.0, %v725
        %v727 = vpop.f32.mrb[0].mxu0
        %v728 = vadd.f32 0.0, %v727
        %729 = vmatprep.mubr.f32.mxu0 0.0
        %v730 = vand.u32 %v422, 4294901760
        %v731 = vsub.f32 %v422, %v730
        %v732 = vand.u32 %v731, 4294901760
        %v733 = vsub.f32 %v731, %v732
        %v734 = vand.u32 %v733, 4294901760
        %735 = vmatmul.mubr.f32.gmra.mrb[0].mxu0 %v734
        %v736 = vpop.f32.mrb[0].mxu0
        %v737 = vadd.f32 0.0, %v736
        %v738 = vpop.f32.mrb[0].mxu0
        %v739 = vadd.f32 0.0, %v738
        %740 = vmatprep.mubr.f32.mxu0 0.0
        %v741 = vand.u32 %v425, 4294901760
        %v742 = vsub.f32 %v425, %v741
        %v743 = vand.u32 %v742, 4294901760
        %v744 = vsub.f32 %v742, %v743
        %v745 = vand.u32 %v744, 4294901760
        %746 = vmatmul.mubr.f32.gmra.mrb[0].mxu0 %v745
        %v747 = vpop.f32.mrb[0].mxu0
        %v748 = vadd.f32 0.0, %v747
        %v749 = vpop.f32.mrb[0].mxu0
        %v750 = vadd.f32 0.0, %v749
        %751 = vdwg.mxu0
        %752 = vmatprep.subr.mxu0 0.0
        %v753 = vand.u32 %v428, 4294901760
        %v754 = vsub.f32 %v428, %v753
        %v755 = vand.u32 %v754, 4294901760
        %v756 = vsub.f32 %v754, %v755
        %v757 = vand.u32 %v756, 4294901760
        %758 = vmatpush1.xpose.msra.mxu0 %v757
        %759 = vmatprep.subr.mxu0 0.0
        %v760 = vand.u32 %v431, 4294901760
        %v761 = vsub.f32 %v431, %v760
        %v762 = vand.u32 %v761, 4294901760
        %v763 = vsub.f32 %v761, %v762
        %v764 = vand.u32 %v763, 4294901760
        %765 = vmatpush1.xpose.msra.mxu0 %v764
        %766 = vmatprep.subr.mxu0 0.0
        %v767 = vand.u32 %v434, 4294901760
        %v768 = vsub.f32 %v434, %v767
        %v769 = vand.u32 %v768, 4294901760
        %v770 = vsub.f32 %v768, %v769
        %v771 = vand.u32 %v770, 4294901760
        %772 = vmatpush1.xpose.msra.mxu0 %v771
        %773 = vmatprep.subr.mxu0 0.0
        %v774 = vand.u32 %v437, 4294901760
        %v775 = vsub.f32 %v437, %v774
        %v776 = vand.u32 %v775, 4294901760
        %v777 = vsub.f32 %v775, %v776
        %v778 = vand.u32 %v777, 4294901760
        %779 = vmatpush1.xpose.msra.mxu0 %v778
        %780 = vmatprep.subr.mxu0 0.0
        %v781 = vand.u32 %v440, 4294901760
        %v782 = vsub.f32 %v440, %v781
        %v783 = vand.u32 %v782, 4294901760
        %v784 = vsub.f32 %v782, %v783
        %v785 = vand.u32 %v784, 4294901760
        %786 = vmatpush1.xpose.msra.mxu0 %v785
        %787 = vmatprep.subr.mxu0 0.0
        %v788 = vand.u32 %v443, 4294901760
        %v789 = vsub.f32 %v443, %v788
        %v790 = vand.u32 %v789, 4294901760
        %v791 = vsub.f32 %v789, %v790
        %v792 = vand.u32 %v791, 4294901760
        %793 = vmatpush1.xpose.msra.mxu0 %v792
        %794 = vmatprep.subr.mxu0 0.0
        %v795 = vand.u32 %v446, 4294901760
        %v796 = vsub.f32 %v446, %v795
        %v797 = vand.u32 %v796, 4294901760
        %v798 = vsub.f32 %v796, %v797
        %v799 = vand.u32 %v798, 4294901760
        %800 = vmatpush1.xpose.msra.mxu0 %v799
        %801 = vmatprep.subr.mxu0 0.0
        %v802 = vand.u32 %v449, 4294901760
        %v803 = vsub.f32 %v449, %v802
        %v804 = vand.u32 %v803, 4294901760
        %v805 = vsub.f32 %v803, %v804
        %v806 = vand.u32 %v805, 4294901760
        %807 = vmatpush1.xpose.msra.mxu0 %v806
        %808 = vmatprep.subr.mxu0 0.0
        %v809 = vand.u32 %v452, 4294901760
        %v810 = vsub.f32 %v452, %v809
        %v811 = vand.u32 %v810, 4294901760
        %v812 = vsub.f32 %v810, %v811
        %v813 = vand.u32 %v812, 4294901760
        %814 = vmatpush1.xpose.msra.mxu0 %v813
        %815 = vmatprep.subr.mxu0 0.0
        %v816 = vand.u32 %v455, 4294901760
        %v817 = vsub.f32 %v455, %v816
        %v818 = vand.u32 %v817, 4294901760
        %v819 = vsub.f32 %v817, %v818
        %v820 = vand.u32 %v819, 4294901760
        %821 = vmatpush1.xpose.msra.mxu0 %v820
        %822 = vmatprep.subr.mxu0 0.0
        %v823 = vand.u32 %v458, 4294901760
        %v824 = vsub.f32 %v458, %v823
        %v825 = vand.u32 %v824, 4294901760
        %v826 = vsub.f32 %v824, %v825
        %v827 = vand.u32 %v826, 4294901760
        %828 = vmatpush1.xpose.msra.mxu0 %v827
        %829 = vmatprep.subr.mxu0 0.0
        %v830 = vand.u32 %v461, 4294901760
        %v831 = vsub.f32 %v461, %v830
        %v832 = vand.u32 %v831, 4294901760
        %v833 = vsub.f32 %v831, %v832
        %v834 = vand.u32 %v833, 4294901760
        %835 = vmatpush1.xpose.msra.mxu0 %v834
        %836 = vmatprep.subr.mxu0 0.0
        %v837 = vand.u32 %v464, 4294901760
        %v838 = vsub.f32 %v464, %v837
        %v839 = vand.u32 %v838, 4294901760
        %v840 = vsub.f32 %v838, %v839
        %v841 = vand.u32 %v840, 4294901760
        %842 = vmatpush1.xpose.msra.mxu0 %v841
        %843 = vmatprep.subr.mxu0 0.0
        %v844 = vand.u32 %v467, 4294901760
        %v845 = vsub.f32 %v467, %v844
        %v846 = vand.u32 %v845, 4294901760
        %v847 = vsub.f32 %v845, %v846
        %v848 = vand.u32 %v847, 4294901760
        %849 = vmatpush1.xpose.msra.mxu0 %v848
        %850 = vmatprep.subr.mxu0 0.0
        %v851 = vand.u32 %v470, 4294901760
        %v852 = vsub.f32 %v470, %v851
        %v853 = vand.u32 %v852, 4294901760
        %v854 = vsub.f32 %v852, %v853
        %v855 = vand.u32 %v854, 4294901760
        %856 = vmatpush1.xpose.msra.mxu0 %v855
        %857 = vmatprep.subr.mxu0 0.0
        %v858 = vand.u32 %v473, 4294901760
        %v859 = vsub.f32 %v473, %v858
        %v860 = vand.u32 %v859, 4294901760
        %v861 = vsub.f32 %v859, %v860
        %v862 = vand.u32 %v861, 4294901760
        %863 = vmatpush1.xpose.msra.mxu0 %v862
        %864 = vmatprep.subr.mxu0 0.0
        %v865 = vand.u32 %v476, 4294901760
        %v866 = vsub.f32 %v476, %v865
        %v867 = vand.u32 %v866, 4294901760
        %v868 = vsub.f32 %v866, %v867
        %v869 = vand.u32 %v868, 4294901760
        %870 = vmatpush1.xpose.msra.mxu0 %v869
        %871 = vmatprep.subr.mxu0 0.0
        %v872 = vand.u32 %v479, 4294901760
        %v873 = vsub.f32 %v479, %v872
        %v874 = vand.u32 %v873, 4294901760
        %v875 = vsub.f32 %v873, %v874
        %v876 = vand.u32 %v875, 4294901760
        %877 = vmatpush1.xpose.msra.mxu0 %v876
        %878 = vmatprep.subr.mxu0 0.0
        %v879 = vand.u32 %v482, 4294901760
        %v880 = vsub.f32 %v482, %v879
        %v881 = vand.u32 %v880, 4294901760
        %v882 = vsub.f32 %v880, %v881
        %v883 = vand.u32 %v882, 4294901760
        %884 = vmatpush1.xpose.msra.mxu0 %v883
        %885 = vmatprep.subr.mxu0 0.0
        %v886 = vand.u32 %v485, 4294901760
        %v887 = vsub.f32 %v485, %v886
        %v888 = vand.u32 %v887, 4294901760
        %v889 = vsub.f32 %v887, %v888
        %v890 = vand.u32 %v889, 4294901760
        %891 = vmatpush1.xpose.msra.mxu0 %v890
        %892 = vmatprep.subr.mxu0 0.0
        %v893 = vand.u32 %v488, 4294901760
        %v894 = vsub.f32 %v488, %v893
        %v895 = vand.u32 %v894, 4294901760
        %v896 = vsub.f32 %v894, %v895
        %v897 = vand.u32 %v896, 4294901760
        %898 = vmatpush1.xpose.msra.mxu0 %v897
        %899 = vmatprep.subr.mxu0 0.0
        %v900 = vand.u32 %v491, 4294901760
        %v901 = vsub.f32 %v491, %v900
        %v902 = vand.u32 %v901, 4294901760
        %v903 = vsub.f32 %v901, %v902
        %v904 = vand.u32 %v903, 4294901760
        %905 = vmatpush1.xpose.msra.mxu0 %v904
        %906 = vmatprep.subr.mxu0 0.0
        %v907 = vand.u32 %v494, 4294901760
        %v908 = vsub.f32 %v494, %v907
        %v909 = vand.u32 %v908, 4294901760
        %v910 = vsub.f32 %v908, %v909
        %v911 = vand.u32 %v910, 4294901760
        %912 = vmatpush1.xpose.msra.mxu0 %v911
        %913 = vmatprep.subr.mxu0 0.0
        %v914 = vand.u32 %v497, 4294901760
        %v915 = vsub.f32 %v497, %v914
        %v916 = vand.u32 %v915, 4294901760
        %v917 = vsub.f32 %v915, %v916
        %v918 = vand.u32 %v917, 4294901760
        %919 = vmatpush1.xpose.msra.mxu0 %v918
        %920 = vmatprep.subr.mxu0 0.0
        %v921 = vand.u32 %v500, 4294901760
        %v922 = vsub.f32 %v500, %v921
        %v923 = vand.u32 %v922, 4294901760
        %v924 = vsub.f32 %v922, %v923
        %v925 = vand.u32 %v924, 4294901760
        %926 = vmatpush1.xpose.msra.mxu0 %v925
        %927 = vmatprep.subr.mxu0 0.0
        %v928 = vand.u32 %v503, 4294901760
        %v929 = vsub.f32 %v503, %v928
        %v930 = vand.u32 %v929, 4294901760
        %v931 = vsub.f32 %v929, %v930
        %v932 = vand.u32 %v931, 4294901760
        %933 = vmatpush1.xpose.msra.mxu0 %v932
        %934 = vmatprep.subr.mxu0 0.0
        %v935 = vand.u32 %v506, 4294901760
        %v936 = vsub.f32 %v506, %v935
        %v937 = vand.u32 %v936, 4294901760
        %v938 = vsub.f32 %v936, %v937
        %v939 = vand.u32 %v938, 4294901760
        %940 = vmatpush1.xpose.msra.mxu0 %v939
        %941 = vmatprep.subr.mxu0 0.0
        %v942 = vand.u32 %v509, 4294901760
        %v943 = vsub.f32 %v509, %v942
        %v944 = vand.u32 %v943, 4294901760
        %v945 = vsub.f32 %v943, %v944
        %v946 = vand.u32 %v945, 4294901760
        %947 = vmatpush1.xpose.msra.mxu0 %v946
        %948 = vmatprep.subr.mxu0 0.0
        %v949 = vand.u32 %v512, 4294901760
        %v950 = vsub.f32 %v512, %v949
        %v951 = vand.u32 %v950, 4294901760
        %v952 = vsub.f32 %v950, %v951
        %v953 = vand.u32 %v952, 4294901760
        %954 = vmatpush1.xpose.msra.mxu0 %v953
        %955 = vmatprep.subr.mxu0 0.0
        %v956 = vand.u32 %v515, 4294901760
        %v957 = vsub.f32 %v515, %v956
        %v958 = vand.u32 %v957, 4294901760
        %v959 = vsub.f32 %v957, %v958
        %v960 = vand.u32 %v959, 4294901760
        %961 = vmatpush1.xpose.msra.mxu0 %v960
        %962 = vmatprep.subr.mxu0 0.0
        %v963 = vand.u32 %v518, 4294901760
        %v964 = vsub.f32 %v518, %v963
        %v965 = vand.u32 %v964, 4294901760
        %v966 = vsub.f32 %v964, %v965
        %v967 = vand.u32 %v966, 4294901760
        %968 = vmatpush1.xpose.msra.mxu0 %v967
        %969 = vmatprep.subr.mxu0 0.0
        %v970 = vand.u32 %v521, 4294901760
        %v971 = vsub.f32 %v521, %v970
        %v972 = vand.u32 %v971, 4294901760
        %v973 = vsub.f32 %v971, %v972
        %v974 = vand.u32 %v973, 4294901760
        %975 = vmatpush1.xpose.msra.mxu0 %v974
        %976 = vmatprep.mubr.f32.mxu0 0.0
        %v977 = vand.u32 %v392, 4294901760
        %978 = vmatmul.mubr.f32.gmra.mrb[0].mxu0 %v977
        %v979 = vpop.f32.mrb[0].mxu0
        %v980 = vadd.f32 %v627, %v979
        %v981 = vpop.f32.mrb[0].mxu0
        %v982 = vadd.f32 %v629, %v981
        %983 = vmatprep.mubr.f32.mxu0 0.0
        %v984 = vand.u32 %v395, 4294901760
        %985 = vmatmul.mubr.f32.gmra.mrb[0].mxu0 %v984
        %v986 = vpop.f32.mrb[0].mxu0
        %v987 = vadd.f32 %v638, %v986
        %v988 = vpop.f32.mrb[0].mxu0
        %v989 = vadd.f32 %v640, %v988
        %990 = vmatprep.mubr.f32.mxu0 0.0
        %v991 = vand.u32 %v398, 4294901760
        %992 = vmatmul.mubr.f32.gmra.mrb[0].mxu0 %v991
        %v993 = vpop.f32.mrb[0].mxu0
        %v994 = vadd.f32 %v649, %v993
        %v995 = vpop.f32.mrb[0].mxu0
        %v996 = vadd.f32 %v651, %v995
        %997 = vmatprep.mubr.f32.mxu0 0.0
        %v998 = vand.u32 %v401, 4294901760
        %999 = vmatmul.mubr.f32.gmra.mrb[0].mxu0 %v998
        %v1000 = vpop.f32.mrb[0].mxu0
        %v1001 = vadd.f32 %v660, %v1000
        %v1002 = vpop.f32.mrb[0].mxu0
        %v1003 = vadd.f32 %v662, %v1002
        %1004 = vmatprep.mubr.f32.mxu0 0.0
        %v1005 = vand.u32 %v404, 4294901760
        %1006 = vmatmul.mubr.f32.gmra.mrb[0].mxu0 %v1005
        %v1007 = vpop.f32.mrb[0].mxu0
        %v1008 = vadd.f32 %v671, %v1007
        %v1009 = vpop.f32.mrb[0].mxu0
        %v1010 = vadd.f32 %v673, %v1009
        %1011 = vmatprep.mubr.f32.mxu0 0.0
        %v1012 = vand.u32 %v407, 4294901760
        %1013 = vmatmul.mubr.f32.gmra.mrb[0].mxu0 %v1012
        %v1014 = vpop.f32.mrb[0].mxu0
        %v1015 = vadd.f32 %v682, %v1014
        %v1016 = vpop.f32.mrb[0].mxu0
        %v1017 = vadd.f32 %v684, %v1016
        %1018 = vmatprep.mubr.f32.mxu0 0.0
        %v1019 = vand.u32 %v410, 4294901760
        %1020 = vmatmul.mubr.f32.gmra.mrb[0].mxu0 %v1019
        %v1021 = vpop.f32.mrb[0].mxu0
        %v1022 = vadd.f32 %v693, %v1021
        %v1023 = vpop.f32.mrb[0].mxu0
        %v1024 = vadd.f32 %v695, %v1023
        %1025 = vmatprep.mubr.f32.mxu0 0.0
        %v1026 = vand.u32 %v413, 4294901760
        %1027 = vmatmul.mubr.f32.gmra.mrb[0].mxu0 %v1026
        %v1028 = vpop.f32.mrb[0].mxu0
        %v1029 = vadd.f32 %v704, %v1028
        %v1030 = vpop.f32.mrb[0].mxu0
        %v1031 = vadd.f32 %v706, %v1030
        %1032 = vmatprep.mubr.f32.mxu0 0.0
        %v1033 = vand.u32 %v416, 4294901760
        %1034 = vmatmul.mubr.f32.gmra.mrb[0].mxu0 %v1033
        %v1035 = vpop.f32.mrb[0].mxu0
        %v1036 = vadd.f32 %v715, %v1035
        %v1037 = vpop.f32.mrb[0].mxu0
        %v1038 = vadd.f32 %v717, %v1037
        %1039 = vmatprep.mubr.f32.mxu0 0.0
        %v1040 = vand.u32 %v419, 4294901760
        %1041 = vmatmul.mubr.f32.gmra.mrb[0].mxu0 %v1040
        %v1042 = vpop.f32.mrb[0].mxu0
        %v1043 = vadd.f32 %v726, %v1042
        %v1044 = vpop.f32.mrb[0].mxu0
        %v1045 = vadd.f32 %v728, %v1044
        %1046 = vmatprep.mubr.f32.mxu0 0.0
        %v1047 = vand.u32 %v422, 4294901760
        %1048 = vmatmul.mubr.f32.gmra.mrb[0].mxu0 %v1047
        %v1049 = vpop.f32.mrb[0].mxu0
        %v1050 = vadd.f32 %v737, %v1049
        %v1051 = vpop.f32.mrb[0].mxu0
        %v1052 = vadd.f32 %v739, %v1051
        %1053 = vmatprep.mubr.f32.mxu0 0.0
        %v1054 = vand.u32 %v425, 4294901760
        %1055 = vmatmul.mubr.f32.gmra.mrb[0].mxu0 %v1054
        %v1056 = vpop.f32.mrb[0].mxu0
        %v1057 = vadd.f32 %v748, %v1056
        %v1058 = vpop.f32.mrb[0].mxu0
        %v1059 = vadd.f32 %v750, %v1058
        %1060 = vdwg.mxu0
        %1061 = vmatprep.subr.mxu0 0.0
        %v1062 = vand.u32 %v428, 4294901760
        %v1063 = vsub.f32 %v428, %v1062
        %1064 = vmatpush1.xpose.msra.mxu0 %v1063
        %1065 = vmatprep.subr.mxu0 0.0
        %v1066 = vand.u32 %v431, 4294901760
        %v1067 = vsub.f32 %v431, %v1066
        %1068 = vmatpush1.xpose.msra.mxu0 %v1067
        %1069 = vmatprep.subr.mxu0 0.0
        %v1070 = vand.u32 %v434, 4294901760
        %v1071 = vsub.f32 %v434, %v1070
        %1072 = vmatpush1.xpose.msra.mxu0 %v1071
        %1073 = vmatprep.subr.mxu0 0.0
        %v1074 = vand.u32 %v437, 4294901760
        %v1075 = vsub.f32 %v437, %v1074
        %1076 = vmatpush1.xpose.msra.mxu0 %v1075
        %1077 = vmatprep.subr.mxu0 0.0
        %v1078 = vand.u32 %v440, 4294901760
        %v1079 = vsub.f32 %v440, %v1078
        %1080 = vmatpush1.xpose.msra.mxu0 %v1079
        %1081 = vmatprep.subr.mxu0 0.0
        %v1082 = vand.u32 %v443, 4294901760
        %v1083 = vsub.f32 %v443, %v1082
        %1084 = vmatpush1.xpose.msra.mxu0 %v1083
        %1085 = vmatprep.subr.mxu0 0.0
        %v1086 = vand.u32 %v446, 4294901760
        %v1087 = vsub.f32 %v446, %v1086
        %1088 = vmatpush1.xpose.msra.mxu0 %v1087
        %1089 = vmatprep.subr.mxu0 0.0
        %v1090 = vand.u32 %v449, 4294901760
        %v1091 = vsub.f32 %v449, %v1090
        %1092 = vmatpush1.xpose.msra.mxu0 %v1091
        %1093 = vmatprep.subr.mxu0 0.0
        %v1094 = vand.u32 %v452, 4294901760
        %v1095 = vsub.f32 %v452, %v1094
        %1096 = vmatpush1.xpose.msra.mxu0 %v1095
        %1097 = vmatprep.subr.mxu0 0.0
        %v1098 = vand.u32 %v455, 4294901760
        %v1099 = vsub.f32 %v455, %v1098
        %1100 = vmatpush1.xpose.msra.mxu0 %v1099
        %1101 = vmatprep.subr.mxu0 0.0
        %v1102 = vand.u32 %v458, 4294901760
        %v1103 = vsub.f32 %v458, %v1102
        %1104 = vmatpush1.xpose.msra.mxu0 %v1103
        %1105 = vmatprep.subr.mxu0 0.0
        %v1106 = vand.u32 %v461, 4294901760
        %v1107 = vsub.f32 %v461, %v1106
        %1108 = vmatpush1.xpose.msra.mxu0 %v1107
        %1109 = vmatprep.subr.mxu0 0.0
        %v1110 = vand.u32 %v464, 4294901760
        %v1111 = vsub.f32 %v464, %v1110
        %1112 = vmatpush1.xpose.msra.mxu0 %v1111
        %1113 = vmatprep.subr.mxu0 0.0
        %v1114 = vand.u32 %v467, 4294901760
        %v1115 = vsub.f32 %v467, %v1114
        %1116 = vmatpush1.xpose.msra.mxu0 %v1115
        %1117 = vmatprep.subr.mxu0 0.0
        %v1118 = vand.u32 %v470, 4294901760
        %v1119 = vsub.f32 %v470, %v1118
        %1120 = vmatpush1.xpose.msra.mxu0 %v1119
        %1121 = vmatprep.subr.mxu0 0.0
        %v1122 = vand.u32 %v473, 4294901760
        %v1123 = vsub.f32 %v473, %v1122
        %1124 = vmatpush1.xpose.msra.mxu0 %v1123
        %1125 = vmatprep.subr.mxu0 0.0
        %v1126 = vand.u32 %v476, 4294901760
        %v1127 = vsub.f32 %v476, %v1126
        %1128 = vmatpush1.xpose.msra.mxu0 %v1127
        %1129 = vmatprep.subr.mxu0 0.0
        %v1130 = vand.u32 %v479, 4294901760
        %v1131 = vsub.f32 %v479, %v1130
        %1132 = vmatpush1.xpose.msra.mxu0 %v1131
        %1133 = vmatprep.subr.mxu0 0.0
        %v1134 = vand.u32 %v482, 4294901760
        %v1135 = vsub.f32 %v482, %v1134
        %1136 = vmatpush1.xpose.msra.mxu0 %v1135
        %1137 = vmatprep.subr.mxu0 0.0
        %v1138 = vand.u32 %v485, 4294901760
        %v1139 = vsub.f32 %v485, %v1138
        %1140 = vmatpush1.xpose.msra.mxu0 %v1139
        %1141 = vmatprep.subr.mxu0 0.0
        %v1142 = vand.u32 %v488, 4294901760
        %v1143 = vsub.f32 %v488, %v1142
        %1144 = vmatpush1.xpose.msra.mxu0 %v1143
        %1145 = vmatprep.subr.mxu0 0.0
        %v1146 = vand.u32 %v491, 4294901760
        %v1147 = vsub.f32 %v491, %v1146
        %1148 = vmatpush1.xpose.msra.mxu0 %v1147
        %1149 = vmatprep.subr.mxu0 0.0
        %v1150 = vand.u32 %v494, 4294901760
        %v1151 = vsub.f32 %v494, %v1150
        %1152 = vmatpush1.xpose.msra.mxu0 %v1151
        %1153 = vmatprep.subr.mxu0 0.0
        %v1154 = vand.u32 %v497, 4294901760
        %v1155 = vsub.f32 %v497, %v1154
        %1156 = vmatpush1.xpose.msra.mxu0 %v1155
        %1157 = vmatprep.subr.mxu0 0.0
        %v1158 = vand.u32 %v500, 4294901760
        %v1159 = vsub.f32 %v500, %v1158
        %1160 = vmatpush1.xpose.msra.mxu0 %v1159
        %1161 = vmatprep.subr.mxu0 0.0
        %v1162 = vand.u32 %v503, 4294901760
        %v1163 = vsub.f32 %v503, %v1162
        %1164 = vmatpush1.xpose.msra.mxu0 %v1163
        %1165 = vmatprep.subr.mxu0 0.0
        %v1166 = vand.u32 %v506, 4294901760
        %v1167 = vsub.f32 %v506, %v1166
        %1168 = vmatpush1.xpose.msra.mxu0 %v1167
        %1169 = vmatprep.subr.mxu0 0.0
        %v1170 = vand.u32 %v509, 4294901760
        %v1171 = vsub.f32 %v509, %v1170
        %1172 = vmatpush1.xpose.msra.mxu0 %v1171
        %1173 = vmatprep.subr.mxu0 0.0
        %v1174 = vand.u32 %v512, 4294901760
        %v1175 = vsub.f32 %v512, %v1174
        %1176 = vmatpush1.xpose.msra.mxu0 %v1175
        %1177 = vmatprep.subr.mxu0 0.0
        %v1178 = vand.u32 %v515, 4294901760
        %v1179 = vsub.f32 %v515, %v1178
        %1180 = vmatpush1.xpose.msra.mxu0 %v1179
        %1181 = vmatprep.subr.mxu0 0.0
        %v1182 = vand.u32 %v518, 4294901760
        %v1183 = vsub.f32 %v518, %v1182
        %1184 = vmatpush1.xpose.msra.mxu0 %v1183
        %1185 = vmatprep.subr.mxu0 0.0
        %v1186 = vand.u32 %v521, 4294901760
        %v1187 = vsub.f32 %v521, %v1186
        %1188 = vmatpush1.xpose.msra.mxu0 %v1187
        %1189 = vmatprep.mubr.f32.mxu0 0.0
        %v1190 = vand.u32 %v392, 4294901760
        %v1191 = vsub.f32 %v392, %v1190
        %1192 = vmatmul.mubr.f32.gmra.mrb[0].mxu0 %v1191
        %v1193 = vpop.f32.mrb[0].mxu0
        %v1194 = vadd.f32 %v980, %v1193
        %v1195 = vpop.f32.mrb[0].mxu0
        %v1196 = vadd.f32 %v982, %v1195
        %1197 = vmatprep.mubr.f32.mxu0 0.0
        %v1198 = vand.u32 %v395, 4294901760
        %v1199 = vsub.f32 %v395, %v1198
        %1200 = vmatmul.mubr.f32.gmra.mrb[0].mxu0 %v1199
        %v1201 = vpop.f32.mrb[0].mxu0
        %v1202 = vadd.f32 %v987, %v1201
        %v1203 = vpop.f32.mrb[0].mxu0
        %v1204 = vadd.f32 %v989, %v1203
        %1205 = vmatprep.mubr.f32.mxu0 0.0
        %v1206 = vand.u32 %v398, 4294901760
        %v1207 = vsub.f32 %v398, %v1206
        %1208 = vmatmul.mubr.f32.gmra.mrb[0].mxu0 %v1207
        %v1209 = vpop.f32.mrb[0].mxu0
        %v1210 = vadd.f32 %v994, %v1209
        %v1211 = vpop.f32.mrb[0].mxu0
        %v1212 = vadd.f32 %v996, %v1211
        %1213 = vmatprep.mubr.f32.mxu0 0.0
        %v1214 = vand.u32 %v401, 4294901760
        %v1215 = vsub.f32 %v401, %v1214
        %1216 = vmatmul.mubr.f32.gmra.mrb[0].mxu0 %v1215
        %v1217 = vpop.f32.mrb[0].mxu0
        %v1218 = vadd.f32 %v1001, %v1217
        %v1219 = vpop.f32.mrb[0].mxu0
        %v1220 = vadd.f32 %v1003, %v1219
        %1221 = vmatprep.mubr.f32.mxu0 0.0
        %v1222 = vand.u32 %v404, 4294901760
        %v1223 = vsub.f32 %v404, %v1222
        %1224 = vmatmul.mubr.f32.gmra.mrb[0].mxu0 %v1223
        %v1225 = vpop.f32.mrb[0].mxu0
        %v1226 = vadd.f32 %v1008, %v1225
        %v1227 = vpop.f32.mrb[0].mxu0
        %v1228 = vadd.f32 %v1010, %v1227
        %1229 = vmatprep.mubr.f32.mxu0 0.0
        %v1230 = vand.u32 %v407, 4294901760
        %v1231 = vsub.f32 %v407, %v1230
        %1232 = vmatmul.mubr.f32.gmra.mrb[0].mxu0 %v1231
        %v1233 = vpop.f32.mrb[0].mxu0
        %v1234 = vadd.f32 %v1015, %v1233
        %v1235 = vpop.f32.mrb[0].mxu0
        %v1236 = vadd.f32 %v1017, %v1235
        %1237 = vmatprep.mubr.f32.mxu0 0.0
        %v1238 = vand.u32 %v410, 4294901760
        %v1239 = vsub.f32 %v410, %v1238
        %1240 = vmatmul.mubr.f32.gmra.mrb[0].mxu0 %v1239
        %v1241 = vpop.f32.mrb[0].mxu0
        %v1242 = vadd.f32 %v1022, %v1241
        %v1243 = vpop.f32.mrb[0].mxu0
        %v1244 = vadd.f32 %v1024, %v1243
        %1245 = vmatprep.mubr.f32.mxu0 0.0
        %v1246 = vand.u32 %v413, 4294901760
        %v1247 = vsub.f32 %v413, %v1246
        %1248 = vmatmul.mubr.f32.gmra.mrb[0].mxu0 %v1247
        %v1249 = vpop.f32.mrb[0].mxu0
        %v1250 = vadd.f32 %v1029, %v1249
        %v1251 = vpop.f32.mrb[0].mxu0
        %v1252 = vadd.f32 %v1031, %v1251
        %1253 = vmatprep.mubr.f32.mxu0 0.0
        %v1254 = vand.u32 %v416, 4294901760
        %v1255 = vsub.f32 %v416, %v1254
        %1256 = vmatmul.mubr.f32.gmra.mrb[0].mxu0 %v1255
        %v1257 = vpop.f32.mrb[0].mxu0
        %v1258 = vadd.f32 %v1036, %v1257
        %v1259 = vpop.f32.mrb[0].mxu0
        %v1260 = vadd.f32 %v1038, %v1259
        %1261 = vmatprep.mubr.f32.mxu0 0.0
        %v1262 = vand.u32 %v419, 4294901760
        %v1263 = vsub.f32 %v419, %v1262
        %1264 = vmatmul.mubr.f32.gmra.mrb[0].mxu0 %v1263
        %v1265 = vpop.f32.mrb[0].mxu0
        %v1266 = vadd.f32 %v1043, %v1265
        %v1267 = vpop.f32.mrb[0].mxu0
        %v1268 = vadd.f32 %v1045, %v1267
        %1269 = vmatprep.mubr.f32.mxu0 0.0
        %v1270 = vand.u32 %v422, 4294901760
        %v1271 = vsub.f32 %v422, %v1270
        %1272 = vmatmul.mubr.f32.gmra.mrb[0].mxu0 %v1271
        %v1273 = vpop.f32.mrb[0].mxu0
        %v1274 = vadd.f32 %v1050, %v1273
        %v1275 = vpop.f32.mrb[0].mxu0
        %v1276 = vadd.f32 %v1052, %v1275
        %1277 = vmatprep.mubr.f32.mxu0 0.0
        %v1278 = vand.u32 %v425, 4294901760
        %v1279 = vsub.f32 %v425, %v1278
        %1280 = vmatmul.mubr.f32.gmra.mrb[0].mxu0 %v1279
        %v1281 = vpop.f32.mrb[0].mxu0
        %v1282 = vadd.f32 %v1057, %v1281
        %v1283 = vpop.f32.mrb[0].mxu0
        %v1284 = vadd.f32 %v1059, %v1283
        %1285 = vdwg.mxu0
        %1286 = vmatprep.subr.mxu0 0.0
        %v1287 = vand.u32 %v428, 4294901760
        %1288 = vmatpush1.xpose.msra.mxu0 %v1287
        %1289 = vmatprep.subr.mxu0 0.0
        %v1290 = vand.u32 %v431, 4294901760
        %1291 = vmatpush1.xpose.msra.mxu0 %v1290
        %1292 = vmatprep.subr.mxu0 0.0
        %v1293 = vand.u32 %v434, 4294901760
        %1294 = vmatpush1.xpose.msra.mxu0 %v1293
        %1295 = vmatprep.subr.mxu0 0.0
        %v1296 = vand.u32 %v437, 4294901760
        %1297 = vmatpush1.xpose.msra.mxu0 %v1296
        %1298 = vmatprep.subr.mxu0 0.0
        %v1299 = vand.u32 %v440, 4294901760
        %1300 = vmatpush1.xpose.msra.mxu0 %v1299
        %1301 = vmatprep.subr.mxu0 0.0
        %v1302 = vand.u32 %v443, 4294901760
        %1303 = vmatpush1.xpose.msra.mxu0 %v1302
        %1304 = vmatprep.subr.mxu0 0.0
        %v1305 = vand.u32 %v446, 4294901760
        %1306 = vmatpush1.xpose.msra.mxu0 %v1305
        %1307 = vmatprep.subr.mxu0 0.0
        %v1308 = vand.u32 %v449, 4294901760
        %1309 = vmatpush1.xpose.msra.mxu0 %v1308
        %1310 = vmatprep.subr.mxu0 0.0
        %v1311 = vand.u32 %v452, 4294901760
        %1312 = vmatpush1.xpose.msra.mxu0 %v1311
        %1313 = vmatprep.subr.mxu0 0.0
        %v1314 = vand.u32 %v455, 4294901760
        %1315 = vmatpush1.xpose.msra.mxu0 %v1314
        %1316 = vmatprep.subr.mxu0 0.0
        %v1317 = vand.u32 %v458, 4294901760
        %1318 = vmatpush1.xpose.msra.mxu0 %v1317
        %1319 = vmatprep.subr.mxu0 0.0
        %v1320 = vand.u32 %v461, 4294901760
        %1321 = vmatpush1.xpose.msra.mxu0 %v1320
        %1322 = vmatprep.subr.mxu0 0.0
        %v1323 = vand.u32 %v464, 4294901760
        %1324 = vmatpush1.xpose.msra.mxu0 %v1323
        %1325 = vmatprep.subr.mxu0 0.0
        %v1326 = vand.u32 %v467, 4294901760
        %1327 = vmatpush1.xpose.msra.mxu0 %v1326
        %1328 = vmatprep.subr.mxu0 0.0
        %v1329 = vand.u32 %v470, 4294901760
        %1330 = vmatpush1.xpose.msra.mxu0 %v1329
        %1331 = vmatprep.subr.mxu0 0.0
        %v1332 = vand.u32 %v473, 4294901760
        %1333 = vmatpush1.xpose.msra.mxu0 %v1332
        %1334 = vmatprep.subr.mxu0 0.0
        %v1335 = vand.u32 %v476, 4294901760
        %1336 = vmatpush1.xpose.msra.mxu0 %v1335
        %1337 = vmatprep.subr.mxu0 0.0
        %v1338 = vand.u32 %v479, 4294901760
        %1339 = vmatpush1.xpose.msra.mxu0 %v1338
        %1340 = vmatprep.subr.mxu0 0.0
        %v1341 = vand.u32 %v482, 4294901760
        %1342 = vmatpush1.xpose.msra.mxu0 %v1341
        %1343 = vmatprep.subr.mxu0 0.0
        %v1344 = vand.u32 %v485, 4294901760
        %1345 = vmatpush1.xpose.msra.mxu0 %v1344
        %1346 = vmatprep.subr.mxu0 0.0
        %v1347 = vand.u32 %v488, 4294901760
        %1348 = vmatpush1.xpose.msra.mxu0 %v1347
        %1349 = vmatprep.subr.mxu0 0.0
        %v1350 = vand.u32 %v491, 4294901760
        %1351 = vmatpush1.xpose.msra.mxu0 %v1350
        %1352 = vmatprep.subr.mxu0 0.0
        %v1353 = vand.u32 %v494, 4294901760
        %1354 = vmatpush1.xpose.msra.mxu0 %v1353
        %1355 = vmatprep.subr.mxu0 0.0
        %v1356 = vand.u32 %v497, 4294901760
        %1357 = vmatpush1.xpose.msra.mxu0 %v1356
        %1358 = vmatprep.subr.mxu0 0.0
        %v1359 = vand.u32 %v500, 4294901760
        %1360 = vmatpush1.xpose.msra.mxu0 %v1359
        %1361 = vmatprep.subr.mxu0 0.0
        %v1362 = vand.u32 %v503, 4294901760
        %1363 = vmatpush1.xpose.msra.mxu0 %v1362
        %1364 = vmatprep.subr.mxu0 0.0
        %v1365 = vand.u32 %v506, 4294901760
        %1366 = vmatpush1.xpose.msra.mxu0 %v1365
        %1367 = vmatprep.subr.mxu0 0.0
        %v1368 = vand.u32 %v509, 4294901760
        %1369 = vmatpush1.xpose.msra.mxu0 %v1368
        %1370 = vmatprep.subr.mxu0 0.0
        %v1371 = vand.u32 %v512, 4294901760
        %1372 = vmatpush1.xpose.msra.mxu0 %v1371
        %1373 = vmatprep.subr.mxu0 0.0
        %v1374 = vand.u32 %v515, 4294901760
        %1375 = vmatpush1.xpose.msra.mxu0 %v1374
        %1376 = vmatprep.subr.mxu0 0.0
        %v1377 = vand.u32 %v518, 4294901760
        %1378 = vmatpush1.xpose.msra.mxu0 %v1377
        %1379 = vmatprep.subr.mxu0 0.0
        %v1380 = vand.u32 %v521, 4294901760
        %1381 = vmatpush1.xpose.msra.mxu0 %v1380
        %1382 = vmatprep.mubr.f32.mxu0 0.0
        %v1383 = vand.u32 %v392, 4294901760
        %v1384 = vsub.f32 %v392, %v1383
        %v1385 = vand.u32 %v1384, 4294901760
        %1386 = vmatmul.mubr.f32.gmra.mrb[0].mxu0 %v1385
        %v1387 = vpop.f32.mrb[0].mxu0
        %v1388 = vadd.f32 %v1194, %v1387
        %v1389 = vpop.f32.mrb[0].mxu0
        %v1390 = vadd.f32 %v1196, %v1389
        %1391 = vmatprep.mubr.f32.mxu0 0.0
        %v1392 = vand.u32 %v395, 4294901760
        %v1393 = vsub.f32 %v395, %v1392
        %v1394 = vand.u32 %v1393, 4294901760
        %1395 = vmatmul.mubr.f32.gmra.mrb[0].mxu0 %v1394
        %v1396 = vpop.f32.mrb[0].mxu0
        %v1397 = vadd.f32 %v1202, %v1396
        %v1398 = vpop.f32.mrb[0].mxu0
        %v1399 = vadd.f32 %v1204, %v1398
        %1400 = vmatprep.mubr.f32.mxu0 0.0
        %v1401 = vand.u32 %v398, 4294901760
        %v1402 = vsub.f32 %v398, %v1401
        %v1403 = vand.u32 %v1402, 4294901760
        %1404 = vmatmul.mubr.f32.gmra.mrb[0].mxu0 %v1403
        %v1405 = vpop.f32.mrb[0].mxu0
        %v1406 = vadd.f32 %v1210, %v1405
        %v1407 = vpop.f32.mrb[0].mxu0
        %v1408 = vadd.f32 %v1212, %v1407
        %1409 = vmatprep.mubr.f32.mxu0 0.0
        %v1410 = vand.u32 %v401, 4294901760
        %v1411 = vsub.f32 %v401, %v1410
        %v1412 = vand.u32 %v1411, 4294901760
        %1413 = vmatmul.mubr.f32.gmra.mrb[0].mxu0 %v1412
        %v1414 = vpop.f32.mrb[0].mxu0
        %v1415 = vadd.f32 %v1218, %v1414
        %v1416 = vpop.f32.mrb[0].mxu0
        %v1417 = vadd.f32 %v1220, %v1416
        %1418 = vmatprep.mubr.f32.mxu0 0.0
        %v1419 = vand.u32 %v404, 4294901760
        %v1420 = vsub.f32 %v404, %v1419
        %v1421 = vand.u32 %v1420, 4294901760
        %1422 = vmatmul.mubr.f32.gmra.mrb[0].mxu0 %v1421
        %v1423 = vpop.f32.mrb[0].mxu0
        %v1424 = vadd.f32 %v1226, %v1423
        %v1425 = vpop.f32.mrb[0].mxu0
        %v1426 = vadd.f32 %v1228, %v1425
        %1427 = vmatprep.mubr.f32.mxu0 0.0
        %v1428 = vand.u32 %v407, 4294901760
        %v1429 = vsub.f32 %v407, %v1428
        %v1430 = vand.u32 %v1429, 4294901760
        %1431 = vmatmul.mubr.f32.gmra.mrb[0].mxu0 %v1430
        %v1432 = vpop.f32.mrb[0].mxu0
        %v1433 = vadd.f32 %v1234, %v1432
        %v1434 = vpop.f32.mrb[0].mxu0
        %v1435 = vadd.f32 %v1236, %v1434
        %1436 = vmatprep.mubr.f32.mxu0 0.0
        %v1437 = vand.u32 %v410, 4294901760
        %v1438 = vsub.f32 %v410, %v1437
        %v1439 = vand.u32 %v1438, 4294901760
        %1440 = vmatmul.mubr.f32.gmra.mrb[0].mxu0 %v1439
        %v1441 = vpop.f32.mrb[0].mxu0
        %v1442 = vadd.f32 %v1242, %v1441
        %v1443 = vpop.f32.mrb[0].mxu0
        %v1444 = vadd.f32 %v1244, %v1443
        %1445 = vmatprep.mubr.f32.mxu0 0.0
        %v1446 = vand.u32 %v413, 4294901760
        %v1447 = vsub.f32 %v413, %v1446
        %v1448 = vand.u32 %v1447, 4294901760
        %1449 = vmatmul.mubr.f32.gmra.mrb[0].mxu0 %v1448
        %v1450 = vpop.f32.mrb[0].mxu0
        %v1451 = vadd.f32 %v1250, %v1450
        %v1452 = vpop.f32.mrb[0].mxu0
        %v1453 = vadd.f32 %v1252, %v1452
        %1454 = vmatprep.mubr.f32.mxu0 0.0
        %v1455 = vand.u32 %v416, 4294901760
        %v1456 = vsub.f32 %v416, %v1455
        %v1457 = vand.u32 %v1456, 4294901760
        %1458 = vmatmul.mubr.f32.gmra.mrb[0].mxu0 %v1457
        %v1459 = vpop.f32.mrb[0].mxu0
        %v1460 = vadd.f32 %v1258, %v1459
        %v1461 = vpop.f32.mrb[0].mxu0
        %v1462 = vadd.f32 %v1260, %v1461
        %1463 = vmatprep.mubr.f32.mxu0 0.0
        %v1464 = vand.u32 %v419, 4294901760
        %v1465 = vsub.f32 %v419, %v1464
        %v1466 = vand.u32 %v1465, 4294901760
        %1467 = vmatmul.mubr.f32.gmra.mrb[0].mxu0 %v1466
        %v1468 = vpop.f32.mrb[0].mxu0
        %v1469 = vadd.f32 %v1266, %v1468
        %v1470 = vpop.f32.mrb[0].mxu0
        %v1471 = vadd.f32 %v1268, %v1470
        %1472 = vmatprep.mubr.f32.mxu0 0.0
        %v1473 = vand.u32 %v422, 4294901760
        %v1474 = vsub.f32 %v422, %v1473
        %v1475 = vand.u32 %v1474, 4294901760
        %1476 = vmatmul.mubr.f32.gmra.mrb[0].mxu0 %v1475
        %v1477 = vpop.f32.mrb[0].mxu0
        %v1478 = vadd.f32 %v1274, %v1477
        %v1479 = vpop.f32.mrb[0].mxu0
        %v1480 = vadd.f32 %v1276, %v1479
        %1481 = vmatprep.mubr.f32.mxu0 0.0
        %v1482 = vand.u32 %v425, 4294901760
        %v1483 = vsub.f32 %v425, %v1482
        %v1484 = vand.u32 %v1483, 4294901760
        %1485 = vmatmul.mubr.f32.gmra.mrb[0].mxu0 %v1484
        %v1486 = vpop.f32.mrb[0].mxu0
        %v1487 = vadd.f32 %v1282, %v1486
        %v1488 = vpop.f32.mrb[0].mxu0
        %v1489 = vadd.f32 %v1284, %v1488
        %1490 = vdwg.mxu0
        %1491 = vmatprep.subr.mxu0 0.0
        %v1492 = vand.u32 %v428, 4294901760
        %v1493 = vsub.f32 %v428, %v1492
        %v1494 = vand.u32 %v1493, 4294901760
        %1495 = vmatpush1.xpose.msra.mxu0 %v1494
        %1496 = vmatprep.subr.mxu0 0.0
        %v1497 = vand.u32 %v431, 4294901760
        %v1498 = vsub.f32 %v431, %v1497
        %v1499 = vand.u32 %v1498, 4294901760
        %1500 = vmatpush1.xpose.msra.mxu0 %v1499
        %1501 = vmatprep.subr.mxu0 0.0
        %v1502 = vand.u32 %v434, 4294901760
        %v1503 = vsub.f32 %v434, %v1502
        %v1504 = vand.u32 %v1503, 4294901760
        %1505 = vmatpush1.xpose.msra.mxu0 %v1504
        %1506 = vmatprep.subr.mxu0 0.0
        %v1507 = vand.u32 %v437, 4294901760
        %v1508 = vsub.f32 %v437, %v1507
        %v1509 = vand.u32 %v1508, 4294901760
        %1510 = vmatpush1.xpose.msra.mxu0 %v1509
        %1511 = vmatprep.subr.mxu0 0.0
        %v1512 = vand.u32 %v440, 4294901760
        %v1513 = vsub.f32 %v440, %v1512
        %v1514 = vand.u32 %v1513, 4294901760
        %1515 = vmatpush1.xpose.msra.mxu0 %v1514
        %1516 = vmatprep.subr.mxu0 0.0
        %v1517 = vand.u32 %v443, 4294901760
        %v1518 = vsub.f32 %v443, %v1517
        %v1519 = vand.u32 %v1518, 4294901760
        %1520 = vmatpush1.xpose.msra.mxu0 %v1519
        %1521 = vmatprep.subr.mxu0 0.0
        %v1522 = vand.u32 %v446, 4294901760
        %v1523 = vsub.f32 %v446, %v1522
        %v1524 = vand.u32 %v1523, 4294901760
        %1525 = vmatpush1.xpose.msra.mxu0 %v1524
        %1526 = vmatprep.subr.mxu0 0.0
        %v1527 = vand.u32 %v449, 4294901760
        %v1528 = vsub.f32 %v449, %v1527
        %v1529 = vand.u32 %v1528, 4294901760
        %1530 = vmatpush1.xpose.msra.mxu0 %v1529
        %1531 = vmatprep.subr.mxu0 0.0
        %v1532 = vand.u32 %v452, 4294901760
        %v1533 = vsub.f32 %v452, %v1532
        %v1534 = vand.u32 %v1533, 4294901760
        %1535 = vmatpush1.xpose.msra.mxu0 %v1534
        %1536 = vmatprep.subr.mxu0 0.0
        %v1537 = vand.u32 %v455, 4294901760
        %v1538 = vsub.f32 %v455, %v1537
        %v1539 = vand.u32 %v1538, 4294901760
        %1540 = vmatpush1.xpose.msra.mxu0 %v1539
        %1541 = vmatprep.subr.mxu0 0.0
        %v1542 = vand.u32 %v458, 4294901760
        %v1543 = vsub.f32 %v458, %v1542
        %v1544 = vand.u32 %v1543, 4294901760
        %1545 = vmatpush1.xpose.msra.mxu0 %v1544
        %1546 = vmatprep.subr.mxu0 0.0
        %v1547 = vand.u32 %v461, 4294901760
        %v1548 = vsub.f32 %v461, %v1547
        %v1549 = vand.u32 %v1548, 4294901760
        %1550 = vmatpush1.xpose.msra.mxu0 %v1549
        %1551 = vmatprep.subr.mxu0 0.0
        %v1552 = vand.u32 %v464, 4294901760
        %v1553 = vsub.f32 %v464, %v1552
        %v1554 = vand.u32 %v1553, 4294901760
        %1555 = vmatpush1.xpose.msra.mxu0 %v1554
        %1556 = vmatprep.subr.mxu0 0.0
        %v1557 = vand.u32 %v467, 4294901760
        %v1558 = vsub.f32 %v467, %v1557
        %v1559 = vand.u32 %v1558, 4294901760
        %1560 = vmatpush1.xpose.msra.mxu0 %v1559
        %1561 = vmatprep.subr.mxu0 0.0
        %v1562 = vand.u32 %v470, 4294901760
        %v1563 = vsub.f32 %v470, %v1562
        %v1564 = vand.u32 %v1563, 4294901760
        %1565 = vmatpush1.xpose.msra.mxu0 %v1564
        %1566 = vmatprep.subr.mxu0 0.0
        %v1567 = vand.u32 %v473, 4294901760
        %v1568 = vsub.f32 %v473, %v1567
        %v1569 = vand.u32 %v1568, 4294901760
        %1570 = vmatpush1.xpose.msra.mxu0 %v1569
        %1571 = vmatprep.subr.mxu0 0.0
        %v1572 = vand.u32 %v476, 4294901760
        %v1573 = vsub.f32 %v476, %v1572
        %v1574 = vand.u32 %v1573, 4294901760
        %1575 = vmatpush1.xpose.msra.mxu0 %v1574
        %1576 = vmatprep.subr.mxu0 0.0
        %v1577 = vand.u32 %v479, 4294901760
        %v1578 = vsub.f32 %v479, %v1577
        %v1579 = vand.u32 %v1578, 4294901760
        %1580 = vmatpush1.xpose.msra.mxu0 %v1579
        %1581 = vmatprep.subr.mxu0 0.0
        %v1582 = vand.u32 %v482, 4294901760
        %v1583 = vsub.f32 %v482, %v1582
        %v1584 = vand.u32 %v1583, 4294901760
        %1585 = vmatpush1.xpose.msra.mxu0 %v1584
        %1586 = vmatprep.subr.mxu0 0.0
        %v1587 = vand.u32 %v485, 4294901760
        %v1588 = vsub.f32 %v485, %v1587
        %v1589 = vand.u32 %v1588, 4294901760
        %1590 = vmatpush1.xpose.msra.mxu0 %v1589
        %1591 = vmatprep.subr.mxu0 0.0
        %v1592 = vand.u32 %v488, 4294901760
        %v1593 = vsub.f32 %v488, %v1592
        %v1594 = vand.u32 %v1593, 4294901760
        %1595 = vmatpush1.xpose.msra.mxu0 %v1594
        %1596 = vmatprep.subr.mxu0 0.0
        %v1597 = vand.u32 %v491, 4294901760
        %v1598 = vsub.f32 %v491, %v1597
        %v1599 = vand.u32 %v1598, 4294901760
        %1600 = vmatpush1.xpose.msra.mxu0 %v1599
        %1601 = vmatprep.subr.mxu0 0.0
        %v1602 = vand.u32 %v494, 4294901760
        %v1603 = vsub.f32 %v494, %v1602
        %v1604 = vand.u32 %v1603, 4294901760
        %1605 = vmatpush1.xpose.msra.mxu0 %v1604
        %1606 = vmatprep.subr.mxu0 0.0
        %v1607 = vand.u32 %v497, 4294901760
        %v1608 = vsub.f32 %v497, %v1607
        %v1609 = vand.u32 %v1608, 4294901760
        %1610 = vmatpush1.xpose.msra.mxu0 %v1609
        %1611 = vmatprep.subr.mxu0 0.0
        %v1612 = vand.u32 %v500, 4294901760
        %v1613 = vsub.f32 %v500, %v1612
        %v1614 = vand.u32 %v1613, 4294901760
        %1615 = vmatpush1.xpose.msra.mxu0 %v1614
        %1616 = vmatprep.subr.mxu0 0.0
        %v1617 = vand.u32 %v503, 4294901760
        %v1618 = vsub.f32 %v503, %v1617
        %v1619 = vand.u32 %v1618, 4294901760
        %1620 = vmatpush1.xpose.msra.mxu0 %v1619
        %1621 = vmatprep.subr.mxu0 0.0
        %v1622 = vand.u32 %v506, 4294901760
        %v1623 = vsub.f32 %v506, %v1622
        %v1624 = vand.u32 %v1623, 4294901760
        %1625 = vmatpush1.xpose.msra.mxu0 %v1624
        %1626 = vmatprep.subr.mxu0 0.0
        %v1627 = vand.u32 %v509, 4294901760
        %v1628 = vsub.f32 %v509, %v1627
        %v1629 = vand.u32 %v1628, 4294901760
        %1630 = vmatpush1.xpose.msra.mxu0 %v1629
        %1631 = vmatprep.subr.mxu0 0.0
        %v1632 = vand.u32 %v512, 4294901760
        %v1633 = vsub.f32 %v512, %v1632
        %v1634 = vand.u32 %v1633, 4294901760
        %1635 = vmatpush1.xpose.msra.mxu0 %v1634
        %1636 = vmatprep.subr.mxu0 0.0
        %v1637 = vand.u32 %v515, 4294901760
        %v1638 = vsub.f32 %v515, %v1637
        %v1639 = vand.u32 %v1638, 4294901760
        %1640 = vmatpush1.xpose.msra.mxu0 %v1639
        %1641 = vmatprep.subr.mxu0 0.0
        %v1642 = vand.u32 %v518, 4294901760
        %v1643 = vsub.f32 %v518, %v1642
        %v1644 = vand.u32 %v1643, 4294901760
        %1645 = vmatpush1.xpose.msra.mxu0 %v1644
        %1646 = vmatprep.subr.mxu0 0.0
        %v1647 = vand.u32 %v521, 4294901760
        %v1648 = vsub.f32 %v521, %v1647
        %v1649 = vand.u32 %v1648, 4294901760
        %1650 = vmatpush1.xpose.msra.mxu0 %v1649
        %1651 = vmatprep.mubr.f32.mxu0 0.0
        %v1652 = vand.u32 %v392, 4294901760
        %1653 = vmatmul.mubr.f32.gmra.mrb[0].mxu0 %v1652
        %v1654 = vpop.f32.mrb[0].mxu0
        %v1655 = vadd.f32 %v1388, %v1654
        %v1656 = vpop.f32.mrb[0].mxu0
        %v1657 = vadd.f32 %v1390, %v1656
        %1658 = vmatprep.mubr.f32.mxu0 0.0
        %v1659 = vand.u32 %v395, 4294901760
        %1660 = vmatmul.mubr.f32.gmra.mrb[0].mxu0 %v1659
        %v1661 = vpop.f32.mrb[0].mxu0
        %v1662 = vadd.f32 %v1397, %v1661
        %v1663 = vpop.f32.mrb[0].mxu0
        %v1664 = vadd.f32 %v1399, %v1663
        %1665 = vmatprep.mubr.f32.mxu0 0.0
        %v1666 = vand.u32 %v398, 4294901760
        %1667 = vmatmul.mubr.f32.gmra.mrb[0].mxu0 %v1666
        %v1668 = vpop.f32.mrb[0].mxu0
        %v1669 = vadd.f32 %v1406, %v1668
        %v1670 = vpop.f32.mrb[0].mxu0
        %v1671 = vadd.f32 %v1408, %v1670
        %1672 = vmatprep.mubr.f32.mxu0 0.0
        %v1673 = vand.u32 %v401, 4294901760
        %1674 = vmatmul.mubr.f32.gmra.mrb[0].mxu0 %v1673
        %v1675 = vpop.f32.mrb[0].mxu0
        %v1676 = vadd.f32 %v1415, %v1675
        %v1677 = vpop.f32.mrb[0].mxu0
        %v1678 = vadd.f32 %v1417, %v1677
        %1679 = vmatprep.mubr.f32.mxu0 0.0
        %v1680 = vand.u32 %v404, 4294901760
        %1681 = vmatmul.mubr.f32.gmra.mrb[0].mxu0 %v1680
        %v1682 = vpop.f32.mrb[0].mxu0
        %v1683 = vadd.f32 %v1424, %v1682
        %v1684 = vpop.f32.mrb[0].mxu0
        %v1685 = vadd.f32 %v1426, %v1684
        %1686 = vmatprep.mubr.f32.mxu0 0.0
        %v1687 = vand.u32 %v407, 4294901760
        %1688 = vmatmul.mubr.f32.gmra.mrb[0].mxu0 %v1687
        %v1689 = vpop.f32.mrb[0].mxu0
        %v1690 = vadd.f32 %v1433, %v1689
        %v1691 = vpop.f32.mrb[0].mxu0
        %v1692 = vadd.f32 %v1435, %v1691
        %1693 = vmatprep.mubr.f32.mxu0 0.0
        %v1694 = vand.u32 %v410, 4294901760
        %1695 = vmatmul.mubr.f32.gmra.mrb[0].mxu0 %v1694
        %v1696 = vpop.f32.mrb[0].mxu0
        %v1697 = vadd.f32 %v1442, %v1696
        %v1698 = vpop.f32.mrb[0].mxu0
        %v1699 = vadd.f32 %v1444, %v1698
        %1700 = vmatprep.mubr.f32.mxu0 0.0
        %v1701 = vand.u32 %v413, 4294901760
        %1702 = vmatmul.mubr.f32.gmra.mrb[0].mxu0 %v1701
        %v1703 = vpop.f32.mrb[0].mxu0
        %v1704 = vadd.f32 %v1451, %v1703
        %v1705 = vpop.f32.mrb[0].mxu0
        %v1706 = vadd.f32 %v1453, %v1705
        %1707 = vmatprep.mubr.f32.mxu0 0.0
        %v1708 = vand.u32 %v416, 4294901760
        %1709 = vmatmul.mubr.f32.gmra.mrb[0].mxu0 %v1708
        %v1710 = vpop.f32.mrb[0].mxu0
        %v1711 = vadd.f32 %v1460, %v1710
        %v1712 = vpop.f32.mrb[0].mxu0
        %v1713 = vadd.f32 %v1462, %v1712
        %1714 = vmatprep.mubr.f32.mxu0 0.0
        %v1715 = vand.u32 %v419, 4294901760
        %1716 = vmatmul.mubr.f32.gmra.mrb[0].mxu0 %v1715
        %v1717 = vpop.f32.mrb[0].mxu0
        %v1718 = vadd.f32 %v1469, %v1717
        %v1719 = vpop.f32.mrb[0].mxu0
        %v1720 = vadd.f32 %v1471, %v1719
        %1721 = vmatprep.mubr.f32.mxu0 0.0
        %v1722 = vand.u32 %v422, 4294901760
        %1723 = vmatmul.mubr.f32.gmra.mrb[0].mxu0 %v1722
        %v1724 = vpop.f32.mrb[0].mxu0
        %v1725 = vadd.f32 %v1478, %v1724
        %v1726 = vpop.f32.mrb[0].mxu0
        %v1727 = vadd.f32 %v1480, %v1726
        %1728 = vmatprep.mubr.f32.mxu0 0.0
        %v1729 = vand.u32 %v425, 4294901760
        %1730 = vmatmul.mubr.f32.gmra.mrb[0].mxu0 %v1729
        %v1731 = vpop.f32.mrb[0].mxu0
        %v1732 = vadd.f32 %v1487, %v1731
        %v1733 = vpop.f32.mrb[0].mxu0
        %v1734 = vadd.f32 %v1489, %v1733
        %1735 = vdwg.mxu0
        %1736 = vmatprep.subr.mxu0 0.0
        %v1737 = vand.u32 %v428, 4294901760
        %1738 = vmatpush1.xpose.msra.mxu0 %v1737
        %1739 = vmatprep.subr.mxu0 0.0
        %v1740 = vand.u32 %v431, 4294901760
        %1741 = vmatpush1.xpose.msra.mxu0 %v1740
        %1742 = vmatprep.subr.mxu0 0.0
        %v1743 = vand.u32 %v434, 4294901760
        %1744 = vmatpush1.xpose.msra.mxu0 %v1743
        %1745 = vmatprep.subr.mxu0 0.0
        %v1746 = vand.u32 %v437, 4294901760
        %1747 = vmatpush1.xpose.msra.mxu0 %v1746
        %1748 = vmatprep.subr.mxu0 0.0
        %v1749 = vand.u32 %v440, 4294901760
        %1750 = vmatpush1.xpose.msra.mxu0 %v1749
        %1751 = vmatprep.subr.mxu0 0.0
        %v1752 = vand.u32 %v443, 4294901760
        %1753 = vmatpush1.xpose.msra.mxu0 %v1752
        %1754 = vmatprep.subr.mxu0 0.0
        %v1755 = vand.u32 %v446, 4294901760
        %1756 = vmatpush1.xpose.msra.mxu0 %v1755
        %1757 = vmatprep.subr.mxu0 0.0
        %v1758 = vand.u32 %v449, 4294901760
        %1759 = vmatpush1.xpose.msra.mxu0 %v1758
        %1760 = vmatprep.subr.mxu0 0.0
        %v1761 = vand.u32 %v452, 4294901760
        %1762 = vmatpush1.xpose.msra.mxu0 %v1761
        %1763 = vmatprep.subr.mxu0 0.0
        %v1764 = vand.u32 %v455, 4294901760
        %1765 = vmatpush1.xpose.msra.mxu0 %v1764
        %1766 = vmatprep.subr.mxu0 0.0
        %v1767 = vand.u32 %v458, 4294901760
        %1768 = vmatpush1.xpose.msra.mxu0 %v1767
        %1769 = vmatprep.subr.mxu0 0.0
        %v1770 = vand.u32 %v461, 4294901760
        %1771 = vmatpush1.xpose.msra.mxu0 %v1770
        %1772 = vmatprep.subr.mxu0 0.0
        %v1773 = vand.u32 %v464, 4294901760
        %1774 = vmatpush1.xpose.msra.mxu0 %v1773
        %1775 = vmatprep.subr.mxu0 0.0
        %v1776 = vand.u32 %v467, 4294901760
        %1777 = vmatpush1.xpose.msra.mxu0 %v1776
        %1778 = vmatprep.subr.mxu0 0.0
        %v1779 = vand.u32 %v470, 4294901760
        %1780 = vmatpush1.xpose.msra.mxu0 %v1779
        %1781 = vmatprep.subr.mxu0 0.0
        %v1782 = vand.u32 %v473, 4294901760
        %1783 = vmatpush1.xpose.msra.mxu0 %v1782
        %1784 = vmatprep.subr.mxu0 0.0
        %v1785 = vand.u32 %v476, 4294901760
        %1786 = vmatpush1.xpose.msra.mxu0 %v1785
        %1787 = vmatprep.subr.mxu0 0.0
        %v1788 = vand.u32 %v479, 4294901760
        %1789 = vmatpush1.xpose.msra.mxu0 %v1788
        %1790 = vmatprep.subr.mxu0 0.0
        %v1791 = vand.u32 %v482, 4294901760
        %1792 = vmatpush1.xpose.msra.mxu0 %v1791
        %1793 = vmatprep.subr.mxu0 0.0
        %v1794 = vand.u32 %v485, 4294901760
        %1795 = vmatpush1.xpose.msra.mxu0 %v1794
        %1796 = vmatprep.subr.mxu0 0.0
        %v1797 = vand.u32 %v488, 4294901760
        %1798 = vmatpush1.xpose.msra.mxu0 %v1797
        %1799 = vmatprep.subr.mxu0 0.0
        %v1800 = vand.u32 %v491, 4294901760
        %1801 = vmatpush1.xpose.msra.mxu0 %v1800
        %1802 = vmatprep.subr.mxu0 0.0
        %v1803 = vand.u32 %v494, 4294901760
        %1804 = vmatpush1.xpose.msra.mxu0 %v1803
        %1805 = vmatprep.subr.mxu0 0.0
        %v1806 = vand.u32 %v497, 4294901760
        %1807 = vmatpush1.xpose.msra.mxu0 %v1806
        %1808 = vmatprep.subr.mxu0 0.0
        %v1809 = vand.u32 %v500, 4294901760
        %1810 = vmatpush1.xpose.msra.mxu0 %v1809
        %1811 = vmatprep.subr.mxu0 0.0
        %v1812 = vand.u32 %v503, 4294901760
        %1813 = vmatpush1.xpose.msra.mxu0 %v1812
        %1814 = vmatprep.subr.mxu0 0.0
        %v1815 = vand.u32 %v506, 4294901760
        %1816 = vmatpush1.xpose.msra.mxu0 %v1815
        %1817 = vmatprep.subr.mxu0 0.0
        %v1818 = vand.u32 %v509, 4294901760
        %1819 = vmatpush1.xpose.msra.mxu0 %v1818
        %1820 = vmatprep.subr.mxu0 0.0
        %v1821 = vand.u32 %v512, 4294901760
        %1822 = vmatpush1.xpose.msra.mxu0 %v1821
        %1823 = vmatprep.subr.mxu0 0.0
        %v1824 = vand.u32 %v515, 4294901760
        %1825 = vmatpush1.xpose.msra.mxu0 %v1824
        %1826 = vmatprep.subr.mxu0 0.0
        %v1827 = vand.u32 %v518, 4294901760
        %1828 = vmatpush1.xpose.msra.mxu0 %v1827
        %1829 = vmatprep.subr.mxu0 0.0
        %v1830 = vand.u32 %v521, 4294901760
        %1831 = vmatpush1.xpose.msra.mxu0 %v1830
        %1832 = vmatprep.mubr.f32.mxu0 0.0
        %v1833 = vand.u32 %v392, 4294901760
        %1834 = vmatmul.mubr.f32.gmra.mrb[0].mxu0 %v1833
        %v1835 = vpop.f32.mrb[0].mxu0
        %v1836 = vadd.f32 %v1655, %v1835
        %v1837 = vpop.f32.mrb[0].mxu0
        %v1838 = vadd.f32 %v1657, %v1837
        %1839 = vmatprep.mubr.f32.mxu0 0.0
        %v1840 = vand.u32 %v395, 4294901760
        %1841 = vmatmul.mubr.f32.gmra.mrb[0].mxu0 %v1840
        %v1842 = vpop.f32.mrb[0].mxu0
        %v1843 = vadd.f32 %v1662, %v1842
        %v1844 = vpop.f32.mrb[0].mxu0
        %v1845 = vadd.f32 %v1664, %v1844
        %1846 = vmatprep.mubr.f32.mxu0 0.0
        %v1847 = vand.u32 %v398, 4294901760
        %1848 = vmatmul.mubr.f32.gmra.mrb[0].mxu0 %v1847
        %v1849 = vpop.f32.mrb[0].mxu0
        %v1850 = vadd.f32 %v1669, %v1849
        %v1851 = vpop.f32.mrb[0].mxu0
        %v1852 = vadd.f32 %v1671, %v1851
        %1853 = vmatprep.mubr.f32.mxu0 0.0
        %v1854 = vand.u32 %v401, 4294901760
        %1855 = vmatmul.mubr.f32.gmra.mrb[0].mxu0 %v1854
        %v1856 = vpop.f32.mrb[0].mxu0
        %v1857 = vadd.f32 %v1676, %v1856
        %v1858 = vpop.f32.mrb[0].mxu0
        %v1859 = vadd.f32 %v1678, %v1858
        %1860 = vmatprep.mubr.f32.mxu0 0.0
        %v1861 = vand.u32 %v404, 4294901760
        %1862 = vmatmul.mubr.f32.gmra.mrb[0].mxu0 %v1861
        %v1863 = vpop.f32.mrb[0].mxu0
        %v1864 = vadd.f32 %v1683, %v1863
        %v1865 = vpop.f32.mrb[0].mxu0
        %v1866 = vadd.f32 %v1685, %v1865
        %1867 = vmatprep.mubr.f32.mxu0 0.0
        %v1868 = vand.u32 %v407, 4294901760
        %1869 = vmatmul.mubr.f32.gmra.mrb[0].mxu0 %v1868
        %v1870 = vpop.f32.mrb[0].mxu0
        %v1871 = vadd.f32 %v1690, %v1870
        %v1872 = vpop.f32.mrb[0].mxu0
        %v1873 = vadd.f32 %v1692, %v1872
        %1874 = vmatprep.mubr.f32.mxu0 0.0
        %v1875 = vand.u32 %v410, 4294901760
        %1876 = vmatmul.mubr.f32.gmra.mrb[0].mxu0 %v1875
        %v1877 = vpop.f32.mrb[0].mxu0
        %v1878 = vadd.f32 %v1697, %v1877
        %v1879 = vpop.f32.mrb[0].mxu0
        %v1880 = vadd.f32 %v1699, %v1879
        %1881 = vmatprep.mubr.f32.mxu0 0.0
        %v1882 = vand.u32 %v413, 4294901760
        %1883 = vmatmul.mubr.f32.gmra.mrb[0].mxu0 %v1882
        %v1884 = vpop.f32.mrb[0].mxu0
        %v1885 = vadd.f32 %v1704, %v1884
        %v1886 = vpop.f32.mrb[0].mxu0
        %v1887 = vadd.f32 %v1706, %v1886
        %1888 = vmatprep.mubr.f32.mxu0 0.0
        %v1889 = vand.u32 %v416, 4294901760
        %1890 = vmatmul.mubr.f32.gmra.mrb[0].mxu0 %v1889
        %v1891 = vpop.f32.mrb[0].mxu0
        %v1892 = vadd.f32 %v1711, %v1891
        %v1893 = vpop.f32.mrb[0].mxu0
        %v1894 = vadd.f32 %v1713, %v1893
        %1895 = vmatprep.mubr.f32.mxu0 0.0
        %v1896 = vand.u32 %v419, 4294901760
        %1897 = vmatmul.mubr.f32.gmra.mrb[0].mxu0 %v1896
        %v1898 = vpop.f32.mrb[0].mxu0
        %v1899 = vadd.f32 %v1718, %v1898
        %v1900 = vpop.f32.mrb[0].mxu0
        %v1901 = vadd.f32 %v1720, %v1900
        %1902 = vmatprep.mubr.f32.mxu0 0.0
        %v1903 = vand.u32 %v422, 4294901760
        %1904 = vmatmul.mubr.f32.gmra.mrb[0].mxu0 %v1903
        %v1905 = vpop.f32.mrb[0].mxu0
        %v1906 = vadd.f32 %v1725, %v1905
        %v1907 = vpop.f32.mrb[0].mxu0
        %v1908 = vadd.f32 %v1727, %v1907
        %1909 = vmatprep.mubr.f32.mxu0 0.0
        %v1910 = vand.u32 %v425, 4294901760
        %1911 = vmatmul.mubr.f32.gmra.mrb[0].mxu0 %v1910
        %v1912 = vpop.f32.mrb[0].mxu0
        %v1913 = vadd.f32 %v1732, %v1912
        %v1914 = vpop.f32.mrb[0].mxu0
        %v1915 = vadd.f32 %v1734, %v1914
        %1916 = vdwg.mxu0
        %v1918 = vsel %vm390, %v366, 0
        %v1921 = vsel %vm390, %v367, 0
        %v1924 = vsel %vm390, %v368, 0
        %v1927 = vsel %vm390, %v369, 0
        %v1930 = vsel %vm390, %v370, 0
        %v1933 = vsel %vm390, %v371, 0
        %v1936 = vsel %vm390, %v372, 0
        %v1939 = vsel %vm390, %v373, 0
        %v1942 = vsel %vm390, %v374, 0
        %v1945 = vsel %vm390, %v375, 0
        %v1948 = vsel %vm390, %v376, 0
        %v1951 = vsel %vm390, %v377, 0
        %v1954 = vsel %vm390, %v334, 0
        %v1957 = vsel %vm390, %v335, 0
        %v1960 = vsel %vm390, %v336, 0
        %v1963 = vsel %vm390, %v337, 0
        %v1966 = vsel %vm390, %v338, 0
        %v1969 = vsel %vm390, %v339, 0
        %v1972 = vsel %vm390, %v340, 0
        %v1975 = vsel %vm390, %v341, 0
        %v1978 = vsel %vm390, %v342, 0
        %v1981 = vsel %vm390, %v343, 0
        %v1984 = vsel %vm390, %v344, 0
        %v1987 = vsel %vm390, %v345, 0
        %v1990 = vsel %vm390, %v346, 0
        %v1993 = vsel %vm390, %v347, 0
        %v1996 = vsel %vm390, %v348, 0
        %v1999 = vsel %vm390, %v349, 0
        %v2002 = vsel %vm390, %v350, 0
        %v2005 = vsel %vm390, %v351, 0
        %v2008 = vsel %vm390, %v352, 0
        %v2011 = vsel %vm390, %v353, 0
        %v2014 = vsel %vm390, %v354, 0
        %v2017 = vsel %vm390, %v355, 0
        %v2020 = vsel %vm390, %v356, 0
        %v2023 = vsel %vm390, %v357, 0
        %v2026 = vsel %vm390, %v358, 0
        %v2029 = vsel %vm390, %v359, 0
        %v2032 = vsel %vm390, %v360, 0
        %v2035 = vsel %vm390, %v361, 0
        %v2038 = vsel %vm390, %v362, 0
        %v2041 = vsel %vm390, %v363, 0
        %v2044 = vsel %vm390, %v364, 0
        %v2047 = vsel %vm390, %v365, 0
        %2049 = vmatprep.subr.mxu0 0.0
        %v2050 = vand.u32 %v1954, 4294901760
        %2051 = vmatpush1.xpose.msra.mxu0 %v2050
        %2052 = vmatprep.subr.mxu0 0.0
        %v2053 = vand.u32 %v1957, 4294901760
        %2054 = vmatpush1.xpose.msra.mxu0 %v2053
        %2055 = vmatprep.subr.mxu0 0.0
        %v2056 = vand.u32 %v1960, 4294901760
        %2057 = vmatpush1.xpose.msra.mxu0 %v2056
        %2058 = vmatprep.subr.mxu0 0.0
        %v2059 = vand.u32 %v1963, 4294901760
        %2060 = vmatpush1.xpose.msra.mxu0 %v2059
        %2061 = vmatprep.subr.mxu0 0.0
        %v2062 = vand.u32 %v1966, 4294901760
        %2063 = vmatpush1.xpose.msra.mxu0 %v2062
        %2064 = vmatprep.subr.mxu0 0.0
        %v2065 = vand.u32 %v1969, 4294901760
        %2066 = vmatpush1.xpose.msra.mxu0 %v2065
        %2067 = vmatprep.subr.mxu0 0.0
        %v2068 = vand.u32 %v1972, 4294901760
        %2069 = vmatpush1.xpose.msra.mxu0 %v2068
        %2070 = vmatprep.subr.mxu0 0.0
        %v2071 = vand.u32 %v1975, 4294901760
        %2072 = vmatpush1.xpose.msra.mxu0 %v2071
        %2073 = vmatprep.subr.mxu0 0.0
        %v2074 = vand.u32 %v1978, 4294901760
        %2075 = vmatpush1.xpose.msra.mxu0 %v2074
        %2076 = vmatprep.subr.mxu0 0.0
        %v2077 = vand.u32 %v1981, 4294901760
        %2078 = vmatpush1.xpose.msra.mxu0 %v2077
        %2079 = vmatprep.subr.mxu0 0.0
        %v2080 = vand.u32 %v1984, 4294901760
        %2081 = vmatpush1.xpose.msra.mxu0 %v2080
        %2082 = vmatprep.subr.mxu0 0.0
        %v2083 = vand.u32 %v1987, 4294901760
        %2084 = vmatpush1.xpose.msra.mxu0 %v2083
        %2085 = vmatprep.subr.mxu0 0.0
        %v2086 = vand.u32 %v1990, 4294901760
        %2087 = vmatpush1.xpose.msra.mxu0 %v2086
        %2088 = vmatprep.subr.mxu0 0.0
        %v2089 = vand.u32 %v1993, 4294901760
        %2090 = vmatpush1.xpose.msra.mxu0 %v2089
        %2091 = vmatprep.subr.mxu0 0.0
        %v2092 = vand.u32 %v1996, 4294901760
        %2093 = vmatpush1.xpose.msra.mxu0 %v2092
        %2094 = vmatprep.subr.mxu0 0.0
        %v2095 = vand.u32 %v1999, 4294901760
        %2096 = vmatpush1.xpose.msra.mxu0 %v2095
        %2097 = vmatprep.subr.mxu0 0.0
        %v2098 = vand.u32 %v2002, 4294901760
        %2099 = vmatpush1.xpose.msra.mxu0 %v2098
        %2100 = vmatprep.subr.mxu0 0.0
        %v2101 = vand.u32 %v2005, 4294901760
        %2102 = vmatpush1.xpose.msra.mxu0 %v2101
        %2103 = vmatprep.subr.mxu0 0.0
        %v2104 = vand.u32 %v2008, 4294901760
        %2105 = vmatpush1.xpose.msra.mxu0 %v2104
        %2106 = vmatprep.subr.mxu0 0.0
        %v2107 = vand.u32 %v2011, 4294901760
        %2108 = vmatpush1.xpose.msra.mxu0 %v2107
        %2109 = vmatprep.subr.mxu0 0.0
        %v2110 = vand.u32 %v2014, 4294901760
        %2111 = vmatpush1.xpose.msra.mxu0 %v2110
        %2112 = vmatprep.subr.mxu0 0.0
        %v2113 = vand.u32 %v2017, 4294901760
        %2114 = vmatpush1.xpose.msra.mxu0 %v2113
        %2115 = vmatprep.subr.mxu0 0.0
        %v2116 = vand.u32 %v2020, 4294901760
        %2117 = vmatpush1.xpose.msra.mxu0 %v2116
        %2118 = vmatprep.subr.mxu0 0.0
        %v2119 = vand.u32 %v2023, 4294901760
        %2120 = vmatpush1.xpose.msra.mxu0 %v2119
        %2121 = vmatprep.subr.mxu0 0.0
        %v2122 = vand.u32 %v2026, 4294901760
        %2123 = vmatpush1.xpose.msra.mxu0 %v2122
        %2124 = vmatprep.subr.mxu0 0.0
        %v2125 = vand.u32 %v2029, 4294901760
        %2126 = vmatpush1.xpose.msra.mxu0 %v2125
        %2127 = vmatprep.subr.mxu0 0.0
        %v2128 = vand.u32 %v2032, 4294901760
        %2129 = vmatpush1.xpose.msra.mxu0 %v2128
        %2130 = vmatprep.subr.mxu0 0.0
        %v2131 = vand.u32 %v2035, 4294901760
        %2132 = vmatpush1.xpose.msra.mxu0 %v2131
        %2133 = vmatprep.subr.mxu0 0.0
        %v2134 = vand.u32 %v2038, 4294901760
        %2135 = vmatpush1.xpose.msra.mxu0 %v2134
        %2136 = vmatprep.subr.mxu0 0.0
        %v2137 = vand.u32 %v2041, 4294901760
        %2138 = vmatpush1.xpose.msra.mxu0 %v2137
        %2139 = vmatprep.subr.mxu0 0.0
        %v2140 = vand.u32 %v2044, 4294901760
        %2141 = vmatpush1.xpose.msra.mxu0 %v2140
        %2142 = vmatprep.subr.mxu0 0.0
        %v2143 = vand.u32 %v2047, 4294901760
        %2144 = vmatpush1.xpose.msra.mxu0 %v2143
        %2145 = vmatprep.mubr.f32.mxu0 0.0
        %v2146 = vand.u32 %v1918, 4294901760
        %v2147 = vsub.f32 %v1918, %v2146
        %v2148 = vand.u32 %v2147, 4294901760
        %v2149 = vsub.f32 %v2147, %v2148
        %v2150 = vand.u32 %v2149, 4294901760
        %2151 = vmatmul.mubr.f32.gmra.mrb[0].mxu0 %v2150
        %v2152 = vpop.f32.mrb[0].mxu0
        %v2153 = vadd.f32 %v1836, %v2152
        %v2154 = vpop.f32.mrb[0].mxu0
        %v2155 = vadd.f32 %v1838, %v2154
        %2156 = vmatprep.mubr.f32.mxu0 0.0
        %v2157 = vand.u32 %v1921, 4294901760
        %v2158 = vsub.f32 %v1921, %v2157
        %v2159 = vand.u32 %v2158, 4294901760
        %v2160 = vsub.f32 %v2158, %v2159
        %v2161 = vand.u32 %v2160, 4294901760
        %2162 = vmatmul.mubr.f32.gmra.mrb[0].mxu0 %v2161
        %v2163 = vpop.f32.mrb[0].mxu0
        %v2164 = vadd.f32 %v1843, %v2163
        %v2165 = vpop.f32.mrb[0].mxu0
        %v2166 = vadd.f32 %v1845, %v2165
        %2167 = vmatprep.mubr.f32.mxu0 0.0
        %v2168 = vand.u32 %v1924, 4294901760
        %v2169 = vsub.f32 %v1924, %v2168
        %v2170 = vand.u32 %v2169, 4294901760
        %v2171 = vsub.f32 %v2169, %v2170
        %v2172 = vand.u32 %v2171, 4294901760
        %2173 = vmatmul.mubr.f32.gmra.mrb[0].mxu0 %v2172
        %v2174 = vpop.f32.mrb[0].mxu0
        %v2175 = vadd.f32 %v1850, %v2174
        %v2176 = vpop.f32.mrb[0].mxu0
        %v2177 = vadd.f32 %v1852, %v2176
        %2178 = vmatprep.mubr.f32.mxu0 0.0
        %v2179 = vand.u32 %v1927, 4294901760
        %v2180 = vsub.f32 %v1927, %v2179
        %v2181 = vand.u32 %v2180, 4294901760
        %v2182 = vsub.f32 %v2180, %v2181
        %v2183 = vand.u32 %v2182, 4294901760
        %2184 = vmatmul.mubr.f32.gmra.mrb[0].mxu0 %v2183
        %v2185 = vpop.f32.mrb[0].mxu0
        %v2186 = vadd.f32 %v1857, %v2185
        %v2187 = vpop.f32.mrb[0].mxu0
        %v2188 = vadd.f32 %v1859, %v2187
        %2189 = vmatprep.mubr.f32.mxu0 0.0
        %v2190 = vand.u32 %v1930, 4294901760
        %v2191 = vsub.f32 %v1930, %v2190
        %v2192 = vand.u32 %v2191, 4294901760
        %v2193 = vsub.f32 %v2191, %v2192
        %v2194 = vand.u32 %v2193, 4294901760
        %2195 = vmatmul.mubr.f32.gmra.mrb[0].mxu0 %v2194
        %v2196 = vpop.f32.mrb[0].mxu0
        %v2197 = vadd.f32 %v1864, %v2196
        %v2198 = vpop.f32.mrb[0].mxu0
        %v2199 = vadd.f32 %v1866, %v2198
        %2200 = vmatprep.mubr.f32.mxu0 0.0
        %v2201 = vand.u32 %v1933, 4294901760
        %v2202 = vsub.f32 %v1933, %v2201
        %v2203 = vand.u32 %v2202, 4294901760
        %v2204 = vsub.f32 %v2202, %v2203
        %v2205 = vand.u32 %v2204, 4294901760
        %2206 = vmatmul.mubr.f32.gmra.mrb[0].mxu0 %v2205
        %v2207 = vpop.f32.mrb[0].mxu0
        %v2208 = vadd.f32 %v1871, %v2207
        %v2209 = vpop.f32.mrb[0].mxu0
        %v2210 = vadd.f32 %v1873, %v2209
        %2211 = vmatprep.mubr.f32.mxu0 0.0
        %v2212 = vand.u32 %v1936, 4294901760
        %v2213 = vsub.f32 %v1936, %v2212
        %v2214 = vand.u32 %v2213, 4294901760
        %v2215 = vsub.f32 %v2213, %v2214
        %v2216 = vand.u32 %v2215, 4294901760
        %2217 = vmatmul.mubr.f32.gmra.mrb[0].mxu0 %v2216
        %v2218 = vpop.f32.mrb[0].mxu0
        %v2219 = vadd.f32 %v1878, %v2218
        %v2220 = vpop.f32.mrb[0].mxu0
        %v2221 = vadd.f32 %v1880, %v2220
        %2222 = vmatprep.mubr.f32.mxu0 0.0
        %v2223 = vand.u32 %v1939, 4294901760
        %v2224 = vsub.f32 %v1939, %v2223
        %v2225 = vand.u32 %v2224, 4294901760
        %v2226 = vsub.f32 %v2224, %v2225
        %v2227 = vand.u32 %v2226, 4294901760
        %2228 = vmatmul.mubr.f32.gmra.mrb[0].mxu0 %v2227
        %v2229 = vpop.f32.mrb[0].mxu0
        %v2230 = vadd.f32 %v1885, %v2229
        %v2231 = vpop.f32.mrb[0].mxu0
        %v2232 = vadd.f32 %v1887, %v2231
        %2233 = vmatprep.mubr.f32.mxu0 0.0
        %v2234 = vand.u32 %v1942, 4294901760
        %v2235 = vsub.f32 %v1942, %v2234
        %v2236 = vand.u32 %v2235, 4294901760
        %v2237 = vsub.f32 %v2235, %v2236
        %v2238 = vand.u32 %v2237, 4294901760
        %2239 = vmatmul.mubr.f32.gmra.mrb[0].mxu0 %v2238
        %v2240 = vpop.f32.mrb[0].mxu0
        %v2241 = vadd.f32 %v1892, %v2240
        %v2242 = vpop.f32.mrb[0].mxu0
        %v2243 = vadd.f32 %v1894, %v2242
        %2244 = vmatprep.mubr.f32.mxu0 0.0
        %v2245 = vand.u32 %v1945, 4294901760
        %v2246 = vsub.f32 %v1945, %v2245
        %v2247 = vand.u32 %v2246, 4294901760
        %v2248 = vsub.f32 %v2246, %v2247
        %v2249 = vand.u32 %v2248, 4294901760
        %2250 = vmatmul.mubr.f32.gmra.mrb[0].mxu0 %v2249
        %v2251 = vpop.f32.mrb[0].mxu0
        %v2252 = vadd.f32 %v1899, %v2251
        %v2253 = vpop.f32.mrb[0].mxu0
        %v2254 = vadd.f32 %v1901, %v2253
        %2255 = vmatprep.mubr.f32.mxu0 0.0
        %v2256 = vand.u32 %v1948, 4294901760
        %v2257 = vsub.f32 %v1948, %v2256
        %v2258 = vand.u32 %v2257, 4294901760
        %v2259 = vsub.f32 %v2257, %v2258
        %v2260 = vand.u32 %v2259, 4294901760
        %2261 = vmatmul.mubr.f32.gmra.mrb[0].mxu0 %v2260
        %v2262 = vpop.f32.mrb[0].mxu0
        %v2263 = vadd.f32 %v1906, %v2262
        %v2264 = vpop.f32.mrb[0].mxu0
        %v2265 = vadd.f32 %v1908, %v2264
        %2266 = vmatprep.mubr.f32.mxu0 0.0
        %v2267 = vand.u32 %v1951, 4294901760
        %v2268 = vsub.f32 %v1951, %v2267
        %v2269 = vand.u32 %v2268, 4294901760
        %v2270 = vsub.f32 %v2268, %v2269
        %v2271 = vand.u32 %v2270, 4294901760
        %2272 = vmatmul.mubr.f32.gmra.mrb[0].mxu0 %v2271
        %v2273 = vpop.f32.mrb[0].mxu0
        %v2274 = vadd.f32 %v1913, %v2273
        %v2275 = vpop.f32.mrb[0].mxu0
        %v2276 = vadd.f32 %v1915, %v2275
        %2277 = vdwg.mxu0
        %2278 = vmatprep.subr.mxu0 0.0
        %v2279 = vand.u32 %v1954, 4294901760
        %v2280 = vsub.f32 %v1954, %v2279
        %v2281 = vand.u32 %v2280, 4294901760
        %v2282 = vsub.f32 %v2280, %v2281
        %v2283 = vand.u32 %v2282, 4294901760
        %2284 = vmatpush1.xpose.msra.mxu0 %v2283
        %2285 = vmatprep.subr.mxu0 0.0
        %v2286 = vand.u32 %v1957, 4294901760
        %v2287 = vsub.f32 %v1957, %v2286
        %v2288 = vand.u32 %v2287, 4294901760
        %v2289 = vsub.f32 %v2287, %v2288
        %v2290 = vand.u32 %v2289, 4294901760
        %2291 = vmatpush1.xpose.msra.mxu0 %v2290
        %2292 = vmatprep.subr.mxu0 0.0
        %v2293 = vand.u32 %v1960, 4294901760
        %v2294 = vsub.f32 %v1960, %v2293
        %v2295 = vand.u32 %v2294, 4294901760
        %v2296 = vsub.f32 %v2294, %v2295
        %v2297 = vand.u32 %v2296, 4294901760
        %2298 = vmatpush1.xpose.msra.mxu0 %v2297
        %2299 = vmatprep.subr.mxu0 0.0
        %v2300 = vand.u32 %v1963, 4294901760
        %v2301 = vsub.f32 %v1963, %v2300
        %v2302 = vand.u32 %v2301, 4294901760
        %v2303 = vsub.f32 %v2301, %v2302
        %v2304 = vand.u32 %v2303, 4294901760
        %2305 = vmatpush1.xpose.msra.mxu0 %v2304
        %2306 = vmatprep.subr.mxu0 0.0
        %v2307 = vand.u32 %v1966, 4294901760
        %v2308 = vsub.f32 %v1966, %v2307
        %v2309 = vand.u32 %v2308, 4294901760
        %v2310 = vsub.f32 %v2308, %v2309
        %v2311 = vand.u32 %v2310, 4294901760
        %2312 = vmatpush1.xpose.msra.mxu0 %v2311
        %2313 = vmatprep.subr.mxu0 0.0
        %v2314 = vand.u32 %v1969, 4294901760
        %v2315 = vsub.f32 %v1969, %v2314
        %v2316 = vand.u32 %v2315, 4294901760
        %v2317 = vsub.f32 %v2315, %v2316
        %v2318 = vand.u32 %v2317, 4294901760
        %2319 = vmatpush1.xpose.msra.mxu0 %v2318
        %2320 = vmatprep.subr.mxu0 0.0
        %v2321 = vand.u32 %v1972, 4294901760
        %v2322 = vsub.f32 %v1972, %v2321
        %v2323 = vand.u32 %v2322, 4294901760
        %v2324 = vsub.f32 %v2322, %v2323
        %v2325 = vand.u32 %v2324, 4294901760
        %2326 = vmatpush1.xpose.msra.mxu0 %v2325
        %2327 = vmatprep.subr.mxu0 0.0
        %v2328 = vand.u32 %v1975, 4294901760
        %v2329 = vsub.f32 %v1975, %v2328
        %v2330 = vand.u32 %v2329, 4294901760
        %v2331 = vsub.f32 %v2329, %v2330
        %v2332 = vand.u32 %v2331, 4294901760
        %2333 = vmatpush1.xpose.msra.mxu0 %v2332
        %2334 = vmatprep.subr.mxu0 0.0
        %v2335 = vand.u32 %v1978, 4294901760
        %v2336 = vsub.f32 %v1978, %v2335
        %v2337 = vand.u32 %v2336, 4294901760
        %v2338 = vsub.f32 %v2336, %v2337
        %v2339 = vand.u32 %v2338, 4294901760
        %2340 = vmatpush1.xpose.msra.mxu0 %v2339
        %2341 = vmatprep.subr.mxu0 0.0
        %v2342 = vand.u32 %v1981, 4294901760
        %v2343 = vsub.f32 %v1981, %v2342
        %v2344 = vand.u32 %v2343, 4294901760
        %v2345 = vsub.f32 %v2343, %v2344
        %v2346 = vand.u32 %v2345, 4294901760
        %2347 = vmatpush1.xpose.msra.mxu0 %v2346
        %2348 = vmatprep.subr.mxu0 0.0
        %v2349 = vand.u32 %v1984, 4294901760
        %v2350 = vsub.f32 %v1984, %v2349
        %v2351 = vand.u32 %v2350, 4294901760
        %v2352 = vsub.f32 %v2350, %v2351
        %v2353 = vand.u32 %v2352, 4294901760
        %2354 = vmatpush1.xpose.msra.mxu0 %v2353
        %2355 = vmatprep.subr.mxu0 0.0
        %v2356 = vand.u32 %v1987, 4294901760
        %v2357 = vsub.f32 %v1987, %v2356
        %v2358 = vand.u32 %v2357, 4294901760
        %v2359 = vsub.f32 %v2357, %v2358
        %v2360 = vand.u32 %v2359, 4294901760
        %2361 = vmatpush1.xpose.msra.mxu0 %v2360
        %2362 = vmatprep.subr.mxu0 0.0
        %v2363 = vand.u32 %v1990, 4294901760
        %v2364 = vsub.f32 %v1990, %v2363
        %v2365 = vand.u32 %v2364, 4294901760
        %v2366 = vsub.f32 %v2364, %v2365
        %v2367 = vand.u32 %v2366, 4294901760
        %2368 = vmatpush1.xpose.msra.mxu0 %v2367
        %2369 = vmatprep.subr.mxu0 0.0
        %v2370 = vand.u32 %v1993, 4294901760
        %v2371 = vsub.f32 %v1993, %v2370
        %v2372 = vand.u32 %v2371, 4294901760
        %v2373 = vsub.f32 %v2371, %v2372
        %v2374 = vand.u32 %v2373, 4294901760
        %2375 = vmatpush1.xpose.msra.mxu0 %v2374
        %2376 = vmatprep.subr.mxu0 0.0
        %v2377 = vand.u32 %v1996, 4294901760
        %v2378 = vsub.f32 %v1996, %v2377
        %v2379 = vand.u32 %v2378, 4294901760
        %v2380 = vsub.f32 %v2378, %v2379
        %v2381 = vand.u32 %v2380, 4294901760
        %2382 = vmatpush1.xpose.msra.mxu0 %v2381
        %2383 = vmatprep.subr.mxu0 0.0
        %v2384 = vand.u32 %v1999, 4294901760
        %v2385 = vsub.f32 %v1999, %v2384
        %v2386 = vand.u32 %v2385, 4294901760
        %v2387 = vsub.f32 %v2385, %v2386
        %v2388 = vand.u32 %v2387, 4294901760
        %2389 = vmatpush1.xpose.msra.mxu0 %v2388
        %2390 = vmatprep.subr.mxu0 0.0
        %v2391 = vand.u32 %v2002, 4294901760
        %v2392 = vsub.f32 %v2002, %v2391
        %v2393 = vand.u32 %v2392, 4294901760
        %v2394 = vsub.f32 %v2392, %v2393
        %v2395 = vand.u32 %v2394, 4294901760
        %2396 = vmatpush1.xpose.msra.mxu0 %v2395
        %2397 = vmatprep.subr.mxu0 0.0
        %v2398 = vand.u32 %v2005, 4294901760
        %v2399 = vsub.f32 %v2005, %v2398
        %v2400 = vand.u32 %v2399, 4294901760
        %v2401 = vsub.f32 %v2399, %v2400
        %v2402 = vand.u32 %v2401, 4294901760
        %2403 = vmatpush1.xpose.msra.mxu0 %v2402
        %2404 = vmatprep.subr.mxu0 0.0
        %v2405 = vand.u32 %v2008, 4294901760
        %v2406 = vsub.f32 %v2008, %v2405
        %v2407 = vand.u32 %v2406, 4294901760
        %v2408 = vsub.f32 %v2406, %v2407
        %v2409 = vand.u32 %v2408, 4294901760
        %2410 = vmatpush1.xpose.msra.mxu0 %v2409
        %2411 = vmatprep.subr.mxu0 0.0
        %v2412 = vand.u32 %v2011, 4294901760
        %v2413 = vsub.f32 %v2011, %v2412
        %v2414 = vand.u32 %v2413, 4294901760
        %v2415 = vsub.f32 %v2413, %v2414
        %v2416 = vand.u32 %v2415, 4294901760
        %2417 = vmatpush1.xpose.msra.mxu0 %v2416
        %2418 = vmatprep.subr.mxu0 0.0
        %v2419 = vand.u32 %v2014, 4294901760
        %v2420 = vsub.f32 %v2014, %v2419
        %v2421 = vand.u32 %v2420, 4294901760
        %v2422 = vsub.f32 %v2420, %v2421
        %v2423 = vand.u32 %v2422, 4294901760
        %2424 = vmatpush1.xpose.msra.mxu0 %v2423
        %2425 = vmatprep.subr.mxu0 0.0
        %v2426 = vand.u32 %v2017, 4294901760
        %v2427 = vsub.f32 %v2017, %v2426
        %v2428 = vand.u32 %v2427, 4294901760
        %v2429 = vsub.f32 %v2427, %v2428
        %v2430 = vand.u32 %v2429, 4294901760
        %2431 = vmatpush1.xpose.msra.mxu0 %v2430
        %2432 = vmatprep.subr.mxu0 0.0
        %v2433 = vand.u32 %v2020, 4294901760
        %v2434 = vsub.f32 %v2020, %v2433
        %v2435 = vand.u32 %v2434, 4294901760
        %v2436 = vsub.f32 %v2434, %v2435
        %v2437 = vand.u32 %v2436, 4294901760
        %2438 = vmatpush1.xpose.msra.mxu0 %v2437
        %2439 = vmatprep.subr.mxu0 0.0
        %v2440 = vand.u32 %v2023, 4294901760
        %v2441 = vsub.f32 %v2023, %v2440
        %v2442 = vand.u32 %v2441, 4294901760
        %v2443 = vsub.f32 %v2441, %v2442
        %v2444 = vand.u32 %v2443, 4294901760
        %2445 = vmatpush1.xpose.msra.mxu0 %v2444
        %2446 = vmatprep.subr.mxu0 0.0
        %v2447 = vand.u32 %v2026, 4294901760
        %v2448 = vsub.f32 %v2026, %v2447
        %v2449 = vand.u32 %v2448, 4294901760
        %v2450 = vsub.f32 %v2448, %v2449
        %v2451 = vand.u32 %v2450, 4294901760
        %2452 = vmatpush1.xpose.msra.mxu0 %v2451
        %2453 = vmatprep.subr.mxu0 0.0
        %v2454 = vand.u32 %v2029, 4294901760
        %v2455 = vsub.f32 %v2029, %v2454
        %v2456 = vand.u32 %v2455, 4294901760
        %v2457 = vsub.f32 %v2455, %v2456
        %v2458 = vand.u32 %v2457, 4294901760
        %2459 = vmatpush1.xpose.msra.mxu0 %v2458
        %2460 = vmatprep.subr.mxu0 0.0
        %v2461 = vand.u32 %v2032, 4294901760
        %v2462 = vsub.f32 %v2032, %v2461
        %v2463 = vand.u32 %v2462, 4294901760
        %v2464 = vsub.f32 %v2462, %v2463
        %v2465 = vand.u32 %v2464, 4294901760
        %2466 = vmatpush1.xpose.msra.mxu0 %v2465
        %2467 = vmatprep.subr.mxu0 0.0
        %v2468 = vand.u32 %v2035, 4294901760
        %v2469 = vsub.f32 %v2035, %v2468
        %v2470 = vand.u32 %v2469, 4294901760
        %v2471 = vsub.f32 %v2469, %v2470
        %v2472 = vand.u32 %v2471, 4294901760
        %2473 = vmatpush1.xpose.msra.mxu0 %v2472
        %2474 = vmatprep.subr.mxu0 0.0
        %v2475 = vand.u32 %v2038, 4294901760
        %v2476 = vsub.f32 %v2038, %v2475
        %v2477 = vand.u32 %v2476, 4294901760
        %v2478 = vsub.f32 %v2476, %v2477
        %v2479 = vand.u32 %v2478, 4294901760
        %2480 = vmatpush1.xpose.msra.mxu0 %v2479
        %2481 = vmatprep.subr.mxu0 0.0
        %v2482 = vand.u32 %v2041, 4294901760
        %v2483 = vsub.f32 %v2041, %v2482
        %v2484 = vand.u32 %v2483, 4294901760
        %v2485 = vsub.f32 %v2483, %v2484
        %v2486 = vand.u32 %v2485, 4294901760
        %2487 = vmatpush1.xpose.msra.mxu0 %v2486
        %2488 = vmatprep.subr.mxu0 0.0
        %v2489 = vand.u32 %v2044, 4294901760
        %v2490 = vsub.f32 %v2044, %v2489
        %v2491 = vand.u32 %v2490, 4294901760
        %v2492 = vsub.f32 %v2490, %v2491
        %v2493 = vand.u32 %v2492, 4294901760
        %2494 = vmatpush1.xpose.msra.mxu0 %v2493
        %2495 = vmatprep.subr.mxu0 0.0
        %v2496 = vand.u32 %v2047, 4294901760
        %v2497 = vsub.f32 %v2047, %v2496
        %v2498 = vand.u32 %v2497, 4294901760
        %v2499 = vsub.f32 %v2497, %v2498
        %v2500 = vand.u32 %v2499, 4294901760
        %2501 = vmatpush1.xpose.msra.mxu0 %v2500
        %2502 = vmatprep.mubr.f32.mxu0 0.0
        %v2503 = vand.u32 %v1918, 4294901760
        %2504 = vmatmul.mubr.f32.gmra.mrb[0].mxu0 %v2503
        %v2505 = vpop.f32.mrb[0].mxu0
        %v2506 = vadd.f32 %v2153, %v2505
        %v2507 = vpop.f32.mrb[0].mxu0
        %v2508 = vadd.f32 %v2155, %v2507
        %2509 = vmatprep.mubr.f32.mxu0 0.0
        %v2510 = vand.u32 %v1921, 4294901760
        %2511 = vmatmul.mubr.f32.gmra.mrb[0].mxu0 %v2510
        %v2512 = vpop.f32.mrb[0].mxu0
        %v2513 = vadd.f32 %v2164, %v2512
        %v2514 = vpop.f32.mrb[0].mxu0
        %v2515 = vadd.f32 %v2166, %v2514
        %2516 = vmatprep.mubr.f32.mxu0 0.0
        %v2517 = vand.u32 %v1924, 4294901760
        %2518 = vmatmul.mubr.f32.gmra.mrb[0].mxu0 %v2517
        %v2519 = vpop.f32.mrb[0].mxu0
        %v2520 = vadd.f32 %v2175, %v2519
        %v2521 = vpop.f32.mrb[0].mxu0
        %v2522 = vadd.f32 %v2177, %v2521
        %2523 = vmatprep.mubr.f32.mxu0 0.0
        %v2524 = vand.u32 %v1927, 4294901760
        %2525 = vmatmul.mubr.f32.gmra.mrb[0].mxu0 %v2524
        %v2526 = vpop.f32.mrb[0].mxu0
        %v2527 = vadd.f32 %v2186, %v2526
        %v2528 = vpop.f32.mrb[0].mxu0
        %v2529 = vadd.f32 %v2188, %v2528
        %2530 = vmatprep.mubr.f32.mxu0 0.0
        %v2531 = vand.u32 %v1930, 4294901760
        %2532 = vmatmul.mubr.f32.gmra.mrb[0].mxu0 %v2531
        %v2533 = vpop.f32.mrb[0].mxu0
        %v2534 = vadd.f32 %v2197, %v2533
        %v2535 = vpop.f32.mrb[0].mxu0
        %v2536 = vadd.f32 %v2199, %v2535
        %2537 = vmatprep.mubr.f32.mxu0 0.0
        %v2538 = vand.u32 %v1933, 4294901760
        %2539 = vmatmul.mubr.f32.gmra.mrb[0].mxu0 %v2538
        %v2540 = vpop.f32.mrb[0].mxu0
        %v2541 = vadd.f32 %v2208, %v2540
        %v2542 = vpop.f32.mrb[0].mxu0
        %v2543 = vadd.f32 %v2210, %v2542
        %2544 = vmatprep.mubr.f32.mxu0 0.0
        %v2545 = vand.u32 %v1936, 4294901760
        %2546 = vmatmul.mubr.f32.gmra.mrb[0].mxu0 %v2545
        %v2547 = vpop.f32.mrb[0].mxu0
        %v2548 = vadd.f32 %v2219, %v2547
        %v2549 = vpop.f32.mrb[0].mxu0
        %v2550 = vadd.f32 %v2221, %v2549
        %2551 = vmatprep.mubr.f32.mxu0 0.0
        %v2552 = vand.u32 %v1939, 4294901760
        %2553 = vmatmul.mubr.f32.gmra.mrb[0].mxu0 %v2552
        %v2554 = vpop.f32.mrb[0].mxu0
        %v2555 = vadd.f32 %v2230, %v2554
        %v2556 = vpop.f32.mrb[0].mxu0
        %v2557 = vadd.f32 %v2232, %v2556
        %2558 = vmatprep.mubr.f32.mxu0 0.0
        %v2559 = vand.u32 %v1942, 4294901760
        %2560 = vmatmul.mubr.f32.gmra.mrb[0].mxu0 %v2559
        %v2561 = vpop.f32.mrb[0].mxu0
        %v2562 = vadd.f32 %v2241, %v2561
        %v2563 = vpop.f32.mrb[0].mxu0
        %v2564 = vadd.f32 %v2243, %v2563
        %2565 = vmatprep.mubr.f32.mxu0 0.0
        %v2566 = vand.u32 %v1945, 4294901760
        %2567 = vmatmul.mubr.f32.gmra.mrb[0].mxu0 %v2566
        %v2568 = vpop.f32.mrb[0].mxu0
        %v2569 = vadd.f32 %v2252, %v2568
        %v2570 = vpop.f32.mrb[0].mxu0
        %v2571 = vadd.f32 %v2254, %v2570
        %2572 = vmatprep.mubr.f32.mxu0 0.0
        %v2573 = vand.u32 %v1948, 4294901760
        %2574 = vmatmul.mubr.f32.gmra.mrb[0].mxu0 %v2573
        %v2575 = vpop.f32.mrb[0].mxu0
        %v2576 = vadd.f32 %v2263, %v2575
        %v2577 = vpop.f32.mrb[0].mxu0
        %v2578 = vadd.f32 %v2265, %v2577
        %2579 = vmatprep.mubr.f32.mxu0 0.0
        %v2580 = vand.u32 %v1951, 4294901760
        %2581 = vmatmul.mubr.f32.gmra.mrb[0].mxu0 %v2580
        %v2582 = vpop.f32.mrb[0].mxu0
        %v2583 = vadd.f32 %v2274, %v2582
        %v2584 = vpop.f32.mrb[0].mxu0
        %v2585 = vadd.f32 %v2276, %v2584
        %2586 = vdwg.mxu0
        %2587 = vmatprep.subr.mxu0 0.0
        %v2588 = vand.u32 %v1954, 4294901760
        %v2589 = vsub.f32 %v1954, %v2588
        %2590 = vmatpush1.xpose.msra.mxu0 %v2589
        %2591 = vmatprep.subr.mxu0 0.0
        %v2592 = vand.u32 %v1957, 4294901760
        %v2593 = vsub.f32 %v1957, %v2592
        %2594 = vmatpush1.xpose.msra.mxu0 %v2593
        %2595 = vmatprep.subr.mxu0 0.0
        %v2596 = vand.u32 %v1960, 4294901760
        %v2597 = vsub.f32 %v1960, %v2596
        %2598 = vmatpush1.xpose.msra.mxu0 %v2597
        %2599 = vmatprep.subr.mxu0 0.0
        %v2600 = vand.u32 %v1963, 4294901760
        %v2601 = vsub.f32 %v1963, %v2600
        %2602 = vmatpush1.xpose.msra.mxu0 %v2601
        %2603 = vmatprep.subr.mxu0 0.0
        %v2604 = vand.u32 %v1966, 4294901760
        %v2605 = vsub.f32 %v1966, %v2604
        %2606 = vmatpush1.xpose.msra.mxu0 %v2605
        %2607 = vmatprep.subr.mxu0 0.0
        %v2608 = vand.u32 %v1969, 4294901760
        %v2609 = vsub.f32 %v1969, %v2608
        %2610 = vmatpush1.xpose.msra.mxu0 %v2609
        %2611 = vmatprep.subr.mxu0 0.0
        %v2612 = vand.u32 %v1972, 4294901760
        %v2613 = vsub.f32 %v1972, %v2612
        %2614 = vmatpush1.xpose.msra.mxu0 %v2613
        %2615 = vmatprep.subr.mxu0 0.0
        %v2616 = vand.u32 %v1975, 4294901760
        %v2617 = vsub.f32 %v1975, %v2616
        %2618 = vmatpush1.xpose.msra.mxu0 %v2617
        %2619 = vmatprep.subr.mxu0 0.0
        %v2620 = vand.u32 %v1978, 4294901760
        %v2621 = vsub.f32 %v1978, %v2620
        %2622 = vmatpush1.xpose.msra.mxu0 %v2621
        %2623 = vmatprep.subr.mxu0 0.0
        %v2624 = vand.u32 %v1981, 4294901760
        %v2625 = vsub.f32 %v1981, %v2624
        %2626 = vmatpush1.xpose.msra.mxu0 %v2625
        %2627 = vmatprep.subr.mxu0 0.0
        %v2628 = vand.u32 %v1984, 4294901760
        %v2629 = vsub.f32 %v1984, %v2628
        %2630 = vmatpush1.xpose.msra.mxu0 %v2629
        %2631 = vmatprep.subr.mxu0 0.0
        %v2632 = vand.u32 %v1987, 4294901760
        %v2633 = vsub.f32 %v1987, %v2632
        %2634 = vmatpush1.xpose.msra.mxu0 %v2633
        %2635 = vmatprep.subr.mxu0 0.0
        %v2636 = vand.u32 %v1990, 4294901760
        %v2637 = vsub.f32 %v1990, %v2636
        %2638 = vmatpush1.xpose.msra.mxu0 %v2637
        %2639 = vmatprep.subr.mxu0 0.0
        %v2640 = vand.u32 %v1993, 4294901760
        %v2641 = vsub.f32 %v1993, %v2640
        %2642 = vmatpush1.xpose.msra.mxu0 %v2641
        %2643 = vmatprep.subr.mxu0 0.0
        %v2644 = vand.u32 %v1996, 4294901760
        %v2645 = vsub.f32 %v1996, %v2644
        %2646 = vmatpush1.xpose.msra.mxu0 %v2645
        %2647 = vmatprep.subr.mxu0 0.0
        %v2648 = vand.u32 %v1999, 4294901760
        %v2649 = vsub.f32 %v1999, %v2648
        %2650 = vmatpush1.xpose.msra.mxu0 %v2649
        %2651 = vmatprep.subr.mxu0 0.0
        %v2652 = vand.u32 %v2002, 4294901760
        %v2653 = vsub.f32 %v2002, %v2652
        %2654 = vmatpush1.xpose.msra.mxu0 %v2653
        %2655 = vmatprep.subr.mxu0 0.0
        %v2656 = vand.u32 %v2005, 4294901760
        %v2657 = vsub.f32 %v2005, %v2656
        %2658 = vmatpush1.xpose.msra.mxu0 %v2657
        %2659 = vmatprep.subr.mxu0 0.0
        %v2660 = vand.u32 %v2008, 4294901760
        %v2661 = vsub.f32 %v2008, %v2660
        %2662 = vmatpush1.xpose.msra.mxu0 %v2661
        %2663 = vmatprep.subr.mxu0 0.0
        %v2664 = vand.u32 %v2011, 4294901760
        %v2665 = vsub.f32 %v2011, %v2664
        %2666 = vmatpush1.xpose.msra.mxu0 %v2665
        %2667 = vmatprep.subr.mxu0 0.0
        %v2668 = vand.u32 %v2014, 4294901760
        %v2669 = vsub.f32 %v2014, %v2668
        %2670 = vmatpush1.xpose.msra.mxu0 %v2669
        %2671 = vmatprep.subr.mxu0 0.0
        %v2672 = vand.u32 %v2017, 4294901760
        %v2673 = vsub.f32 %v2017, %v2672
        %2674 = vmatpush1.xpose.msra.mxu0 %v2673
        %2675 = vmatprep.subr.mxu0 0.0
        %v2676 = vand.u32 %v2020, 4294901760
        %v2677 = vsub.f32 %v2020, %v2676
        %2678 = vmatpush1.xpose.msra.mxu0 %v2677
        %2679 = vmatprep.subr.mxu0 0.0
        %v2680 = vand.u32 %v2023, 4294901760
        %v2681 = vsub.f32 %v2023, %v2680
        %2682 = vmatpush1.xpose.msra.mxu0 %v2681
        %2683 = vmatprep.subr.mxu0 0.0
        %v2684 = vand.u32 %v2026, 4294901760
        %v2685 = vsub.f32 %v2026, %v2684
        %2686 = vmatpush1.xpose.msra.mxu0 %v2685
        %2687 = vmatprep.subr.mxu0 0.0
        %v2688 = vand.u32 %v2029, 4294901760
        %v2689 = vsub.f32 %v2029, %v2688
        %2690 = vmatpush1.xpose.msra.mxu0 %v2689
        %2691 = vmatprep.subr.mxu0 0.0
        %v2692 = vand.u32 %v2032, 4294901760
        %v2693 = vsub.f32 %v2032, %v2692
        %2694 = vmatpush1.xpose.msra.mxu0 %v2693
        %2695 = vmatprep.subr.mxu0 0.0
        %v2696 = vand.u32 %v2035, 4294901760
        %v2697 = vsub.f32 %v2035, %v2696
        %2698 = vmatpush1.xpose.msra.mxu0 %v2697
        %2699 = vmatprep.subr.mxu0 0.0
        %v2700 = vand.u32 %v2038, 4294901760
        %v2701 = vsub.f32 %v2038, %v2700
        %2702 = vmatpush1.xpose.msra.mxu0 %v2701
        %2703 = vmatprep.subr.mxu0 0.0
        %v2704 = vand.u32 %v2041, 4294901760
        %v2705 = vsub.f32 %v2041, %v2704
        %2706 = vmatpush1.xpose.msra.mxu0 %v2705
        %2707 = vmatprep.subr.mxu0 0.0
        %v2708 = vand.u32 %v2044, 4294901760
        %v2709 = vsub.f32 %v2044, %v2708
        %2710 = vmatpush1.xpose.msra.mxu0 %v2709
        %2711 = vmatprep.subr.mxu0 0.0
        %v2712 = vand.u32 %v2047, 4294901760
        %v2713 = vsub.f32 %v2047, %v2712
        %2714 = vmatpush1.xpose.msra.mxu0 %v2713
        %2715 = vmatprep.mubr.f32.mxu0 0.0
        %v2716 = vand.u32 %v1918, 4294901760
        %v2717 = vsub.f32 %v1918, %v2716
        %2718 = vmatmul.mubr.f32.gmra.mrb[0].mxu0 %v2717
        %v2719 = vpop.f32.mrb[0].mxu0
        %v2720 = vadd.f32 %v2506, %v2719
        %v2721 = vpop.f32.mrb[0].mxu0
        %v2722 = vadd.f32 %v2508, %v2721
        %2723 = vmatprep.mubr.f32.mxu0 0.0
        %v2724 = vand.u32 %v1921, 4294901760
        %v2725 = vsub.f32 %v1921, %v2724
        %2726 = vmatmul.mubr.f32.gmra.mrb[0].mxu0 %v2725
        %v2727 = vpop.f32.mrb[0].mxu0
        %v2728 = vadd.f32 %v2513, %v2727
        %v2729 = vpop.f32.mrb[0].mxu0
        %v2730 = vadd.f32 %v2515, %v2729
        %2731 = vmatprep.mubr.f32.mxu0 0.0
        %v2732 = vand.u32 %v1924, 4294901760
        %v2733 = vsub.f32 %v1924, %v2732
        %2734 = vmatmul.mubr.f32.gmra.mrb[0].mxu0 %v2733
        %v2735 = vpop.f32.mrb[0].mxu0
        %v2736 = vadd.f32 %v2520, %v2735
        %v2737 = vpop.f32.mrb[0].mxu0
        %v2738 = vadd.f32 %v2522, %v2737
        %2739 = vmatprep.mubr.f32.mxu0 0.0
        %v2740 = vand.u32 %v1927, 4294901760
        %v2741 = vsub.f32 %v1927, %v2740
        %2742 = vmatmul.mubr.f32.gmra.mrb[0].mxu0 %v2741
        %v2743 = vpop.f32.mrb[0].mxu0
        %v2744 = vadd.f32 %v2527, %v2743
        %v2745 = vpop.f32.mrb[0].mxu0
        %v2746 = vadd.f32 %v2529, %v2745
        %2747 = vmatprep.mubr.f32.mxu0 0.0
        %v2748 = vand.u32 %v1930, 4294901760
        %v2749 = vsub.f32 %v1930, %v2748
        %2750 = vmatmul.mubr.f32.gmra.mrb[0].mxu0 %v2749
        %v2751 = vpop.f32.mrb[0].mxu0
        %v2752 = vadd.f32 %v2534, %v2751
        %v2753 = vpop.f32.mrb[0].mxu0
        %v2754 = vadd.f32 %v2536, %v2753
        %2755 = vmatprep.mubr.f32.mxu0 0.0
        %v2756 = vand.u32 %v1933, 4294901760
        %v2757 = vsub.f32 %v1933, %v2756
        %2758 = vmatmul.mubr.f32.gmra.mrb[0].mxu0 %v2757
        %v2759 = vpop.f32.mrb[0].mxu0
        %v2760 = vadd.f32 %v2541, %v2759
        %v2761 = vpop.f32.mrb[0].mxu0
        %v2762 = vadd.f32 %v2543, %v2761
        %2763 = vmatprep.mubr.f32.mxu0 0.0
        %v2764 = vand.u32 %v1936, 4294901760
        %v2765 = vsub.f32 %v1936, %v2764
        %2766 = vmatmul.mubr.f32.gmra.mrb[0].mxu0 %v2765
        %v2767 = vpop.f32.mrb[0].mxu0
        %v2768 = vadd.f32 %v2548, %v2767
        %v2769 = vpop.f32.mrb[0].mxu0
        %v2770 = vadd.f32 %v2550, %v2769
        %2771 = vmatprep.mubr.f32.mxu0 0.0
        %v2772 = vand.u32 %v1939, 4294901760
        %v2773 = vsub.f32 %v1939, %v2772
        %2774 = vmatmul.mubr.f32.gmra.mrb[0].mxu0 %v2773
        %v2775 = vpop.f32.mrb[0].mxu0
        %v2776 = vadd.f32 %v2555, %v2775
        %v2777 = vpop.f32.mrb[0].mxu0
        %v2778 = vadd.f32 %v2557, %v2777
        %2779 = vmatprep.mubr.f32.mxu0 0.0
        %v2780 = vand.u32 %v1942, 4294901760
        %v2781 = vsub.f32 %v1942, %v2780
        %2782 = vmatmul.mubr.f32.gmra.mrb[0].mxu0 %v2781
        %v2783 = vpop.f32.mrb[0].mxu0
        %v2784 = vadd.f32 %v2562, %v2783
        %v2785 = vpop.f32.mrb[0].mxu0
        %v2786 = vadd.f32 %v2564, %v2785
        %2787 = vmatprep.mubr.f32.mxu0 0.0
        %v2788 = vand.u32 %v1945, 4294901760
        %v2789 = vsub.f32 %v1945, %v2788
        %2790 = vmatmul.mubr.f32.gmra.mrb[0].mxu0 %v2789
        %v2791 = vpop.f32.mrb[0].mxu0
        %v2792 = vadd.f32 %v2569, %v2791
        %v2793 = vpop.f32.mrb[0].mxu0
        %v2794 = vadd.f32 %v2571, %v2793
        %2795 = vmatprep.mubr.f32.mxu0 0.0
        %v2796 = vand.u32 %v1948, 4294901760
        %v2797 = vsub.f32 %v1948, %v2796
        %2798 = vmatmul.mubr.f32.gmra.mrb[0].mxu0 %v2797
        %v2799 = vpop.f32.mrb[0].mxu0
        %v2800 = vadd.f32 %v2576, %v2799
        %v2801 = vpop.f32.mrb[0].mxu0
        %v2802 = vadd.f32 %v2578, %v2801
        %2803 = vmatprep.mubr.f32.mxu0 0.0
        %v2804 = vand.u32 %v1951, 4294901760
        %v2805 = vsub.f32 %v1951, %v2804
        %2806 = vmatmul.mubr.f32.gmra.mrb[0].mxu0 %v2805
        %v2807 = vpop.f32.mrb[0].mxu0
        %v2808 = vadd.f32 %v2583, %v2807
        %v2809 = vpop.f32.mrb[0].mxu0
        %v2810 = vadd.f32 %v2585, %v2809
        %2811 = vdwg.mxu0
        %2812 = vmatprep.subr.mxu0 0.0
        %v2813 = vand.u32 %v1954, 4294901760
        %2814 = vmatpush1.xpose.msra.mxu0 %v2813
        %2815 = vmatprep.subr.mxu0 0.0
        %v2816 = vand.u32 %v1957, 4294901760
        %2817 = vmatpush1.xpose.msra.mxu0 %v2816
        %2818 = vmatprep.subr.mxu0 0.0
        %v2819 = vand.u32 %v1960, 4294901760
        %2820 = vmatpush1.xpose.msra.mxu0 %v2819
        %2821 = vmatprep.subr.mxu0 0.0
        %v2822 = vand.u32 %v1963, 4294901760
        %2823 = vmatpush1.xpose.msra.mxu0 %v2822
        %2824 = vmatprep.subr.mxu0 0.0
        %v2825 = vand.u32 %v1966, 4294901760
        %2826 = vmatpush1.xpose.msra.mxu0 %v2825
        %2827 = vmatprep.subr.mxu0 0.0
        %v2828 = vand.u32 %v1969, 4294901760
        %2829 = vmatpush1.xpose.msra.mxu0 %v2828
        %2830 = vmatprep.subr.mxu0 0.0
        %v2831 = vand.u32 %v1972, 4294901760
        %2832 = vmatpush1.xpose.msra.mxu0 %v2831
        %2833 = vmatprep.subr.mxu0 0.0
        %v2834 = vand.u32 %v1975, 4294901760
        %2835 = vmatpush1.xpose.msra.mxu0 %v2834
        %2836 = vmatprep.subr.mxu0 0.0
        %v2837 = vand.u32 %v1978, 4294901760
        %2838 = vmatpush1.xpose.msra.mxu0 %v2837
        %2839 = vmatprep.subr.mxu0 0.0
        %v2840 = vand.u32 %v1981, 4294901760
        %2841 = vmatpush1.xpose.msra.mxu0 %v2840
        %2842 = vmatprep.subr.mxu0 0.0
        %v2843 = vand.u32 %v1984, 4294901760
        %2844 = vmatpush1.xpose.msra.mxu0 %v2843
        %2845 = vmatprep.subr.mxu0 0.0
        %v2846 = vand.u32 %v1987, 4294901760
        %2847 = vmatpush1.xpose.msra.mxu0 %v2846
        %2848 = vmatprep.subr.mxu0 0.0
        %v2849 = vand.u32 %v1990, 4294901760
        %2850 = vmatpush1.xpose.msra.mxu0 %v2849
        %2851 = vmatprep.subr.mxu0 0.0
        %v2852 = vand.u32 %v1993, 4294901760
        %2853 = vmatpush1.xpose.msra.mxu0 %v2852
        %2854 = vmatprep.subr.mxu0 0.0
        %v2855 = vand.u32 %v1996, 4294901760
        %2856 = vmatpush1.xpose.msra.mxu0 %v2855
        %2857 = vmatprep.subr.mxu0 0.0
        %v2858 = vand.u32 %v1999, 4294901760
        %2859 = vmatpush1.xpose.msra.mxu0 %v2858
        %2860 = vmatprep.subr.mxu0 0.0
        %v2861 = vand.u32 %v2002, 4294901760
        %2862 = vmatpush1.xpose.msra.mxu0 %v2861
        %2863 = vmatprep.subr.mxu0 0.0
        %v2864 = vand.u32 %v2005, 4294901760
        %2865 = vmatpush1.xpose.msra.mxu0 %v2864
        %2866 = vmatprep.subr.mxu0 0.0
        %v2867 = vand.u32 %v2008, 4294901760
        %2868 = vmatpush1.xpose.msra.mxu0 %v2867
        %2869 = vmatprep.subr.mxu0 0.0
        %v2870 = vand.u32 %v2011, 4294901760
        %2871 = vmatpush1.xpose.msra.mxu0 %v2870
        %2872 = vmatprep.subr.mxu0 0.0
        %v2873 = vand.u32 %v2014, 4294901760
        %2874 = vmatpush1.xpose.msra.mxu0 %v2873
        %2875 = vmatprep.subr.mxu0 0.0
        %v2876 = vand.u32 %v2017, 4294901760
        %2877 = vmatpush1.xpose.msra.mxu0 %v2876
        %2878 = vmatprep.subr.mxu0 0.0
        %v2879 = vand.u32 %v2020, 4294901760
        %2880 = vmatpush1.xpose.msra.mxu0 %v2879
        %2881 = vmatprep.subr.mxu0 0.0
        %v2882 = vand.u32 %v2023, 4294901760
        %2883 = vmatpush1.xpose.msra.mxu0 %v2882
        %2884 = vmatprep.subr.mxu0 0.0
        %v2885 = vand.u32 %v2026, 4294901760
        %2886 = vmatpush1.xpose.msra.mxu0 %v2885
        %2887 = vmatprep.subr.mxu0 0.0
        %v2888 = vand.u32 %v2029, 4294901760
        %2889 = vmatpush1.xpose.msra.mxu0 %v2888
        %2890 = vmatprep.subr.mxu0 0.0
        %v2891 = vand.u32 %v2032, 4294901760
        %2892 = vmatpush1.xpose.msra.mxu0 %v2891
        %2893 = vmatprep.subr.mxu0 0.0
        %v2894 = vand.u32 %v2035, 4294901760
        %2895 = vmatpush1.xpose.msra.mxu0 %v2894
        %2896 = vmatprep.subr.mxu0 0.0
        %v2897 = vand.u32 %v2038, 4294901760
        %2898 = vmatpush1.xpose.msra.mxu0 %v2897
        %2899 = vmatprep.subr.mxu0 0.0
        %v2900 = vand.u32 %v2041, 4294901760
        %2901 = vmatpush1.xpose.msra.mxu0 %v2900
        %2902 = vmatprep.subr.mxu0 0.0
        %v2903 = vand.u32 %v2044, 4294901760
        %2904 = vmatpush1.xpose.msra.mxu0 %v2903
        %2905 = vmatprep.subr.mxu0 0.0
        %v2906 = vand.u32 %v2047, 4294901760
        %2907 = vmatpush1.xpose.msra.mxu0 %v2906
        %2908 = vmatprep.mubr.f32.mxu0 0.0
        %v2909 = vand.u32 %v1918, 4294901760
        %v2910 = vsub.f32 %v1918, %v2909
        %v2911 = vand.u32 %v2910, 4294901760
        %2912 = vmatmul.mubr.f32.gmra.mrb[0].mxu0 %v2911
        %v2913 = vpop.f32.mrb[0].mxu0
        %v2914 = vadd.f32 %v2720, %v2913
        %v2915 = vpop.f32.mrb[0].mxu0
        %v2916 = vadd.f32 %v2722, %v2915
        %2917 = vmatprep.mubr.f32.mxu0 0.0
        %v2918 = vand.u32 %v1921, 4294901760
        %v2919 = vsub.f32 %v1921, %v2918
        %v2920 = vand.u32 %v2919, 4294901760
        %2921 = vmatmul.mubr.f32.gmra.mrb[0].mxu0 %v2920
        %v2922 = vpop.f32.mrb[0].mxu0
        %v2923 = vadd.f32 %v2728, %v2922
        %v2924 = vpop.f32.mrb[0].mxu0
        %v2925 = vadd.f32 %v2730, %v2924
        %2926 = vmatprep.mubr.f32.mxu0 0.0
        %v2927 = vand.u32 %v1924, 4294901760
        %v2928 = vsub.f32 %v1924, %v2927
        %v2929 = vand.u32 %v2928, 4294901760
        %2930 = vmatmul.mubr.f32.gmra.mrb[0].mxu0 %v2929
        %v2931 = vpop.f32.mrb[0].mxu0
        %v2932 = vadd.f32 %v2736, %v2931
        %v2933 = vpop.f32.mrb[0].mxu0
        %v2934 = vadd.f32 %v2738, %v2933
        %2935 = vmatprep.mubr.f32.mxu0 0.0
        %v2936 = vand.u32 %v1927, 4294901760
        %v2937 = vsub.f32 %v1927, %v2936
        %v2938 = vand.u32 %v2937, 4294901760
        %2939 = vmatmul.mubr.f32.gmra.mrb[0].mxu0 %v2938
        %v2940 = vpop.f32.mrb[0].mxu0
        %v2941 = vadd.f32 %v2744, %v2940
        %v2942 = vpop.f32.mrb[0].mxu0
        %v2943 = vadd.f32 %v2746, %v2942
        %2944 = vmatprep.mubr.f32.mxu0 0.0
        %v2945 = vand.u32 %v1930, 4294901760
        %v2946 = vsub.f32 %v1930, %v2945
        %v2947 = vand.u32 %v2946, 4294901760
        %2948 = vmatmul.mubr.f32.gmra.mrb[0].mxu0 %v2947
        %v2949 = vpop.f32.mrb[0].mxu0
        %v2950 = vadd.f32 %v2752, %v2949
        %v2951 = vpop.f32.mrb[0].mxu0
        %v2952 = vadd.f32 %v2754, %v2951
        %2953 = vmatprep.mubr.f32.mxu0 0.0
        %v2954 = vand.u32 %v1933, 4294901760
        %v2955 = vsub.f32 %v1933, %v2954
        %v2956 = vand.u32 %v2955, 4294901760
        %2957 = vmatmul.mubr.f32.gmra.mrb[0].mxu0 %v2956
        %v2958 = vpop.f32.mrb[0].mxu0
        %v2959 = vadd.f32 %v2760, %v2958
        %v2960 = vpop.f32.mrb[0].mxu0
        %v2961 = vadd.f32 %v2762, %v2960
        %2962 = vmatprep.mubr.f32.mxu0 0.0
        %v2963 = vand.u32 %v1936, 4294901760
        %v2964 = vsub.f32 %v1936, %v2963
        %v2965 = vand.u32 %v2964, 4294901760
        %2966 = vmatmul.mubr.f32.gmra.mrb[0].mxu0 %v2965
        %v2967 = vpop.f32.mrb[0].mxu0
        %v2968 = vadd.f32 %v2768, %v2967
        %v2969 = vpop.f32.mrb[0].mxu0
        %v2970 = vadd.f32 %v2770, %v2969
        %2971 = vmatprep.mubr.f32.mxu0 0.0
        %v2972 = vand.u32 %v1939, 4294901760
        %v2973 = vsub.f32 %v1939, %v2972
        %v2974 = vand.u32 %v2973, 4294901760
        %2975 = vmatmul.mubr.f32.gmra.mrb[0].mxu0 %v2974
        %v2976 = vpop.f32.mrb[0].mxu0
        %v2977 = vadd.f32 %v2776, %v2976
        %v2978 = vpop.f32.mrb[0].mxu0
        %v2979 = vadd.f32 %v2778, %v2978
        %2980 = vmatprep.mubr.f32.mxu0 0.0
        %v2981 = vand.u32 %v1942, 4294901760
        %v2982 = vsub.f32 %v1942, %v2981
        %v2983 = vand.u32 %v2982, 4294901760
        %2984 = vmatmul.mubr.f32.gmra.mrb[0].mxu0 %v2983
        %v2985 = vpop.f32.mrb[0].mxu0
        %v2986 = vadd.f32 %v2784, %v2985
        %v2987 = vpop.f32.mrb[0].mxu0
        %v2988 = vadd.f32 %v2786, %v2987
        %2989 = vmatprep.mubr.f32.mxu0 0.0
        %v2990 = vand.u32 %v1945, 4294901760
        %v2991 = vsub.f32 %v1945, %v2990
        %v2992 = vand.u32 %v2991, 4294901760
        %2993 = vmatmul.mubr.f32.gmra.mrb[0].mxu0 %v2992
        %v2994 = vpop.f32.mrb[0].mxu0
        %v2995 = vadd.f32 %v2792, %v2994
        %v2996 = vpop.f32.mrb[0].mxu0
        %v2997 = vadd.f32 %v2794, %v2996
        %2998 = vmatprep.mubr.f32.mxu0 0.0
        %v2999 = vand.u32 %v1948, 4294901760
        %v3000 = vsub.f32 %v1948, %v2999
        %v3001 = vand.u32 %v3000, 4294901760
        %3002 = vmatmul.mubr.f32.gmra.mrb[0].mxu0 %v3001
        %v3003 = vpop.f32.mrb[0].mxu0
        %v3004 = vadd.f32 %v2800, %v3003
        %v3005 = vpop.f32.mrb[0].mxu0
        %v3006 = vadd.f32 %v2802, %v3005
        %3007 = vmatprep.mubr.f32.mxu0 0.0
        %v3008 = vand.u32 %v1951, 4294901760
        %v3009 = vsub.f32 %v1951, %v3008
        %v3010 = vand.u32 %v3009, 4294901760
        %3011 = vmatmul.mubr.f32.gmra.mrb[0].mxu0 %v3010
        %v3012 = vpop.f32.mrb[0].mxu0
        %v3013 = vadd.f32 %v2808, %v3012
        %v3014 = vpop.f32.mrb[0].mxu0
        %v3015 = vadd.f32 %v2810, %v3014
        %3016 = vdwg.mxu0
        %3017 = vmatprep.subr.mxu0 0.0
        %v3018 = vand.u32 %v1954, 4294901760
        %v3019 = vsub.f32 %v1954, %v3018
        %v3020 = vand.u32 %v3019, 4294901760
        %3021 = vmatpush1.xpose.msra.mxu0 %v3020
        %3022 = vmatprep.subr.mxu0 0.0
        %v3023 = vand.u32 %v1957, 4294901760
        %v3024 = vsub.f32 %v1957, %v3023
        %v3025 = vand.u32 %v3024, 4294901760
        %3026 = vmatpush1.xpose.msra.mxu0 %v3025
        %3027 = vmatprep.subr.mxu0 0.0
        %v3028 = vand.u32 %v1960, 4294901760
        %v3029 = vsub.f32 %v1960, %v3028
        %v3030 = vand.u32 %v3029, 4294901760
        %3031 = vmatpush1.xpose.msra.mxu0 %v3030
        %3032 = vmatprep.subr.mxu0 0.0
        %v3033 = vand.u32 %v1963, 4294901760
        %v3034 = vsub.f32 %v1963, %v3033
        %v3035 = vand.u32 %v3034, 4294901760
        %3036 = vmatpush1.xpose.msra.mxu0 %v3035
        %3037 = vmatprep.subr.mxu0 0.0
        %v3038 = vand.u32 %v1966, 4294901760
        %v3039 = vsub.f32 %v1966, %v3038
        %v3040 = vand.u32 %v3039, 4294901760
        %3041 = vmatpush1.xpose.msra.mxu0 %v3040
        %3042 = vmatprep.subr.mxu0 0.0
        %v3043 = vand.u32 %v1969, 4294901760
        %v3044 = vsub.f32 %v1969, %v3043
        %v3045 = vand.u32 %v3044, 4294901760
        %3046 = vmatpush1.xpose.msra.mxu0 %v3045
        %3047 = vmatprep.subr.mxu0 0.0
        %v3048 = vand.u32 %v1972, 4294901760
        %v3049 = vsub.f32 %v1972, %v3048
        %v3050 = vand.u32 %v3049, 4294901760
        %3051 = vmatpush1.xpose.msra.mxu0 %v3050
        %3052 = vmatprep.subr.mxu0 0.0
        %v3053 = vand.u32 %v1975, 4294901760
        %v3054 = vsub.f32 %v1975, %v3053
        %v3055 = vand.u32 %v3054, 4294901760
        %3056 = vmatpush1.xpose.msra.mxu0 %v3055
        %3057 = vmatprep.subr.mxu0 0.0
        %v3058 = vand.u32 %v1978, 4294901760
        %v3059 = vsub.f32 %v1978, %v3058
        %v3060 = vand.u32 %v3059, 4294901760
        %3061 = vmatpush1.xpose.msra.mxu0 %v3060
        %3062 = vmatprep.subr.mxu0 0.0
        %v3063 = vand.u32 %v1981, 4294901760
        %v3064 = vsub.f32 %v1981, %v3063
        %v3065 = vand.u32 %v3064, 4294901760
        %3066 = vmatpush1.xpose.msra.mxu0 %v3065
        %3067 = vmatprep.subr.mxu0 0.0
        %v3068 = vand.u32 %v1984, 4294901760
        %v3069 = vsub.f32 %v1984, %v3068
        %v3070 = vand.u32 %v3069, 4294901760
        %3071 = vmatpush1.xpose.msra.mxu0 %v3070
        %3072 = vmatprep.subr.mxu0 0.0
        %v3073 = vand.u32 %v1987, 4294901760
        %v3074 = vsub.f32 %v1987, %v3073
        %v3075 = vand.u32 %v3074, 4294901760
        %3076 = vmatpush1.xpose.msra.mxu0 %v3075
        %3077 = vmatprep.subr.mxu0 0.0
        %v3078 = vand.u32 %v1990, 4294901760
        %v3079 = vsub.f32 %v1990, %v3078
        %v3080 = vand.u32 %v3079, 4294901760
        %3081 = vmatpush1.xpose.msra.mxu0 %v3080
        %3082 = vmatprep.subr.mxu0 0.0
        %v3083 = vand.u32 %v1993, 4294901760
        %v3084 = vsub.f32 %v1993, %v3083
        %v3085 = vand.u32 %v3084, 4294901760
        %3086 = vmatpush1.xpose.msra.mxu0 %v3085
        %3087 = vmatprep.subr.mxu0 0.0
        %v3088 = vand.u32 %v1996, 4294901760
        %v3089 = vsub.f32 %v1996, %v3088
        %v3090 = vand.u32 %v3089, 4294901760
        %3091 = vmatpush1.xpose.msra.mxu0 %v3090
        %3092 = vmatprep.subr.mxu0 0.0
        %v3093 = vand.u32 %v1999, 4294901760
        %v3094 = vsub.f32 %v1999, %v3093
        %v3095 = vand.u32 %v3094, 4294901760
        %3096 = vmatpush1.xpose.msra.mxu0 %v3095
        %3097 = vmatprep.subr.mxu0 0.0
        %v3098 = vand.u32 %v2002, 4294901760
        %v3099 = vsub.f32 %v2002, %v3098
        %v3100 = vand.u32 %v3099, 4294901760
        %3101 = vmatpush1.xpose.msra.mxu0 %v3100
        %3102 = vmatprep.subr.mxu0 0.0
        %v3103 = vand.u32 %v2005, 4294901760
        %v3104 = vsub.f32 %v2005, %v3103
        %v3105 = vand.u32 %v3104, 4294901760
        %3106 = vmatpush1.xpose.msra.mxu0 %v3105
        %3107 = vmatprep.subr.mxu0 0.0
        %v3108 = vand.u32 %v2008, 4294901760
        %v3109 = vsub.f32 %v2008, %v3108
        %v3110 = vand.u32 %v3109, 4294901760
        %3111 = vmatpush1.xpose.msra.mxu0 %v3110
        %3112 = vmatprep.subr.mxu0 0.0
        %v3113 = vand.u32 %v2011, 4294901760
        %v3114 = vsub.f32 %v2011, %v3113
        %v3115 = vand.u32 %v3114, 4294901760
        %3116 = vmatpush1.xpose.msra.mxu0 %v3115
        %3117 = vmatprep.subr.mxu0 0.0
        %v3118 = vand.u32 %v2014, 4294901760
        %v3119 = vsub.f32 %v2014, %v3118
        %v3120 = vand.u32 %v3119, 4294901760
        %3121 = vmatpush1.xpose.msra.mxu0 %v3120
        %3122 = vmatprep.subr.mxu0 0.0
        %v3123 = vand.u32 %v2017, 4294901760
        %v3124 = vsub.f32 %v2017, %v3123
        %v3125 = vand.u32 %v3124, 4294901760
        %3126 = vmatpush1.xpose.msra.mxu0 %v3125
        %3127 = vmatprep.subr.mxu0 0.0
        %v3128 = vand.u32 %v2020, 4294901760
        %v3129 = vsub.f32 %v2020, %v3128
        %v3130 = vand.u32 %v3129, 4294901760
        %3131 = vmatpush1.xpose.msra.mxu0 %v3130
        %3132 = vmatprep.subr.mxu0 0.0
        %v3133 = vand.u32 %v2023, 4294901760
        %v3134 = vsub.f32 %v2023, %v3133
        %v3135 = vand.u32 %v3134, 4294901760
        %3136 = vmatpush1.xpose.msra.mxu0 %v3135
        %3137 = vmatprep.subr.mxu0 0.0
        %v3138 = vand.u32 %v2026, 4294901760
        %v3139 = vsub.f32 %v2026, %v3138
        %v3140 = vand.u32 %v3139, 4294901760
        %3141 = vmatpush1.xpose.msra.mxu0 %v3140
        %3142 = vmatprep.subr.mxu0 0.0
        %v3143 = vand.u32 %v2029, 4294901760
        %v3144 = vsub.f32 %v2029, %v3143
        %v3145 = vand.u32 %v3144, 4294901760
        %3146 = vmatpush1.xpose.msra.mxu0 %v3145
        %3147 = vmatprep.subr.mxu0 0.0
        %v3148 = vand.u32 %v2032, 4294901760
        %v3149 = vsub.f32 %v2032, %v3148
        %v3150 = vand.u32 %v3149, 4294901760
        %3151 = vmatpush1.xpose.msra.mxu0 %v3150
        %3152 = vmatprep.subr.mxu0 0.0
        %v3153 = vand.u32 %v2035, 4294901760
        %v3154 = vsub.f32 %v2035, %v3153
        %v3155 = vand.u32 %v3154, 4294901760
        %3156 = vmatpush1.xpose.msra.mxu0 %v3155
        %3157 = vmatprep.subr.mxu0 0.0
        %v3158 = vand.u32 %v2038, 4294901760
        %v3159 = vsub.f32 %v2038, %v3158
        %v3160 = vand.u32 %v3159, 4294901760
        %3161 = vmatpush1.xpose.msra.mxu0 %v3160
        %3162 = vmatprep.subr.mxu0 0.0
        %v3163 = vand.u32 %v2041, 4294901760
        %v3164 = vsub.f32 %v2041, %v3163
        %v3165 = vand.u32 %v3164, 4294901760
        %3166 = vmatpush1.xpose.msra.mxu0 %v3165
        %3167 = vmatprep.subr.mxu0 0.0
        %v3168 = vand.u32 %v2044, 4294901760
        %v3169 = vsub.f32 %v2044, %v3168
        %v3170 = vand.u32 %v3169, 4294901760
        %3171 = vmatpush1.xpose.msra.mxu0 %v3170
        %3172 = vmatprep.subr.mxu0 0.0
        %v3173 = vand.u32 %v2047, 4294901760
        %v3174 = vsub.f32 %v2047, %v3173
        %v3175 = vand.u32 %v3174, 4294901760
        %3176 = vmatpush1.xpose.msra.mxu0 %v3175
        %3177 = vmatprep.mubr.f32.mxu0 0.0
        %v3178 = vand.u32 %v1918, 4294901760
        %3179 = vmatmul.mubr.f32.gmra.mrb[0].mxu0 %v3178
        %v3180 = vpop.f32.mrb[0].mxu0
        %v3181 = vadd.f32 %v2914, %v3180
        %v3182 = vpop.f32.mrb[0].mxu0
        %v3183 = vadd.f32 %v2916, %v3182
        %3184 = vmatprep.mubr.f32.mxu0 0.0
        %v3185 = vand.u32 %v1921, 4294901760
        %3186 = vmatmul.mubr.f32.gmra.mrb[0].mxu0 %v3185
        %v3187 = vpop.f32.mrb[0].mxu0
        %v3188 = vadd.f32 %v2923, %v3187
        %v3189 = vpop.f32.mrb[0].mxu0
        %v3190 = vadd.f32 %v2925, %v3189
        %3191 = vmatprep.mubr.f32.mxu0 0.0
        %v3192 = vand.u32 %v1924, 4294901760
        %3193 = vmatmul.mubr.f32.gmra.mrb[0].mxu0 %v3192
        %v3194 = vpop.f32.mrb[0].mxu0
        %v3195 = vadd.f32 %v2932, %v3194
        %v3196 = vpop.f32.mrb[0].mxu0
        %v3197 = vadd.f32 %v2934, %v3196
        %3198 = vmatprep.mubr.f32.mxu0 0.0
        %v3199 = vand.u32 %v1927, 4294901760
        %3200 = vmatmul.mubr.f32.gmra.mrb[0].mxu0 %v3199
        %v3201 = vpop.f32.mrb[0].mxu0
        %v3202 = vadd.f32 %v2941, %v3201
        %v3203 = vpop.f32.mrb[0].mxu0
        %v3204 = vadd.f32 %v2943, %v3203
        %3205 = vmatprep.mubr.f32.mxu0 0.0
        %v3206 = vand.u32 %v1930, 4294901760
        %3207 = vmatmul.mubr.f32.gmra.mrb[0].mxu0 %v3206
        %v3208 = vpop.f32.mrb[0].mxu0
        %v3209 = vadd.f32 %v2950, %v3208
        %v3210 = vpop.f32.mrb[0].mxu0
        %v3211 = vadd.f32 %v2952, %v3210
        %3212 = vmatprep.mubr.f32.mxu0 0.0
        %v3213 = vand.u32 %v1933, 4294901760
        %3214 = vmatmul.mubr.f32.gmra.mrb[0].mxu0 %v3213
        %v3215 = vpop.f32.mrb[0].mxu0
        %v3216 = vadd.f32 %v2959, %v3215
        %v3217 = vpop.f32.mrb[0].mxu0
        %v3218 = vadd.f32 %v2961, %v3217
        %3219 = vmatprep.mubr.f32.mxu0 0.0
        %v3220 = vand.u32 %v1936, 4294901760
        %3221 = vmatmul.mubr.f32.gmra.mrb[0].mxu0 %v3220
        %v3222 = vpop.f32.mrb[0].mxu0
        %v3223 = vadd.f32 %v2968, %v3222
        %v3224 = vpop.f32.mrb[0].mxu0
        %v3225 = vadd.f32 %v2970, %v3224
        %3226 = vmatprep.mubr.f32.mxu0 0.0
        %v3227 = vand.u32 %v1939, 4294901760
        %3228 = vmatmul.mubr.f32.gmra.mrb[0].mxu0 %v3227
        %v3229 = vpop.f32.mrb[0].mxu0
        %v3230 = vadd.f32 %v2977, %v3229
        %v3231 = vpop.f32.mrb[0].mxu0
        %v3232 = vadd.f32 %v2979, %v3231
        %3233 = vmatprep.mubr.f32.mxu0 0.0
        %v3234 = vand.u32 %v1942, 4294901760
        %3235 = vmatmul.mubr.f32.gmra.mrb[0].mxu0 %v3234
        %v3236 = vpop.f32.mrb[0].mxu0
        %v3237 = vadd.f32 %v2986, %v3236
        %v3238 = vpop.f32.mrb[0].mxu0
        %v3239 = vadd.f32 %v2988, %v3238
        %3240 = vmatprep.mubr.f32.mxu0 0.0
        %v3241 = vand.u32 %v1945, 4294901760
        %3242 = vmatmul.mubr.f32.gmra.mrb[0].mxu0 %v3241
        %v3243 = vpop.f32.mrb[0].mxu0
        %v3244 = vadd.f32 %v2995, %v3243
        %v3245 = vpop.f32.mrb[0].mxu0
        %v3246 = vadd.f32 %v2997, %v3245
        %3247 = vmatprep.mubr.f32.mxu0 0.0
        %v3248 = vand.u32 %v1948, 4294901760
        %3249 = vmatmul.mubr.f32.gmra.mrb[0].mxu0 %v3248
        %v3250 = vpop.f32.mrb[0].mxu0
        %v3251 = vadd.f32 %v3004, %v3250
        %v3252 = vpop.f32.mrb[0].mxu0
        %v3253 = vadd.f32 %v3006, %v3252
        %3254 = vmatprep.mubr.f32.mxu0 0.0
        %v3255 = vand.u32 %v1951, 4294901760
        %3256 = vmatmul.mubr.f32.gmra.mrb[0].mxu0 %v3255
        %v3257 = vpop.f32.mrb[0].mxu0
        %v3258 = vadd.f32 %v3013, %v3257
        %v3259 = vpop.f32.mrb[0].mxu0
        %v3260 = vadd.f32 %v3015, %v3259
        %3261 = vdwg.mxu0
        %3262 = vmatprep.subr.mxu0 0.0
        %v3263 = vand.u32 %v1954, 4294901760
        %3264 = vmatpush1.xpose.msra.mxu0 %v3263
        %3265 = vmatprep.subr.mxu0 0.0
        %v3266 = vand.u32 %v1957, 4294901760
        %3267 = vmatpush1.xpose.msra.mxu0 %v3266
        %3268 = vmatprep.subr.mxu0 0.0
        %v3269 = vand.u32 %v1960, 4294901760
        %3270 = vmatpush1.xpose.msra.mxu0 %v3269
        %3271 = vmatprep.subr.mxu0 0.0
        %v3272 = vand.u32 %v1963, 4294901760
        %3273 = vmatpush1.xpose.msra.mxu0 %v3272
        %3274 = vmatprep.subr.mxu0 0.0
        %v3275 = vand.u32 %v1966, 4294901760
        %3276 = vmatpush1.xpose.msra.mxu0 %v3275
        %3277 = vmatprep.subr.mxu0 0.0
        %v3278 = vand.u32 %v1969, 4294901760
        %3279 = vmatpush1.xpose.msra.mxu0 %v3278
        %3280 = vmatprep.subr.mxu0 0.0
        %v3281 = vand.u32 %v1972, 4294901760
        %3282 = vmatpush1.xpose.msra.mxu0 %v3281
        %3283 = vmatprep.subr.mxu0 0.0
        %v3284 = vand.u32 %v1975, 4294901760
        %3285 = vmatpush1.xpose.msra.mxu0 %v3284
        %3286 = vmatprep.subr.mxu0 0.0
        %v3287 = vand.u32 %v1978, 4294901760
        %3288 = vmatpush1.xpose.msra.mxu0 %v3287
        %3289 = vmatprep.subr.mxu0 0.0
        %v3290 = vand.u32 %v1981, 4294901760
        %3291 = vmatpush1.xpose.msra.mxu0 %v3290
        %3292 = vmatprep.subr.mxu0 0.0
        %v3293 = vand.u32 %v1984, 4294901760
        %3294 = vmatpush1.xpose.msra.mxu0 %v3293
        %3295 = vmatprep.subr.mxu0 0.0
        %v3296 = vand.u32 %v1987, 4294901760
        %3297 = vmatpush1.xpose.msra.mxu0 %v3296
        %3298 = vmatprep.subr.mxu0 0.0
        %v3299 = vand.u32 %v1990, 4294901760
        %3300 = vmatpush1.xpose.msra.mxu0 %v3299
        %3301 = vmatprep.subr.mxu0 0.0
        %v3302 = vand.u32 %v1993, 4294901760
        %3303 = vmatpush1.xpose.msra.mxu0 %v3302
        %3304 = vmatprep.subr.mxu0 0.0
        %v3305 = vand.u32 %v1996, 4294901760
        %3306 = vmatpush1.xpose.msra.mxu0 %v3305
        %3307 = vmatprep.subr.mxu0 0.0
        %v3308 = vand.u32 %v1999, 4294901760
        %3309 = vmatpush1.xpose.msra.mxu0 %v3308
        %3310 = vmatprep.subr.mxu0 0.0
        %v3311 = vand.u32 %v2002, 4294901760
        %3312 = vmatpush1.xpose.msra.mxu0 %v3311
        %3313 = vmatprep.subr.mxu0 0.0
        %v3314 = vand.u32 %v2005, 4294901760
        %3315 = vmatpush1.xpose.msra.mxu0 %v3314
        %3316 = vmatprep.subr.mxu0 0.0
        %v3317 = vand.u32 %v2008, 4294901760
        %3318 = vmatpush1.xpose.msra.mxu0 %v3317
        %3319 = vmatprep.subr.mxu0 0.0
        %v3320 = vand.u32 %v2011, 4294901760
        %3321 = vmatpush1.xpose.msra.mxu0 %v3320
        %3322 = vmatprep.subr.mxu0 0.0
        %v3323 = vand.u32 %v2014, 4294901760
        %3324 = vmatpush1.xpose.msra.mxu0 %v3323
        %3325 = vmatprep.subr.mxu0 0.0
        %v3326 = vand.u32 %v2017, 4294901760
        %3327 = vmatpush1.xpose.msra.mxu0 %v3326
        %3328 = vmatprep.subr.mxu0 0.0
        %v3329 = vand.u32 %v2020, 4294901760
        %3330 = vmatpush1.xpose.msra.mxu0 %v3329
        %3331 = vmatprep.subr.mxu0 0.0
        %v3332 = vand.u32 %v2023, 4294901760
        %3333 = vmatpush1.xpose.msra.mxu0 %v3332
        %3334 = vmatprep.subr.mxu0 0.0
        %v3335 = vand.u32 %v2026, 4294901760
        %3336 = vmatpush1.xpose.msra.mxu0 %v3335
        %3337 = vmatprep.subr.mxu0 0.0
        %v3338 = vand.u32 %v2029, 4294901760
        %3339 = vmatpush1.xpose.msra.mxu0 %v3338
        %3340 = vmatprep.subr.mxu0 0.0
        %v3341 = vand.u32 %v2032, 4294901760
        %3342 = vmatpush1.xpose.msra.mxu0 %v3341
        %3343 = vmatprep.subr.mxu0 0.0
        %v3344 = vand.u32 %v2035, 4294901760
        %3345 = vmatpush1.xpose.msra.mxu0 %v3344
        %3346 = vmatprep.subr.mxu0 0.0
        %v3347 = vand.u32 %v2038, 4294901760
        %3348 = vmatpush1.xpose.msra.mxu0 %v3347
        %3349 = vmatprep.subr.mxu0 0.0
        %v3350 = vand.u32 %v2041, 4294901760
        %3351 = vmatpush1.xpose.msra.mxu0 %v3350
        %3352 = vmatprep.subr.mxu0 0.0
        %v3353 = vand.u32 %v2044, 4294901760
        %3354 = vmatpush1.xpose.msra.mxu0 %v3353
        %3355 = vmatprep.subr.mxu0 0.0
        %v3356 = vand.u32 %v2047, 4294901760
        %3357 = vmatpush1.xpose.msra.mxu0 %v3356
        %3358 = vmatprep.mubr.f32.mxu0 0.0
        %v3359 = vand.u32 %v1918, 4294901760
        %3360 = vmatmul.mubr.f32.gmra.mrb[0].mxu0 %v3359
        %v3361 = vpop.f32.mrb[0].mxu0
        %v3362 = vadd.f32 %v3181, %v3361
        %v3363 = vpop.f32.mrb[0].mxu0
        %v3364 = vadd.f32 %v3183, %v3363
        %3365 = vmatprep.mubr.f32.mxu0 0.0
        %v3366 = vand.u32 %v1921, 4294901760
        %3367 = vmatmul.mubr.f32.gmra.mrb[0].mxu0 %v3366
        %v3368 = vpop.f32.mrb[0].mxu0
        %v3369 = vadd.f32 %v3188, %v3368
        %v3370 = vpop.f32.mrb[0].mxu0
        %v3371 = vadd.f32 %v3190, %v3370
        %3372 = vmatprep.mubr.f32.mxu0 0.0
        %v3373 = vand.u32 %v1924, 4294901760
        %3374 = vmatmul.mubr.f32.gmra.mrb[0].mxu0 %v3373
        %v3375 = vpop.f32.mrb[0].mxu0
        %v3376 = vadd.f32 %v3195, %v3375
        %v3377 = vpop.f32.mrb[0].mxu0
        %v3378 = vadd.f32 %v3197, %v3377
        %3379 = vmatprep.mubr.f32.mxu0 0.0
        %v3380 = vand.u32 %v1927, 4294901760
        %3381 = vmatmul.mubr.f32.gmra.mrb[0].mxu0 %v3380
        %v3382 = vpop.f32.mrb[0].mxu0
        %v3383 = vadd.f32 %v3202, %v3382
        %v3384 = vpop.f32.mrb[0].mxu0
        %v3385 = vadd.f32 %v3204, %v3384
        %3386 = vmatprep.mubr.f32.mxu0 0.0
        %v3387 = vand.u32 %v1930, 4294901760
        %3388 = vmatmul.mubr.f32.gmra.mrb[0].mxu0 %v3387
        %v3389 = vpop.f32.mrb[0].mxu0
        %v3390 = vadd.f32 %v3209, %v3389
        %v3391 = vpop.f32.mrb[0].mxu0
        %v3392 = vadd.f32 %v3211, %v3391
        %3393 = vmatprep.mubr.f32.mxu0 0.0
        %v3394 = vand.u32 %v1933, 4294901760
        %3395 = vmatmul.mubr.f32.gmra.mrb[0].mxu0 %v3394
        %v3396 = vpop.f32.mrb[0].mxu0
        %v3397 = vadd.f32 %v3216, %v3396
        %v3398 = vpop.f32.mrb[0].mxu0
        %v3399 = vadd.f32 %v3218, %v3398
        %3400 = vmatprep.mubr.f32.mxu0 0.0
        %v3401 = vand.u32 %v1936, 4294901760
        %3402 = vmatmul.mubr.f32.gmra.mrb[0].mxu0 %v3401
        %v3403 = vpop.f32.mrb[0].mxu0
        %v3404 = vadd.f32 %v3223, %v3403
        %v3405 = vpop.f32.mrb[0].mxu0
        %v3406 = vadd.f32 %v3225, %v3405
        %3407 = vmatprep.mubr.f32.mxu0 0.0
        %v3408 = vand.u32 %v1939, 4294901760
        %3409 = vmatmul.mubr.f32.gmra.mrb[0].mxu0 %v3408
        %v3410 = vpop.f32.mrb[0].mxu0
        %v3411 = vadd.f32 %v3230, %v3410
        %v3412 = vpop.f32.mrb[0].mxu0
        %v3413 = vadd.f32 %v3232, %v3412
        %3414 = vmatprep.mubr.f32.mxu0 0.0
        %v3415 = vand.u32 %v1942, 4294901760
        %3416 = vmatmul.mubr.f32.gmra.mrb[0].mxu0 %v3415
        %v3417 = vpop.f32.mrb[0].mxu0
        %v3418 = vadd.f32 %v3237, %v3417
        %v3419 = vpop.f32.mrb[0].mxu0
        %v3420 = vadd.f32 %v3239, %v3419
        %3421 = vmatprep.mubr.f32.mxu0 0.0
        %v3422 = vand.u32 %v1945, 4294901760
        %3423 = vmatmul.mubr.f32.gmra.mrb[0].mxu0 %v3422
        %v3424 = vpop.f32.mrb[0].mxu0
        %v3425 = vadd.f32 %v3244, %v3424
        %v3426 = vpop.f32.mrb[0].mxu0
        %v3427 = vadd.f32 %v3246, %v3426
        %3428 = vmatprep.mubr.f32.mxu0 0.0
        %v3429 = vand.u32 %v1948, 4294901760
        %3430 = vmatmul.mubr.f32.gmra.mrb[0].mxu0 %v3429
        %v3431 = vpop.f32.mrb[0].mxu0
        %v3432 = vadd.f32 %v3251, %v3431
        %v3433 = vpop.f32.mrb[0].mxu0
        %v3434 = vadd.f32 %v3253, %v3433
        %3435 = vmatprep.mubr.f32.mxu0 0.0
        %v3436 = vand.u32 %v1951, 4294901760
        %3437 = vmatmul.mubr.f32.gmra.mrb[0].mxu0 %v3436
        %v3438 = vpop.f32.mrb[0].mxu0
        %v3439 = vadd.f32 %v3258, %v3438
        %v3440 = vpop.f32.mrb[0].mxu0
        %v3441 = vadd.f32 %v3260, %v3440
        %3442 = vdwg.mxu0
        %vm3443 = vcmp.lt.f32.partialorder %v3418, 0.0
        %vm3444 = vcmp.lt.f32.partialorder %v3420, 0.0
        %vm3445 = vcmp.lt.f32.partialorder %v3425, 0.0
        %vm3446 = vcmp.lt.f32.partialorder %v3427, 0.0
        %vm3447 = vcmp.lt.f32.partialorder %v3432, 0.0
        %vm3448 = vcmp.lt.f32.partialorder %v3434, 0.0
        %vm3449 = vcmp.lt.f32.partialorder %v3439, 0.0
        %vm3450 = vcmp.lt.f32.partialorder %v3441, 0.0
        %v3451 = vsel %vm3443, %v3390, %v3362
        %v3452 = vsel %vm3444, %v3392, %v3364
        %v3453 = vsel %vm3445, %v3397, %v3369
        %v3454 = vsel %vm3446, %v3399, %v3371
        %v3455 = vsel %vm3447, %v3404, %v3376
        %v3456 = vsel %vm3448, %v3406, %v3378
        %v3457 = vsel %vm3449, %v3411, %v3383
        %v3458 = vsel %vm3450, %v3413, %v3385
        %v3459 = vmul.f32 %v3451, %v3451
        %v3460 = vmul.f32 %v3452, %v3452
        %v3461 = vmul.f32 %v3453, %v3453
        %v3462 = vmul.f32 %v3454, %v3454
        %v3463 = vmul.f32 %v3455, %v3455
        %v3464 = vmul.f32 %v3456, %v3456
        %v3465 = vmul.f32 %v3457, %v3457
        %v3466 = vmul.f32 %v3458, %v3458
        %v3467 = vmul.f32 %v3418, %v3418
        %v3468 = vmul.f32 %v3420, %v3420
        %v3469 = vmul.f32 %v3425, %v3425
        %v3470 = vmul.f32 %v3427, %v3427
        %v3471 = vmul.f32 %v3432, %v3432
        %v3472 = vmul.f32 %v3434, %v3434
        %v3473 = vmul.f32 %v3439, %v3439
        %v3474 = vmul.f32 %v3441, %v3441
        %v3475 = vmul.f32 %v3467, 3.125e-05
        %v3476 = vmul.f32 %v3468, 3.125e-05
        %v3477 = vmul.f32 %v3469, 3.125e-05
        %v3478 = vmul.f32 %v3470, 3.125e-05
        %v3479 = vmul.f32 %v3471, 3.125e-05
        %v3480 = vmul.f32 %v3472, 3.125e-05
        %v3481 = vmul.f32 %v3473, 3.125e-05
        %v3482 = vmul.f32 %v3474, 3.125e-05
        %v3483 = vadd.f32 %v3459, %v3475
        %v3484 = vadd.f32 %v3460, %v3476
        %v3485 = vadd.f32 %v3461, %v3477
        %v3486 = vadd.f32 %v3462, %v3478
        %v3487 = vadd.f32 %v3463, %v3479
        %v3488 = vadd.f32 %v3464, %v3480
        %v3489 = vadd.f32 %v3465, %v3481
        %v3490 = vadd.f32 %v3466, %v3482
        %v3491 = vadd.f32 %v3483, %v3485
        %v3492 = vadd.f32 %v3491, %v3487
        %v3493 = vadd.f32 %v3492, %v3489
        %v3494 = vrot.slane %v3493, 4
        %v3495 = vadd.f32 %v3493, %v3494
        %v3496 = vrot.slane %v3495, 2
        %v3497 = vadd.f32 %v3495, %v3496
        %v3498 = vrot.slane %v3497, 1
        %v3499 = vadd.f32 %v3497, %v3498
        %v3500 = vadd.f32 %v3484, %v3486
        %v3501 = vadd.f32 %v3500, %v3488
        %v3502 = vadd.f32 %v3501, %v3490
        %v3503 = vrot.slane %v3502, 4
        %v3504 = vadd.f32 %v3502, %v3503
        %v3505 = vrot.slane %v3504, 2
        %v3506 = vadd.f32 %v3504, %v3505
        %v3507 = vrot.slane %v3506, 1
        %v3508 = vadd.f32 %v3506, %v3507
        %v3511 = vcombine.low %v3499, %v3508
        %v3513 = vunpack.c.l.s4 1966171168
        %v3514 = vunpack.c.0.s8 %v3513
        %v3515 = vlaneseq
        %v3516 = vshrl.u32 %v3515, 7
        %v3517 = vsub.s32 %v3514, %v3516
        %v3518 = vrot.slane %v3511, %v3517
        %v3520 = vunpack.c.l.s4 1966171168
        %v3521 = vunpack.c.0.s8 %v3520
        %v3522 = vlaneseq
        %v3523 = vshrl.u32 %v3522, 7
        %v3524 = vsub.s32 %v3521, %v3523
        %v3525 = vrot.slane %v3518, %v3524
        %v3527 = vlaneseq
        %vm3528 = vcmp.ge.s32.totalorder %v3527, 0
        %vm3529 = vcmp.lt.s32.totalorder %v3527, 256
        %vm3530 = vmand %vm3528, %vm3529
        %3531 = vst.msk [vmem:[%s191] sm:$0x3] %vm3530, %v3525
        %s3532 = sand.u32 %s115, 1
        %s3533 = scalar_lea.sflag [#allocation3], %s3532
        %s3534 = sand.u32 %s115, 1
        %s3535 = smul.addr %s3534, 2
        %s3536 = scalar_lea.vmem [#allocation2], %s3535
        // Predicated region
        $region37: #{tpu_custom_call.1} parent=35 // pred_check
          %p3537 = pneg %p125
        $region38: #{tpu_custom_call.1} parent=35 // pred_check_branch
          %3539 = sbr.rel (%p3537) target = $region40
        $region39: #{tpu_custom_call.1} parent=35 // pred_region
          %s3540 = smul.u32 2, %s18
          %s3542 = ssub.s32 32, 32
          %3543 = vsyncadd %s3533, %s3542
          %s3544 = smul.addr %s3540, 16
          %s3545 = scalar_lea.hbm %s4, %s3544
          %s3547 = sshll.u32 %s3536, 4
          %s3548 = int_to_ptr.vmem [resolvable:$true] %s3547
          %3550 = dma.vmem_to_hbm [thread:$0]  %s3548, 32, %s3545, %s3533
        $region40: #{tpu_custom_call.1} parent=35 // pred_fallthru
          _
      $region36: #{tpu_custom_call.1} parent=5 // pred_fallthru
        _
      %p3551 = scmp.le.s32.totalorder 2, %s13
      // Predicated region
      $region41: #{tpu_custom_call.1} parent=5 // pred_check
        %p3552 = pneg %p3551
      $region42: #{tpu_custom_call.1} parent=5 // pred_check_branch
        %3554 = sbr.rel (%p3552) target = $region44
      $region43: #{tpu_custom_call.1} parent=5 // pred_region
        %s3555 = ssub.s32 %s13, 2
        // Predicated region
        $region45: #{tpu_custom_call.1} parent=43 // pred_check
          %p3556 = pneg %p131
        $region46: #{tpu_custom_call.1} parent=43 // pred_check_branch
          %3558 = sbr.rel (%p3556) target = $region48
        $region47: #{tpu_custom_call.1} parent=43 // pred_region
          %s3559 = sand.u32 %s116, 1
          %s3560 = scalar_lea.sflag [#allocation3], %s3559
          %s3561 = sand.u32 %s116, 1
          %s3562 = smul.addr %s3561, 2
          %s3563 = scalar_lea.vmem [#allocation2], %s3562
          %3564 = dma.done %s3560, 32
        $region48: #{tpu_custom_call.1} parent=43 // pred_fallthru
          _
      $region44: #{tpu_custom_call.1} parent=5 // pred_fallthru
        _
    $region6: #{tpu_custom_call.1} parent=1 // loop_footer
      %s17 = sadd.s32 1, %s13
    $region7: #{tpu_custom_call.1} parent=1 // loop_footer_branch
      %12 = sbr.rel target = $region3
    $region8: #{tpu_custom_call.1} parent=1 // loop_exit
      _
    %3565 = vsyncpa [#allocation3], 1
    %s3566 = scalar_lea.sflag [#allocation3], 1
    %3567 = vsyncpa %s3566, 1

</llo_original>
